<compile_context>
chip_gen: v6e
topology: v6e:2x2x1
jax: 0.10.0
libtpu: 0.0.40
codegen_flags: <defaults>
</compile_context>

<pallas_src>
import jax
import jax.numpy as jnp
from jax.experimental import pallas as pl
from jax.experimental.pallas import tpu as pltpu

IN_DIM = 28 * 28   # 784
HID = 512
OUT_DIM = 10
OUT_PAD = 128      # lane-dense padded logits width (10 -> 128)


def _round_up(x, m):
    return (x + m - 1) // m * m


def mlp_kernel(x_ref, w1_ref, b1_ref, w2_ref, b2_ref, w3_ref, b3_ref, o_ref):
    # x_ref: (tile_m, 784) f32 or bf16; w*_ref: bf16 (in, out); b*_ref: f32 (1, out).
    x = x_ref[...].astype(jnp.bfloat16)                          # no-op if caller fed bf16
    h1 = jnp.dot(x, w1_ref[...], preferred_element_type=jnp.float32)
    h1 = jnp.maximum(h1 + b1_ref[...], 0.0)                      # f32 epilogue (v5e-safe)

    h2 = jnp.dot(h1.astype(jnp.bfloat16), w2_ref[...],
                 preferred_element_type=jnp.float32)
    h2 = jnp.maximum(h2 + b2_ref[...], 0.0)

    logits = jnp.dot(h2.astype(jnp.bfloat16), w3_ref[...],
                     preferred_element_type=jnp.float32)
    o_ref[...] = logits + b3_ref[...]                            # (tile_m, 128) lane-dense store


def _choose_tile_m(n, requested, align):
    """MXU-filling, alignment-respecting batch tile that never exceeds the batch."""
    if n <= align:
        return n                                # one block == full batch dim (exempt from align)
    floor_al = (n // align) * align             # largest aligned tile <= n
    if requested is not None:
        return max(align, min(_round_up(requested, align), floor_al))
    tm = min(1024, floor_al)                    # default: big, MXU-filling tile
    if floor_al >= 512:
        # 256-aligned and >= 2 grid steps so the "parallel" batch axis spans
        # both v7x TensorCores.
        tm = min(tm, _round_up(pl.cdiv(n, 2), 256))
        tm = max(256, (tm // 256) * 256)
        tm = min(tm, floor_al)
    return tm


def mlp_forward(x_nchw, kernel_params, *, tile_m=None):
    """x_nchw: (N, 1, 28, 28) float32 or bfloat16; kernel_params from prepare_params()."""
    w1, b1, w2, b2, w3p, b3p = kernel_params
    n = x_nchw.shape[0]
    x_flat = x_nchw.reshape(n, IN_DIM)          # flatten (plain-JAX glue; keeps caller's dtype)

    align = 16 if x_flat.dtype == jnp.bfloat16 else 8   # sublane packing for the batch tile
    tm = _choose_tile_m(n, tile_m, align)
    grid_m = pl.cdiv(n, tm)                     # ragged final block; no jnp.pad HBM pass

    const = lambda i: (0, 0)   # weights / biases: same block every step -> stay VMEM-resident
    out = pl.pallas_call(
        mlp_kernel,
        out_shape=jax.ShapeDtypeStruct((n, OUT_PAD), jnp.float32),
        grid=(grid_m,),
        in_specs=[
            pl.BlockSpec((tm, IN_DIM), lambda i: (i, 0)),        # x tile (pipelined, ragged tail ok)
            pl.BlockSpec((IN_DIM, HID), const),                  # w1 (bf16)
            pl.BlockSpec((1, HID), const),                       # b1 (f32)
            pl.BlockSpec((HID, HID), const),                     # w2 (bf16)
            pl.BlockSpec((1, HID), const),                       # b2 (f32)
            pl.BlockSpec((HID, OUT_PAD), const),                 # w3 (bf16, padded to 128)
            pl.BlockSpec((1, OUT_PAD), const),                   # b3 (f32, padded to 128)
        ],
        out_specs=pl.BlockSpec((tm, OUT_PAD), lambda i: (i, 0)),
        compiler_params=pltpu.CompilerParams(
            dimension_semantics=("parallel",),                   # megacore-shard batch tiles
            vmem_limit_bytes=48 * 1024 * 1024,                   # headroom for tile_m=1024 f32 x
        ),
    )(x_flat, w1, b1, w2, b2, w3p, b3p)

    return out[:, :OUT_DIM]


def init_params(key):
    """Deterministic init mimicking nn.Linear defaults (uniform +/- 1/sqrt(fan_in)).

    Weights stored pre-transposed as (in, out) so the kernel computes x @ W.
    """
    ks = jax.random.split(key, 6)

    def lin(kw, kb, fan_in, fan_out):
        bound = 1.0 / jnp.sqrt(jnp.float32(fan_in))
        w = jax.random.uniform(kw, (fan_in, fan_out), jnp.float32, -bound, bound)
        b = jax.random.uniform(kb, (1, fan_out), jnp.float32, -bound, bound)
        return w, b

    w1, b1 = lin(ks[0], ks[1], IN_DIM, HID)
    w2, b2 = lin(ks[2], ks[3], HID, HID)
    w3, b3 = lin(ks[4], ks[5], HID, OUT_DIM)
    return (w1, b1, w2, b2, w3, b3)


def prepare_params(params_f32):
    """bf16 weights (half the DMA, bf16 MXU), f32 biases, last layer padded 10 -> 128 lanes."""
    w1, b1, w2, b2, w3, b3 = params_f32
    w3p = jnp.zeros((HID, OUT_PAD), jnp.float32).at[:, :OUT_DIM].set(w3)
    b3p = jnp.zeros((1, OUT_PAD), jnp.float32).at[:, :OUT_DIM].set(b3)
    return (w1.astype(jnp.bfloat16), b1,
            w2.astype(jnp.bfloat16), b2,
            w3p.astype(jnp.bfloat16), b3p)


if __name__ == "__main__":
    key = jax.random.PRNGKey(0)
    k_x, k_p = jax.random.split(key)

    batch = 200
    x = jax.random.normal(k_x, (batch, 1, 28, 28), jnp.float32)  # NCHW, f32 like PyTorch
    params = init_params(k_p)
    kparams = prepare_params(params)

    # Pure-JAX reference with the same bf16-weight / f32-accumulation numerics.
    w1, b1, w2, b2, w3, b3 = params
    xf = x.reshape(batch, IN_DIM)
    h = jnp.maximum(jnp.dot(xf.astype(jnp.bfloat16), w1.astype(jnp.bfloat16),
                            preferred_element_type=jnp.float32) + b1, 0.0)
    h = jnp.maximum(jnp.dot(h.astype(jnp.bfloat16), w2.astype(jnp.bfloat16),
                            preferred_element_type=jnp.float32) + b2, 0.0)
    ref = jnp.dot(h.astype(jnp.bfloat16), w3.astype(jnp.bfloat16),
                  preferred_element_type=jnp.float32) + b3

    # 1) Auto tile selection (the perf path): one tight, 8-aligned block.
    logits = mlp_forward(x, kparams)
    jax.block_until_ready(logits)
    assert logits.shape == (batch, OUT_DIM)
    assert jnp.allclose(logits, ref, atol=1e-2, rtol=1e-2), \
        float(jnp.max(jnp.abs(logits - ref)))

    # 2) Small explicit tile: multi-step pipelined grid with a ragged last block
    #    (200 = 3*64 + 8) and no wrapper-side padding.
    logits2 = mlp_forward(x, kparams, tile_m=64)
    jax.block_until_ready(logits2)
    assert jnp.allclose(logits2, ref, atol=1e-2, rtol=1e-2), \
        float(jnp.max(jnp.abs(logits2 - ref)))

    # 3) bf16 activations fed directly (v6e HBM-bound path): halves the x DMA.
    logits3 = mlp_forward(x.astype(jnp.bfloat16), kparams)
    jax.block_until_ready(logits3)
    assert jnp.allclose(logits3, ref, atol=1e-2, rtol=1e-2), \
        float(jnp.max(jnp.abs(logits3 - ref)))

    print("KERNEL_OK")
</pallas_src>

<mosaic_0001>
module attributes {stable_mosaic.version = 11 : i64} {
  func.func @mlp_kernel(%arg0: i32, %arg1: memref<200x784xf32, #tpu.memory_space<vmem>>, %arg2: memref<784x512xbf16, #tpu.memory_space<vmem>>, %arg3: memref<1x512xf32, #tpu.memory_space<vmem>>, %arg4: memref<512x512xbf16, #tpu.memory_space<vmem>>, %arg5: memref<1x512xf32, #tpu.memory_space<vmem>>, %arg6: memref<512x128xbf16, #tpu.memory_space<vmem>>, %arg7: memref<1x128xf32, #tpu.memory_space<vmem>>, %arg8: memref<200x128xf32, #tpu.memory_space<vmem>>) attributes {dimension_semantics = [#tpu.dimension_semantics<parallel>], iteration_bounds = array<i64: 1>, scalar_prefetch = 0 : i64, scratch_operands = 0 : i64, tpu.core_type = #tpu.core_type<tc>, window_params = [{transform_indices = @transform_0, window_bounds = array<i64: 200, 784>}, {pipeline_mode = #tpu.pipeline_mode<synchronous>, transform_indices = @transform_1, window_bounds = array<i64: 784, 512>}, {pipeline_mode = #tpu.pipeline_mode<synchronous>, transform_indices = @transform_2, window_bounds = array<i64: 1, 512>}, {pipeline_mode = #tpu.pipeline_mode<synchronous>, transform_indices = @transform_3, window_bounds = array<i64: 512, 512>}, {pipeline_mode = #tpu.pipeline_mode<synchronous>, transform_indices = @transform_4, window_bounds = array<i64: 1, 512>}, {pipeline_mode = #tpu.pipeline_mode<synchronous>, transform_indices = @transform_5, window_bounds = array<i64: 512, 128>}, {pipeline_mode = #tpu.pipeline_mode<synchronous>, transform_indices = @transform_6, window_bounds = array<i64: 1, 128>}, {transform_indices = @transform_7, window_bounds = array<i64: 200, 128>}]} {
    %c0 = arith.constant 0 : index
    %c0_0 = arith.constant 0 : index
    %0 = vector.load %arg1[%c0, %c0_0] : memref<200x784xf32, #tpu.memory_space<vmem>>, vector<200x784xf32>
    %1 = arith.truncf %0 : vector<200x784xf32> to vector<200x784xbf16>
    %c0_1 = arith.constant 0 : index
    %c0_2 = arith.constant 0 : index
    %2 = vector.load %arg2[%c0_1, %c0_2] : memref<784x512xbf16, #tpu.memory_space<vmem>>, vector<784x512xbf16>
    %cst = arith.constant dense<0.000000e+00> : vector<200x512xf32>
    %3 = tpu.matmul %1, %2, %cst {dimension_numbers = #tpu.dot_dimension_numbers<[1], [0], [0], [1], [0, 0, 1, 1], [], []>} : vector<200x784xbf16>, vector<784x512xbf16>, vector<200x512xf32> -> vector<200x512xf32>
    %c0_3 = arith.constant 0 : index
    %c0_4 = arith.constant 0 : index
    %4 = vector.load %arg3[%c0_3, %c0_4] : memref<1x512xf32, #tpu.memory_space<vmem>>, vector<1x512xf32>
    %5 = vector.broadcast %4 : vector<1x512xf32> to vector<200x512xf32>
    %6 = arith.addf %3, %5 : vector<200x512xf32>
    %cst_5 = arith.constant 0.000000e+00 : f32
    %7 = vector.broadcast %cst_5 : f32 to vector<200x512xf32>
    %8 = arith.maximumf %6, %7 : vector<200x512xf32>
    %9 = arith.truncf %8 : vector<200x512xf32> to vector<200x512xbf16>
    %c0_6 = arith.constant 0 : index
    %c0_7 = arith.constant 0 : index
    %10 = vector.load %arg4[%c0_6, %c0_7] : memref<512x512xbf16, #tpu.memory_space<vmem>>, vector<512x512xbf16>
    %cst_8 = arith.constant dense<0.000000e+00> : vector<200x512xf32>
    %11 = tpu.matmul %9, %10, %cst_8 {dimension_numbers = #tpu.dot_dimension_numbers<[1], [0], [0], [1], [0, 0, 1, 1], [], []>} : vector<200x512xbf16>, vector<512x512xbf16>, vector<200x512xf32> -> vector<200x512xf32>
    %c0_9 = arith.constant 0 : index
    %c0_10 = arith.constant 0 : index
    %12 = vector.load %arg5[%c0_9, %c0_10] : memref<1x512xf32, #tpu.memory_space<vmem>>, vector<1x512xf32>
    %13 = vector.broadcast %12 : vector<1x512xf32> to vector<200x512xf32>
    %14 = arith.addf %11, %13 : vector<200x512xf32>
    %cst_11 = arith.constant 0.000000e+00 : f32
    %15 = vector.broadcast %cst_11 : f32 to vector<200x512xf32>
    %16 = arith.maximumf %14, %15 : vector<200x512xf32>
    %17 = arith.truncf %16 : vector<200x512xf32> to vector<200x512xbf16>
    %c0_12 = arith.constant 0 : index
    %c0_13 = arith.constant 0 : index
    %18 = vector.load %arg6[%c0_12, %c0_13] : memref<512x128xbf16, #tpu.memory_space<vmem>>, vector<512x128xbf16>
    %cst_14 = arith.constant dense<0.000000e+00> : vector<200x128xf32>
    %19 = tpu.matmul %17, %18, %cst_14 {dimension_numbers = #tpu.dot_dimension_numbers<[1], [0], [0], [1], [0, 0, 1, 1], [], []>} : vector<200x512xbf16>, vector<512x128xbf16>, vector<200x128xf32> -> vector<200x128xf32>
    %c0_15 = arith.constant 0 : index
    %c0_16 = arith.constant 0 : index
    %20 = vector.load %arg7[%c0_15, %c0_16] : memref<1x128xf32, #tpu.memory_space<vmem>>, vector<1x128xf32>
    %21 = vector.broadcast %20 : vector<1x128xf32> to vector<200x128xf32>
    %22 = arith.addf %19, %21 : vector<200x128xf32>
    %c0_17 = arith.constant 0 : index
    %c0_18 = arith.constant 0 : index
    %23 = vector.load %arg8[%c0_17, %c0_18] : memref<200x128xf32, #tpu.memory_space<vmem>>, vector<200x128xf32>
    tpu.vector_store %arg8[%c0_17, %c0_18], %22 {strides = array<i32>} : memref<200x128xf32, #tpu.memory_space<vmem>>, vector<200x128xf32>,
    return
  }
  func.func @transform_0(%arg0: i32) -> (i32, i32) {
    %c0_i32 = arith.constant 0 : i32
    %c0_i32_0 = arith.constant 0 : i32
    return %arg0, %c0_i32 : i32, i32
  }
  func.func @transform_1(%arg0: i32) -> (i32, i32) {
    %c0_i32 = arith.constant 0 : i32
    %c0_i32_0 = arith.constant 0 : i32
    %c0_i32_1 = arith.constant 0 : i32
    return %c0_i32, %c0_i32_0 : i32, i32
  }
  func.func @transform_2(%arg0: i32) -> (i32, i32) {
    %c0_i32 = arith.constant 0 : i32
    %c0_i32_0 = arith.constant 0 : i32
    %c0_i32_1 = arith.constant 0 : i32
    return %c0_i32, %c0_i32_0 : i32, i32
  }
  func.func @transform_3(%arg0: i32) -> (i32, i32) {
    %c0_i32 = arith.constant 0 : i32
    %c0_i32_0 = arith.constant 0 : i32
    %c0_i32_1 = arith.constant 0 : i32
    return %c0_i32, %c0_i32_0 : i32, i32
  }
  func.func @transform_4(%arg0: i32) -> (i32, i32) {
    %c0_i32 = arith.constant 0 : i32
    %c0_i32_0 = arith.constant 0 : i32
    %c0_i32_1 = arith.constant 0 : i32
    return %c0_i32, %c0_i32_0 : i32, i32
  }
  func.func @transform_5(%arg0: i32) -> (i32, i32) {
    %c0_i32 = arith.constant 0 : i32
    %c0_i32_0 = arith.constant 0 : i32
    %c0_i32_1 = arith.constant 0 : i32
    return %c0_i32, %c0_i32_0 : i32, i32
  }
  func.func @transform_6(%arg0: i32) -> (i32, i32) {
    %c0_i32 = arith.constant 0 : i32
    %c0_i32_0 = arith.constant 0 : i32
    %c0_i32_1 = arith.constant 0 : i32
    return %c0_i32, %c0_i32_0 : i32, i32
  }
  func.func @transform_7(%arg0: i32) -> (i32, i32) {
    %c0_i32 = arith.constant 0 : i32
    %c0_i32_0 = arith.constant 0 : i32
    return %arg0, %c0_i32 : i32, i32
  }
}

</mosaic_0001>

<llo_original>
// kernel: tpu_custom_call.1
$region0: #{tpu_custom_call.1}
  #allocation0 [shape = 'u32[]', space=smem, size = 0x4, offset = 0x4, fixed_abs, tag = 'smem constant byte address 0x4 - core index']
  #allocation1 [shape = 'u32[144,128]{1,0:T(1,128)}', space=vmem, size = 0x12000, scoped, tag = 'internal scratch']
  %s0 = inlined_call_operand.hbm [shape: f32[200,784], index: 0, kind: input, shape index: {}]
  %s1 = inlined_call_operand.hbm [shape: bf16[784,512], index: 1, kind: input, shape index: {}]
  %s2 = inlined_call_operand.hbm [shape: f32[1,512], index: 2, kind: input, shape index: {}]
  %s3 = inlined_call_operand.hbm [shape: bf16[512,512], index: 3, kind: input, shape index: {}]
  %s4 = inlined_call_operand.vmem [shape: f32[1,512], index: 4, kind: input, shape index: {}]
  %s5 = inlined_call_operand.hbm [shape: bf16[512,128], index: 5, kind: input, shape index: {}]
  %s6 = inlined_call_operand.vmem [shape: f32[1,128], index: 6, kind: input, shape index: {}]
  %s7 = inlined_call_operand.hbm [shape: f32[200,128], index: 7, kind: output, shape index: {}]
  %s8 = sld [smem:[#allocation0]]
  $region58: #{tpu_custom_call.1} parent=0
    _
  %s10 = ssub.s32 1, %s8
  %s11 = scalar_select 0, %s10, %s8
  $region1: #{tpu_custom_call.1} parent=0
    #allocation2 [shape = 'u8[716800]{0}', space=vmem, size = 0xaf000, scoped, tag = 'input window, operand 0, single buffered']
    #allocation3 [shape = 's32[1]{0}', space=sflag, size = 0x4, scoped, tag = 'scoped memory for tpu_custom_call.1']
    #allocation4 [shape = 's32[1]{0}', space=sflag, size = 0x4, scoped, tag = 'scoped memory for tpu_custom_call.1']
    #allocation5 [shape = 'u8[802816]{0}', space=vmem, size = 0xc4000, scoped, tag = 'input window, operand 1, single buffered']
    #allocation6 [shape = 's32[1]{0}', space=sflag, size = 0x4, scoped, tag = 'scoped memory for tpu_custom_call.1']
    #allocation7 [shape = 'u8[2048]{0}', space=vmem, size = 0x800, scoped, tag = 'input window, operand 2, single buffered']
    #allocation8 [shape = 'u8[524288]{0}', space=vmem, size = 0x80000, scoped, tag = 'input window, operand 3, single buffered']
    #allocation9 [shape = 's32[1]{0}', space=sflag, size = 0x4, scoped, tag = 'scoped memory for tpu_custom_call.1']
    #allocation10 [shape = 'u8[131072]{0}', space=vmem, size = 0x20000, scoped, tag = 'input window, operand 5, single buffered']
    #allocation11 [shape = 'u8[102400]{0}', space=vmem, size = 0x19000, scoped, tag = 'output window, operand 0, single buffered']
    %12 = vsyncpa [#allocation3], 0
    %13 = vsyncpa [#allocation6], 0
    %14 = vsyncpa [#allocation9], 0
    %15 = vsyncpa [#allocation4], 0
    // Predicated region
    $region2: #{tpu_custom_call.1} parent=1 // pred_check
      _
    $region3: #{tpu_custom_call.1} parent=1 // pred_check_branch
      %17 = sbr.rel (0) target = $region5
    $region4: #{tpu_custom_call.1} parent=1 // pred_region
      %s19 = ssub.s32 22400, 22400
      %20 = vsyncadd [#allocation3], %s19
      %s21 = sshll.u32 [#allocation2], 4
      %s22 = int_to_ptr.vmem [resolvable:$true] %s21
      %27 = dma.hbm_to_vmem [thread:$0]  %s0, 22400, %s22, [#allocation3], 896, 896, 56
    $region5: #{tpu_custom_call.1} parent=1 // pred_fallthru
      _
    // Predicated region
    $region6: #{tpu_custom_call.1} parent=1 // pred_check
      _
    $region7: #{tpu_custom_call.1} parent=1 // pred_check_branch
      %29 = sbr.rel (0) target = $region9
    $region8: #{tpu_custom_call.1} parent=1 // pred_region
      %s31 = ssub.s32 25088, 25088
      %32 = vsyncadd [#allocation6], %s31
      %s33 = sshll.u32 [#allocation5], 4
      %s34 = int_to_ptr.vmem [resolvable:$true] %s33
      %39 = dma.hbm_to_vmem [thread:$0]  %s1, 25088, %s34, [#allocation6], 256, 256, 16
    $region9: #{tpu_custom_call.1} parent=1 // pred_fallthru
      _
    // Predicated region
    $region10: #{tpu_custom_call.1} parent=1 // pred_check
      _
    $region11: #{tpu_custom_call.1} parent=1 // pred_check_branch
      %41 = sbr.rel (0) target = $region13
    $region12: #{tpu_custom_call.1} parent=1 // pred_region
      %s43 = ssub.s32 64, 64
      %44 = vsyncadd [#allocation6], %s43
      %s46 = sshll.u32 [#allocation7], 4
      %s47 = int_to_ptr.vmem [resolvable:$true] %s46
      %49 = dma.hbm_to_vmem [thread:$0]  %s2, 64, %s47, [#allocation6]
    $region13: #{tpu_custom_call.1} parent=1 // pred_fallthru
      _
    // Predicated region
    $region14: #{tpu_custom_call.1} parent=1 // pred_check
      _
    $region15: #{tpu_custom_call.1} parent=1 // pred_check_branch
      %51 = sbr.rel (0) target = $region17
    $region16: #{tpu_custom_call.1} parent=1 // pred_region
      %s53 = ssub.s32 16384, 16384
      %54 = vsyncadd [#allocation9], %s53
      %s55 = sshll.u32 [#allocation8], 4
      %s56 = int_to_ptr.vmem [resolvable:$true] %s55
      %61 = dma.hbm_to_vmem [thread:$0]  %s3, 16384, %s56, [#allocation9], 256, 256, 16
    $region17: #{tpu_custom_call.1} parent=1 // pred_fallthru
      _
    // Predicated region
    $region18: #{tpu_custom_call.1} parent=1 // pred_check
      _
    $region19: #{tpu_custom_call.1} parent=1 // pred_check_branch
      %63 = sbr.rel (0) target = $region21
    $region20: #{tpu_custom_call.1} parent=1 // pred_region
      _
    $region21: #{tpu_custom_call.1} parent=1 // pred_fallthru
      _
    // Predicated region
    $region22: #{tpu_custom_call.1} parent=1 // pred_check
      _
    $region23: #{tpu_custom_call.1} parent=1 // pred_check_branch
      %65 = sbr.rel (0) target = $region25
    $region24: #{tpu_custom_call.1} parent=1 // pred_region
      %s67 = ssub.s32 4096, 4096
      %68 = vsyncadd [#allocation9], %s67
      %s69 = sshll.u32 [#allocation10], 4
      %s70 = int_to_ptr.vmem [resolvable:$true] %s69
      %75 = dma.hbm_to_vmem [thread:$0]  %s5, 4096, %s70, [#allocation9], 64, 64, 4
    $region25: #{tpu_custom_call.1} parent=1 // pred_fallthru
      _
    // Predicated region
    $region26: #{tpu_custom_call.1} parent=1 // pred_check
      _
    $region27: #{tpu_custom_call.1} parent=1 // pred_check_branch
      %77 = sbr.rel (0) target = $region29
    $region28: #{tpu_custom_call.1} parent=1 // pred_region
      _
    $region29: #{tpu_custom_call.1} parent=1 // pred_fallthru
      _
    // Predicated region
    $region30: #{tpu_custom_call.1} parent=1 // pred_check
      _
    $region31: #{tpu_custom_call.1} parent=1 // pred_check_branch
      %79 = sbr.rel (0) target = $region33
    $region32: #{tpu_custom_call.1} parent=1 // pred_region
      %80 = dma.done [#allocation3], 22400
    $region33: #{tpu_custom_call.1} parent=1 // pred_fallthru
      _
    // Predicated region
    $region34: #{tpu_custom_call.1} parent=1 // pred_check
      _
    $region35: #{tpu_custom_call.1} parent=1 // pred_check_branch
      %82 = sbr.rel (0) target = $region37
    $region36: #{tpu_custom_call.1} parent=1 // pred_region
      %83 = dma.done [#allocation6], 25088
    $region37: #{tpu_custom_call.1} parent=1 // pred_fallthru
      _
    // Predicated region
    $region38: #{tpu_custom_call.1} parent=1 // pred_check
      _
    $region39: #{tpu_custom_call.1} parent=1 // pred_check_branch
      %85 = sbr.rel (0) target = $region41
    $region40: #{tpu_custom_call.1} parent=1 // pred_region
      %86 = dma.done [#allocation6], 64
    $region41: #{tpu_custom_call.1} parent=1 // pred_fallthru
      _
    // Predicated region
    $region42: #{tpu_custom_call.1} parent=1 // pred_check
      _
    $region43: #{tpu_custom_call.1} parent=1 // pred_check_branch
      %88 = sbr.rel (0) target = $region45
    $region44: #{tpu_custom_call.1} parent=1 // pred_region
      %89 = dma.done [#allocation9], 16384
    $region45: #{tpu_custom_call.1} parent=1 // pred_fallthru
      _
    // Predicated region
    $region46: #{tpu_custom_call.1} parent=1 // pred_check
      _
    $region47: #{tpu_custom_call.1} parent=1 // pred_check_branch
      %91 = sbr.rel (0) target = $region49
    $region48: #{tpu_custom_call.1} parent=1 // pred_region
      %92 = dma.done [#allocation9], 4096
    $region49: #{tpu_custom_call.1} parent=1 // pred_fallthru
      _
    %v94 = vld [vmem:[#allocation2] sm:$0xff]
    %v95 = vld [vmem:[#allocation2 + $0x8] sm:$0xff]
    %v96 = vld [vmem:[#allocation2 + $0x10] sm:$0xff]
    %v97 = vld [vmem:[#allocation2 + $0x18] sm:$0xff]
    %v98 = vld [vmem:[#allocation2 + $0x20] sm:$0xff]
    %v99 = vld [vmem:[#allocation2 + $0x28] sm:$0xff]
    %v100 = vld [vmem:[#allocation2 + $0x30] sm:$0xff]
    %v101 = vld [vmem:[#allocation2 + $0x38] sm:$0xff]
    %v102 = vld [vmem:[#allocation2 + $0x40] sm:$0xff]
    %v103 = vld [vmem:[#allocation2 + $0x48] sm:$0xff]
    %v104 = vld [vmem:[#allocation2 + $0x50] sm:$0xff]
    %v105 = vld [vmem:[#allocation2 + $0x58] sm:$0xff]
    %v106 = vld [vmem:[#allocation2 + $0x60] sm:$0xff]
    %v107 = vld [vmem:[#allocation2 + $0x68] sm:$0xff]
    %v108 = vld [vmem:[#allocation2 + $0x70] sm:$0xff]
    %v109 = vld [vmem:[#allocation2 + $0x78] sm:$0xff]
    %v110 = vld [vmem:[#allocation2 + $0x80] sm:$0xff]
    %v111 = vld [vmem:[#allocation2 + $0x88] sm:$0xff]
    %v112 = vld [vmem:[#allocation2 + $0x90] sm:$0xff]
    %v113 = vld [vmem:[#allocation2 + $0x98] sm:$0xff]
    %v114 = vld [vmem:[#allocation2 + $0xa0] sm:$0xff]
    %v115 = vld [vmem:[#allocation2 + $0xa8] sm:$0xff]
    %v116 = vld [vmem:[#allocation2 + $0xb0] sm:$0xff]
    %v117 = vld [vmem:[#allocation2 + $0xb8] sm:$0xff]
    %v118 = vld [vmem:[#allocation2 + $0xc0] sm:$0xff]
    %v119 = vld [vmem:[#allocation2 + $0xc8] sm:$0xff]
    %v120 = vld [vmem:[#allocation2 + $0xd0] sm:$0xff]
    %v121 = vld [vmem:[#allocation2 + $0xd8] sm:$0xff]
    %v122 = vld [vmem:[#allocation2 + $0xe0] sm:$0xff]
    %v123 = vld [vmem:[#allocation2 + $0xe8] sm:$0xff]
    %v124 = vld [vmem:[#allocation2 + $0xf0] sm:$0xff]
    %v125 = vld [vmem:[#allocation2 + $0xf8] sm:$0xff]
    %v126 = vld [vmem:[#allocation2 + $0x100] sm:$0xff]
    %v127 = vld [vmem:[#allocation2 + $0x108] sm:$0xff]
    %v128 = vld [vmem:[#allocation2 + $0x110] sm:$0xff]
    %v129 = vld [vmem:[#allocation2 + $0x118] sm:$0xff]
    %v130 = vld [vmem:[#allocation2 + $0x120] sm:$0xff]
    %v131 = vld [vmem:[#allocation2 + $0x128] sm:$0xff]
    %v132 = vld [vmem:[#allocation2 + $0x130] sm:$0xff]
    %v133 = vld [vmem:[#allocation2 + $0x138] sm:$0xff]
    %v134 = vld [vmem:[#allocation2 + $0x140] sm:$0xff]
    %v135 = vld [vmem:[#allocation2 + $0x148] sm:$0xff]
    %v136 = vld [vmem:[#allocation2 + $0x150] sm:$0xff]
    %v137 = vld [vmem:[#allocation2 + $0x158] sm:$0xff]
    %v138 = vld [vmem:[#allocation2 + $0x160] sm:$0xff]
    %v139 = vld [vmem:[#allocation2 + $0x168] sm:$0xff]
    %v140 = vld [vmem:[#allocation2 + $0x170] sm:$0xff]
    %v141 = vld [vmem:[#allocation2 + $0x178] sm:$0xff]
    %v142 = vld [vmem:[#allocation2 + $0x180] sm:$0xff]
    %v143 = vld [vmem:[#allocation2 + $0x188] sm:$0xff]
    %v144 = vld [vmem:[#allocation2 + $0x190] sm:$0xff]
    %v145 = vld [vmem:[#allocation2 + $0x198] sm:$0xff]
    %v146 = vld [vmem:[#allocation2 + $0x1a0] sm:$0xff]
    %v147 = vld [vmem:[#allocation2 + $0x1a8] sm:$0xff]
    %v148 = vld [vmem:[#allocation2 + $0x1b0] sm:$0xff]
    %v149 = vld [vmem:[#allocation2 + $0x1b8] sm:$0xff]
    %v150 = vld [vmem:[#allocation2 + $0x1c0] sm:$0xff]
    %v151 = vld [vmem:[#allocation2 + $0x1c8] sm:$0xff]
    %v152 = vld [vmem:[#allocation2 + $0x1d0] sm:$0xff]
    %v153 = vld [vmem:[#allocation2 + $0x1d8] sm:$0xff]
    %v154 = vld [vmem:[#allocation2 + $0x1e0] sm:$0xff]
    %v155 = vld [vmem:[#allocation2 + $0x1e8] sm:$0xff]
    %v156 = vld [vmem:[#allocation2 + $0x1f0] sm:$0xff]
    %v157 = vld [vmem:[#allocation2 + $0x1f8] sm:$0xff]
    %v158 = vld [vmem:[#allocation2 + $0x200] sm:$0xff]
    %v159 = vld [vmem:[#allocation2 + $0x208] sm:$0xff]
    %v160 = vld [vmem:[#allocation2 + $0x210] sm:$0xff]
    %v161 = vld [vmem:[#allocation2 + $0x218] sm:$0xff]
    %v162 = vld [vmem:[#allocation2 + $0x220] sm:$0xff]
    %v163 = vld [vmem:[#allocation2 + $0x228] sm:$0xff]
    %v164 = vld [vmem:[#allocation2 + $0x230] sm:$0xff]
    %v165 = vld [vmem:[#allocation2 + $0x238] sm:$0xff]
    %v166 = vld [vmem:[#allocation2 + $0x240] sm:$0xff]
    %v167 = vld [vmem:[#allocation2 + $0x248] sm:$0xff]
    %v168 = vld [vmem:[#allocation2 + $0x250] sm:$0xff]
    %v169 = vld [vmem:[#allocation2 + $0x258] sm:$0xff]
    %v170 = vld [vmem:[#allocation2 + $0x260] sm:$0xff]
    %v171 = vld [vmem:[#allocation2 + $0x268] sm:$0xff]
    %v172 = vld [vmem:[#allocation2 + $0x270] sm:$0xff]
    %v173 = vld [vmem:[#allocation2 + $0x278] sm:$0xff]
    %v174 = vld [vmem:[#allocation2 + $0x280] sm:$0xff]
    %v175 = vld [vmem:[#allocation2 + $0x288] sm:$0xff]
    %v176 = vld [vmem:[#allocation2 + $0x290] sm:$0xff]
    %v177 = vld [vmem:[#allocation2 + $0x298] sm:$0xff]
    %v178 = vld [vmem:[#allocation2 + $0x2a0] sm:$0xff]
    %v179 = vld [vmem:[#allocation2 + $0x2a8] sm:$0xff]
    %v180 = vld [vmem:[#allocation2 + $0x2b0] sm:$0xff]
    %v181 = vld [vmem:[#allocation2 + $0x2b8] sm:$0xff]
    %v182 = vld [vmem:[#allocation2 + $0x2c0] sm:$0xff]
    %v183 = vld [vmem:[#allocation2 + $0x2c8] sm:$0xff]
    %v184 = vld [vmem:[#allocation2 + $0x2d0] sm:$0xff]
    %v185 = vld [vmem:[#allocation2 + $0x2d8] sm:$0xff]
    %v186 = vld [vmem:[#allocation2 + $0x2e0] sm:$0xff]
    %v187 = vld [vmem:[#allocation2 + $0x2e8] sm:$0xff]
    %v188 = vld [vmem:[#allocation2 + $0x2f0] sm:$0xff]
    %v189 = vld [vmem:[#allocation2 + $0x2f8] sm:$0xff]
    %v190 = vld [vmem:[#allocation2 + $0x300] sm:$0xff]
    %v191 = vld [vmem:[#allocation2 + $0x308] sm:$0xff]
    %v192 = vld [vmem:[#allocation2 + $0x310] sm:$0xff]
    %v193 = vld [vmem:[#allocation2 + $0x318] sm:$0xff]
    %v194 = vld [vmem:[#allocation2 + $0x320] sm:$0xff]
    %v195 = vld [vmem:[#allocation2 + $0x328] sm:$0xff]
    %v196 = vld [vmem:[#allocation2 + $0x330] sm:$0xff]
    %v197 = vld [vmem:[#allocation2 + $0x338] sm:$0xff]
    %v198 = vld [vmem:[#allocation2 + $0x340] sm:$0xff]
    %v199 = vld [vmem:[#allocation2 + $0x348] sm:$0xff]
    %v200 = vld [vmem:[#allocation2 + $0x350] sm:$0xff]
    %v201 = vld [vmem:[#allocation2 + $0x358] sm:$0xff]
    %v202 = vld [vmem:[#allocation2 + $0x360] sm:$0xff]
    %v203 = vld [vmem:[#allocation2 + $0x368] sm:$0xff]
    %v204 = vld [vmem:[#allocation2 + $0x370] sm:$0xff]
    %v205 = vld [vmem:[#allocation2 + $0x378] sm:$0xff]
    %v206 = vld [vmem:[#allocation2 + $0x380] sm:$0xff]
    %v207 = vld [vmem:[#allocation2 + $0x388] sm:$0xff]
    %v208 = vld [vmem:[#allocation2 + $0x390] sm:$0xff]
    %v209 = vld [vmem:[#allocation2 + $0x398] sm:$0xff]
    %v210 = vld [vmem:[#allocation2 + $0x3a0] sm:$0xff]
    %v211 = vld [vmem:[#allocation2 + $0x3a8] sm:$0xff]
    %v212 = vld [vmem:[#allocation2 + $0x3b0] sm:$0xff]
    %v213 = vld [vmem:[#allocation2 + $0x3b8] sm:$0xff]
    %v214 = vld [vmem:[#allocation2 + $0x3c0] sm:$0xff]
    %v215 = vld [vmem:[#allocation2 + $0x3c8] sm:$0xff]
    %v216 = vld [vmem:[#allocation2 + $0x3d0] sm:$0xff]
    %v217 = vld [vmem:[#allocation2 + $0x3d8] sm:$0xff]
    %v218 = vld [vmem:[#allocation2 + $0x3e0] sm:$0xff]
    %v219 = vld [vmem:[#allocation2 + $0x3e8] sm:$0xff]
    %v220 = vld [vmem:[#allocation2 + $0x3f0] sm:$0xff]
    %v221 = vld [vmem:[#allocation2 + $0x3f8] sm:$0xff]
    %v222 = vld [vmem:[#allocation2 + $0x400] sm:$0xff]
    %v223 = vld [vmem:[#allocation2 + $0x408] sm:$0xff]
    %v224 = vld [vmem:[#allocation2 + $0x410] sm:$0xff]
    %v225 = vld [vmem:[#allocation2 + $0x418] sm:$0xff]
    %v226 = vld [vmem:[#allocation2 + $0x420] sm:$0xff]
    %v227 = vld [vmem:[#allocation2 + $0x428] sm:$0xff]
    %v228 = vld [vmem:[#allocation2 + $0x430] sm:$0xff]
    %v229 = vld [vmem:[#allocation2 + $0x438] sm:$0xff]
    %v230 = vld [vmem:[#allocation2 + $0x440] sm:$0xff]
    %v231 = vld [vmem:[#allocation2 + $0x448] sm:$0xff]
    %v232 = vld [vmem:[#allocation2 + $0x450] sm:$0xff]
    %v233 = vld [vmem:[#allocation2 + $0x458] sm:$0xff]
    %v234 = vld [vmem:[#allocation2 + $0x460] sm:$0xff]
    %v235 = vld [vmem:[#allocation2 + $0x468] sm:$0xff]
    %v236 = vld [vmem:[#allocation2 + $0x470] sm:$0xff]
    %v237 = vld [vmem:[#allocation2 + $0x478] sm:$0xff]
    %v238 = vld [vmem:[#allocation2 + $0x480] sm:$0xff]
    %v239 = vld [vmem:[#allocation2 + $0x488] sm:$0xff]
    %v240 = vld [vmem:[#allocation2 + $0x490] sm:$0xff]
    %v241 = vld [vmem:[#allocation2 + $0x498] sm:$0xff]
    %v242 = vld [vmem:[#allocation2 + $0x4a0] sm:$0xff]
    %v243 = vld [vmem:[#allocation2 + $0x4a8] sm:$0xff]
    %v244 = vld [vmem:[#allocation2 + $0x4b0] sm:$0xff]
    %v245 = vld [vmem:[#allocation2 + $0x4b8] sm:$0xff]
    %v246 = vld [vmem:[#allocation2 + $0x4c0] sm:$0xff]
    %v247 = vld [vmem:[#allocation2 + $0x4c8] sm:$0xff]
    %v248 = vld [vmem:[#allocation2 + $0x4d0] sm:$0xff]
    %v249 = vld [vmem:[#allocation2 + $0x4d8] sm:$0xff]
    %v250 = vld [vmem:[#allocation2 + $0x4e0] sm:$0xff]
    %v251 = vld [vmem:[#allocation2 + $0x4e8] sm:$0xff]
    %v252 = vld [vmem:[#allocation2 + $0x4f0] sm:$0xff]
    %v253 = vld [vmem:[#allocation2 + $0x4f8] sm:$0xff]
    %v254 = vld [vmem:[#allocation2 + $0x500] sm:$0xff]
    %v255 = vld [vmem:[#allocation2 + $0x508] sm:$0xff]
    %v256 = vld [vmem:[#allocation2 + $0x510] sm:$0xff]
    %v257 = vld [vmem:[#allocation2 + $0x518] sm:$0xff]
    %v258 = vld [vmem:[#allocation2 + $0x520] sm:$0xff]
    %v259 = vld [vmem:[#allocation2 + $0x528] sm:$0xff]
    %v260 = vld [vmem:[#allocation2 + $0x530] sm:$0xff]
    %v261 = vld [vmem:[#allocation2 + $0x538] sm:$0xff]
    %v262 = vld [vmem:[#allocation2 + $0x540] sm:$0xff]
    %v263 = vld [vmem:[#allocation2 + $0x548] sm:$0xff]
    %v264 = vld [vmem:[#allocation2 + $0x550] sm:$0xff]
    %v265 = vld [vmem:[#allocation2 + $0x558] sm:$0xff]
    %v266 = vld [vmem:[#allocation2 + $0x560] sm:$0xff]
    %v267 = vld [vmem:[#allocation2 + $0x568] sm:$0xff]
    %v268 = vld [vmem:[#allocation2 + $0x570] sm:$0xff]
    %v269 = vpack.c.bf16 %v101, %v94
    %v270 = vpack.c.bf16 %v102, %v95
    %v271 = vpack.c.bf16 %v103, %v96
    %v272 = vpack.c.bf16 %v104, %v97
    %v273 = vpack.c.bf16 %v105, %v98
    %v274 = vpack.c.bf16 %v106, %v99
    %v275 = vpack.c.bf16 %v107, %v100
    %v276 = vpack.c.bf16 %v115, %v108
    %v277 = vpack.c.bf16 %v116, %v109
    %v278 = vpack.c.bf16 %v117, %v110
    %v279 = vpack.c.bf16 %v118, %v111
    %v280 = vpack.c.bf16 %v119, %v112
    %v281 = vpack.c.bf16 %v120, %v113
    %v282 = vpack.c.bf16 %v121, %v114
    %v283 = vpack.c.bf16 %v129, %v122
    %v284 = vpack.c.bf16 %v130, %v123
    %v285 = vpack.c.bf16 %v131, %v124
    %v286 = vpack.c.bf16 %v132, %v125
    %v287 = vpack.c.bf16 %v133, %v126
    %v288 = vpack.c.bf16 %v134, %v127
    %v289 = vpack.c.bf16 %v135, %v128
    %v290 = vpack.c.bf16 %v143, %v136
    %v291 = vpack.c.bf16 %v144, %v137
    %v292 = vpack.c.bf16 %v145, %v138
    %v293 = vpack.c.bf16 %v146, %v139
    %v294 = vpack.c.bf16 %v147, %v140
    %v295 = vpack.c.bf16 %v148, %v141
    %v296 = vpack.c.bf16 %v149, %v142
    %v297 = vpack.c.bf16 %v157, %v150
    %v298 = vpack.c.bf16 %v158, %v151
    %v299 = vpack.c.bf16 %v159, %v152
    %v300 = vpack.c.bf16 %v160, %v153
    %v301 = vpack.c.bf16 %v161, %v154
    %v302 = vpack.c.bf16 %v162, %v155
    %v303 = vpack.c.bf16 %v163, %v156
    %v304 = vpack.c.bf16 %v171, %v164
    %v305 = vpack.c.bf16 %v172, %v165
    %v306 = vpack.c.bf16 %v173, %v166
    %v307 = vpack.c.bf16 %v174, %v167
    %v308 = vpack.c.bf16 %v175, %v168
    %v309 = vpack.c.bf16 %v176, %v169
    %v310 = vpack.c.bf16 %v177, %v170
    %v311 = vpack.c.bf16 %v185, %v178
    %v312 = vpack.c.bf16 %v186, %v179
    %v313 = vpack.c.bf16 %v187, %v180
    %v314 = vpack.c.bf16 %v188, %v181
    %v315 = vpack.c.bf16 %v189, %v182
    %v316 = vpack.c.bf16 %v190, %v183
    %v317 = vpack.c.bf16 %v191, %v184
    %v318 = vpack.c.bf16 %v199, %v192
    %v319 = vpack.c.bf16 %v200, %v193
    %v320 = vpack.c.bf16 %v201, %v194
    %v321 = vpack.c.bf16 %v202, %v195
    %v322 = vpack.c.bf16 %v203, %v196
    %v323 = vpack.c.bf16 %v204, %v197
    %v324 = vpack.c.bf16 %v205, %v198
    %v325 = vpack.c.bf16 %v213, %v206
    %v326 = vpack.c.bf16 %v214, %v207
    %v327 = vpack.c.bf16 %v215, %v208
    %v328 = vpack.c.bf16 %v216, %v209
    %v329 = vpack.c.bf16 %v217, %v210
    %v330 = vpack.c.bf16 %v218, %v211
    %v331 = vpack.c.bf16 %v219, %v212
    %v332 = vpack.c.bf16 %v227, %v220
    %v333 = vpack.c.bf16 %v228, %v221
    %v334 = vpack.c.bf16 %v229, %v222
    %v335 = vpack.c.bf16 %v230, %v223
    %v336 = vpack.c.bf16 %v231, %v224
    %v337 = vpack.c.bf16 %v232, %v225
    %v338 = vpack.c.bf16 %v233, %v226
    %v339 = vpack.c.bf16 %v241, %v234
    %v340 = vpack.c.bf16 %v242, %v235
    %v341 = vpack.c.bf16 %v243, %v236
    %v342 = vpack.c.bf16 %v244, %v237
    %v343 = vpack.c.bf16 %v245, %v238
    %v344 = vpack.c.bf16 %v246, %v239
    %v345 = vpack.c.bf16 %v247, %v240
    %v346 = vpack.c.bf16 %v255, %v248
    %v347 = vpack.c.bf16 %v256, %v249
    %v348 = vpack.c.bf16 %v257, %v250
    %v349 = vpack.c.bf16 %v258, %v251
    %v350 = vpack.c.bf16 %v259, %v252
    %v351 = vpack.c.bf16 %v260, %v253
    %v352 = vpack.c.bf16 %v261, %v254
    %v353 = vpack.c.bf16 %v262, %v262
    %v354 = vpack.c.bf16 %v263, %v263
    %v355 = vpack.c.bf16 %v264, %v264
    %v356 = vpack.c.bf16 %v265, %v265
    %v357 = vpack.c.bf16 %v266, %v266
    %v358 = vpack.c.bf16 %v267, %v267
    %v359 = vpack.c.bf16 %v268, %v268
    %v360 = vld [vmem:[#allocation5] sm:$0xff]
    %v361 = vld [vmem:[#allocation5 + $0x8] sm:$0xff]
    %v362 = vld [vmem:[#allocation5 + $0x10] sm:$0xff]
    %v363 = vld [vmem:[#allocation5 + $0x18] sm:$0xff]
    %v364 = vld [vmem:[#allocation5 + $0x20] sm:$0xff]
    %v365 = vld [vmem:[#allocation5 + $0x28] sm:$0xff]
    %v366 = vld [vmem:[#allocation5 + $0x30] sm:$0xff]
    %v367 = vld [vmem:[#allocation5 + $0x38] sm:$0xff]
    %v368 = vld [vmem:[#allocation5 + $0x40] sm:$0xff]
    %v369 = vld [vmem:[#allocation5 + $0x48] sm:$0xff]
    %v370 = vld [vmem:[#allocation5 + $0x50] sm:$0xff]
    %v371 = vld [vmem:[#allocation5 + $0x58] sm:$0xff]
    %v372 = vld [vmem:[#allocation5 + $0x60] sm:$0xff]
    %v373 = vld [vmem:[#allocation5 + $0x68] sm:$0xff]
    %v374 = vld [vmem:[#allocation5 + $0x70] sm:$0xff]
    %v375 = vld [vmem:[#allocation5 + $0x78] sm:$0xff]
    %v376 = vld [vmem:[#allocation5 + $0x80] sm:$0xff]
    %v377 = vld [vmem:[#allocation5 + $0x88] sm:$0xff]
    %v378 = vld [vmem:[#allocation5 + $0x90] sm:$0xff]
    %v379 = vld [vmem:[#allocation5 + $0x98] sm:$0xff]
    %v380 = vld [vmem:[#allocation5 + $0xa0] sm:$0xff]
    %v381 = vld [vmem:[#allocation5 + $0xa8] sm:$0xff]
    %v382 = vld [vmem:[#allocation5 + $0xb0] sm:$0xff]
    %v383 = vld [vmem:[#allocation5 + $0xb8] sm:$0xff]
    %v384 = vld [vmem:[#allocation5 + $0xc0] sm:$0xff]
    %v385 = vld [vmem:[#allocation5 + $0xc8] sm:$0xff]
    %v386 = vld [vmem:[#allocation5 + $0xd0] sm:$0xff]
    %v387 = vld [vmem:[#allocation5 + $0xd8] sm:$0xff]
    %v388 = vld [vmem:[#allocation5 + $0xe0] sm:$0xff]
    %v389 = vld [vmem:[#allocation5 + $0xe8] sm:$0xff]
    %v390 = vld [vmem:[#allocation5 + $0xf0] sm:$0xff]
    %v391 = vld [vmem:[#allocation5 + $0xf8] sm:$0xff]
    %v392 = vld [vmem:[#allocation5 + $0x100] sm:$0xff]
    %v393 = vld [vmem:[#allocation5 + $0x108] sm:$0xff]
    %v394 = vld [vmem:[#allocation5 + $0x110] sm:$0xff]
    %v395 = vld [vmem:[#allocation5 + $0x118] sm:$0xff]
    %v396 = vld [vmem:[#allocation5 + $0x120] sm:$0xff]
    %v397 = vld [vmem:[#allocation5 + $0x128] sm:$0xff]
    %v398 = vld [vmem:[#allocation5 + $0x130] sm:$0xff]
    %v399 = vld [vmem:[#allocation5 + $0x138] sm:$0xff]
    %v400 = vld [vmem:[#allocation5 + $0x140] sm:$0xff]
    %v401 = vld [vmem:[#allocation5 + $0x148] sm:$0xff]
    %v402 = vld [vmem:[#allocation5 + $0x150] sm:$0xff]
    %v403 = vld [vmem:[#allocation5 + $0x158] sm:$0xff]
    %v404 = vld [vmem:[#allocation5 + $0x160] sm:$0xff]
    %v405 = vld [vmem:[#allocation5 + $0x168] sm:$0xff]
    %v406 = vld [vmem:[#allocation5 + $0x170] sm:$0xff]
    %v407 = vld [vmem:[#allocation5 + $0x178] sm:$0xff]
    %v408 = vld [vmem:[#allocation5 + $0x180] sm:$0xff]
    %v409 = vld [vmem:[#allocation5 + $0x188] sm:$0xff]
    %v410 = vld [vmem:[#allocation5 + $0x190] sm:$0xff]
    %v411 = vld [vmem:[#allocation5 + $0x198] sm:$0xff]
    %v412 = vld [vmem:[#allocation5 + $0x1a0] sm:$0xff]
    %v413 = vld [vmem:[#allocation5 + $0x1a8] sm:$0xff]
    %v414 = vld [vmem:[#allocation5 + $0x1b0] sm:$0xff]
    %v415 = vld [vmem:[#allocation5 + $0x1b8] sm:$0xff]
    %v416 = vld [vmem:[#allocation5 + $0x1c0] sm:$0xff]
    %v417 = vld [vmem:[#allocation5 + $0x1c8] sm:$0xff]
    %v418 = vld [vmem:[#allocation5 + $0x1d0] sm:$0xff]
    %v419 = vld [vmem:[#allocation5 + $0x1d8] sm:$0xff]
    %v420 = vld [vmem:[#allocation5 + $0x1e0] sm:$0xff]
    %v421 = vld [vmem:[#allocation5 + $0x1e8] sm:$0xff]
    %v422 = vld [vmem:[#allocation5 + $0x1f0] sm:$0xff]
    %v423 = vld [vmem:[#allocation5 + $0x1f8] sm:$0xff]
    %v424 = vld [vmem:[#allocation5 + $0x200] sm:$0xff]
    %v425 = vld [vmem:[#allocation5 + $0x208] sm:$0xff]
    %v426 = vld [vmem:[#allocation5 + $0x210] sm:$0xff]
    %v427 = vld [vmem:[#allocation5 + $0x218] sm:$0xff]
    %v428 = vld [vmem:[#allocation5 + $0x220] sm:$0xff]
    %v429 = vld [vmem:[#allocation5 + $0x228] sm:$0xff]
    %v430 = vld [vmem:[#allocation5 + $0x230] sm:$0xff]
    %v431 = vld [vmem:[#allocation5 + $0x238] sm:$0xff]
    %v432 = vld [vmem:[#allocation5 + $0x240] sm:$0xff]
    %v433 = vld [vmem:[#allocation5 + $0x248] sm:$0xff]
    %v434 = vld [vmem:[#allocation5 + $0x250] sm:$0xff]
    %v435 = vld [vmem:[#allocation5 + $0x258] sm:$0xff]
    %v436 = vld [vmem:[#allocation5 + $0x260] sm:$0xff]
    %v437 = vld [vmem:[#allocation5 + $0x268] sm:$0xff]
    %v438 = vld [vmem:[#allocation5 + $0x270] sm:$0xff]
    %v439 = vld [vmem:[#allocation5 + $0x278] sm:$0xff]
    %v440 = vld [vmem:[#allocation5 + $0x280] sm:$0xff]
    %v441 = vld [vmem:[#allocation5 + $0x288] sm:$0xff]
    %v442 = vld [vmem:[#allocation5 + $0x290] sm:$0xff]
    %v443 = vld [vmem:[#allocation5 + $0x298] sm:$0xff]
    %v444 = vld [vmem:[#allocation5 + $0x2a0] sm:$0xff]
    %v445 = vld [vmem:[#allocation5 + $0x2a8] sm:$0xff]
    %v446 = vld [vmem:[#allocation5 + $0x2b0] sm:$0xff]
    %v447 = vld [vmem:[#allocation5 + $0x2b8] sm:$0xff]
    %v448 = vld [vmem:[#allocation5 + $0x2c0] sm:$0xff]
    %v449 = vld [vmem:[#allocation5 + $0x2c8] sm:$0xff]
    %v450 = vld [vmem:[#allocation5 + $0x2d0] sm:$0xff]
    %v451 = vld [vmem:[#allocation5 + $0x2d8] sm:$0xff]
    %v452 = vld [vmem:[#allocation5 + $0x2e0] sm:$0xff]
    %v453 = vld [vmem:[#allocation5 + $0x2e8] sm:$0xff]
    %v454 = vld [vmem:[#allocation5 + $0x2f0] sm:$0xff]
    %v455 = vld [vmem:[#allocation5 + $0x2f8] sm:$0xff]
    %v456 = vld [vmem:[#allocation5 + $0x300] sm:$0xff]
    %v457 = vld [vmem:[#allocation5 + $0x308] sm:$0xff]
    %v458 = vld [vmem:[#allocation5 + $0x310] sm:$0xff]
    %v459 = vld [vmem:[#allocation5 + $0x318] sm:$0xff]
    %v460 = vld [vmem:[#allocation5 + $0x320] sm:$0xff]
    %v461 = vld [vmem:[#allocation5 + $0x328] sm:$0xff]
    %v462 = vld [vmem:[#allocation5 + $0x330] sm:$0xff]
    %v463 = vld [vmem:[#allocation5 + $0x338] sm:$0xff]
    %v464 = vld [vmem:[#allocation5 + $0x340] sm:$0xff]
    %v465 = vld [vmem:[#allocation5 + $0x348] sm:$0xff]
    %v466 = vld [vmem:[#allocation5 + $0x350] sm:$0xff]
    %v467 = vld [vmem:[#allocation5 + $0x358] sm:$0xff]
    %v468 = vld [vmem:[#allocation5 + $0x360] sm:$0xff]
    %v469 = vld [vmem:[#allocation5 + $0x368] sm:$0xff]
    %v470 = vld [vmem:[#allocation5 + $0x370] sm:$0xff]
    %v471 = vld [vmem:[#allocation5 + $0x378] sm:$0xff]
    %v472 = vld [vmem:[#allocation5 + $0x380] sm:$0xff]
    %v473 = vld [vmem:[#allocation5 + $0x388] sm:$0xff]
    %v474 = vld [vmem:[#allocation5 + $0x390] sm:$0xff]
    %v475 = vld [vmem:[#allocation5 + $0x398] sm:$0xff]
    %v476 = vld [vmem:[#allocation5 + $0x3a0] sm:$0xff]
    %v477 = vld [vmem:[#allocation5 + $0x3a8] sm:$0xff]
    %v478 = vld [vmem:[#allocation5 + $0x3b0] sm:$0xff]
    %v479 = vld [vmem:[#allocation5 + $0x3b8] sm:$0xff]
    %v480 = vld [vmem:[#allocation5 + $0x3c0] sm:$0xff]
    %v481 = vld [vmem:[#allocation5 + $0x3c8] sm:$0xff]
    %v482 = vld [vmem:[#allocation5 + $0x3d0] sm:$0xff]
    %v483 = vld [vmem:[#allocation5 + $0x3d8] sm:$0xff]
    %v484 = vld [vmem:[#allocation5 + $0x3e0] sm:$0xff]
    %v485 = vld [vmem:[#allocation5 + $0x3e8] sm:$0xff]
    %v486 = vld [vmem:[#allocation5 + $0x3f0] sm:$0xff]
    %v487 = vld [vmem:[#allocation5 + $0x3f8] sm:$0xff]
    %v488 = vld [vmem:[#allocation5 + $0x400] sm:$0xff]
    %v489 = vld [vmem:[#allocation5 + $0x408] sm:$0xff]
    %v490 = vld [vmem:[#allocation5 + $0x410] sm:$0xff]
    %v491 = vld [vmem:[#allocation5 + $0x418] sm:$0xff]
    %v492 = vld [vmem:[#allocation5 + $0x420] sm:$0xff]
    %v493 = vld [vmem:[#allocation5 + $0x428] sm:$0xff]
    %v494 = vld [vmem:[#allocation5 + $0x430] sm:$0xff]
    %v495 = vld [vmem:[#allocation5 + $0x438] sm:$0xff]
    %v496 = vld [vmem:[#allocation5 + $0x440] sm:$0xff]
    %v497 = vld [vmem:[#allocation5 + $0x448] sm:$0xff]
    %v498 = vld [vmem:[#allocation5 + $0x450] sm:$0xff]
    %v499 = vld [vmem:[#allocation5 + $0x458] sm:$0xff]
    %v500 = vld [vmem:[#allocation5 + $0x460] sm:$0xff]
    %v501 = vld [vmem:[#allocation5 + $0x468] sm:$0xff]
    %v502 = vld [vmem:[#allocation5 + $0x470] sm:$0xff]
    %v503 = vld [vmem:[#allocation5 + $0x478] sm:$0xff]
    %v504 = vld [vmem:[#allocation5 + $0x480] sm:$0xff]
    %v505 = vld [vmem:[#allocation5 + $0x488] sm:$0xff]
    %v506 = vld [vmem:[#allocation5 + $0x490] sm:$0xff]
    %v507 = vld [vmem:[#allocation5 + $0x498] sm:$0xff]
    %v508 = vld [vmem:[#allocation5 + $0x4a0] sm:$0xff]
    %v509 = vld [vmem:[#allocation5 + $0x4a8] sm:$0xff]
    %v510 = vld [vmem:[#allocation5 + $0x4b0] sm:$0xff]
    %v511 = vld [vmem:[#allocation5 + $0x4b8] sm:$0xff]
    %v512 = vld [vmem:[#allocation5 + $0x4c0] sm:$0xff]
    %v513 = vld [vmem:[#allocation5 + $0x4c8] sm:$0xff]
    %v514 = vld [vmem:[#allocation5 + $0x4d0] sm:$0xff]
    %v515 = vld [vmem:[#allocation5 + $0x4d8] sm:$0xff]
    %v516 = vld [vmem:[#allocation5 + $0x4e0] sm:$0xff]
    %v517 = vld [vmem:[#allocation5 + $0x4e8] sm:$0xff]
    %v518 = vld [vmem:[#allocation5 + $0x4f0] sm:$0xff]
    %v519 = vld [vmem:[#allocation5 + $0x4f8] sm:$0xff]
    %v520 = vld [vmem:[#allocation5 + $0x500] sm:$0xff]
    %v521 = vld [vmem:[#allocation5 + $0x508] sm:$0xff]
    %v522 = vld [vmem:[#allocation5 + $0x510] sm:$0xff]
    %v523 = vld [vmem:[#allocation5 + $0x518] sm:$0xff]
    %v524 = vld [vmem:[#allocation5 + $0x520] sm:$0xff]
    %v525 = vld [vmem:[#allocation5 + $0x528] sm:$0xff]
    %v526 = vld [vmem:[#allocation5 + $0x530] sm:$0xff]
    %v527 = vld [vmem:[#allocation5 + $0x538] sm:$0xff]
    %v528 = vld [vmem:[#allocation5 + $0x540] sm:$0xff]
    %v529 = vld [vmem:[#allocation5 + $0x548] sm:$0xff]
    %v530 = vld [vmem:[#allocation5 + $0x550] sm:$0xff]
    %v531 = vld [vmem:[#allocation5 + $0x558] sm:$0xff]
    %v532 = vld [vmem:[#allocation5 + $0x560] sm:$0xff]
    %v533 = vld [vmem:[#allocation5 + $0x568] sm:$0xff]
    %v534 = vld [vmem:[#allocation5 + $0x570] sm:$0xff]
    %v535 = vld [vmem:[#allocation5 + $0x578] sm:$0xff]
    %v536 = vld [vmem:[#allocation5 + $0x580] sm:$0xff]
    %v537 = vld [vmem:[#allocation5 + $0x588] sm:$0xff]
    %v538 = vld [vmem:[#allocation5 + $0x590] sm:$0xff]
    %v539 = vld [vmem:[#allocation5 + $0x598] sm:$0xff]
    %v540 = vld [vmem:[#allocation5 + $0x5a0] sm:$0xff]
    %v541 = vld [vmem:[#allocation5 + $0x5a8] sm:$0xff]
    %v542 = vld [vmem:[#allocation5 + $0x5b0] sm:$0xff]
    %v543 = vld [vmem:[#allocation5 + $0x5b8] sm:$0xff]
    %v544 = vld [vmem:[#allocation5 + $0x5c0] sm:$0xff]
    %v545 = vld [vmem:[#allocation5 + $0x5c8] sm:$0xff]
    %v546 = vld [vmem:[#allocation5 + $0x5d0] sm:$0xff]
    %v547 = vld [vmem:[#allocation5 + $0x5d8] sm:$0xff]
    %v548 = vld [vmem:[#allocation5 + $0x5e0] sm:$0xff]
    %v549 = vld [vmem:[#allocation5 + $0x5e8] sm:$0xff]
    %v550 = vld [vmem:[#allocation5 + $0x5f0] sm:$0xff]
    %v551 = vld [vmem:[#allocation5 + $0x5f8] sm:$0xff]
    %v552 = vld [vmem:[#allocation5 + $0x600] sm:$0xff]
    %v553 = vld [vmem:[#allocation5 + $0x608] sm:$0xff]
    %v554 = vld [vmem:[#allocation5 + $0x610] sm:$0xff]
    %v555 = vld [vmem:[#allocation5 + $0x618] sm:$0xff]
    %v556 = vld [vmem:[#allocation7] sm:$0xf]
    %v558 = vlaneseq
    %v559 = vshrl.u32 %v558, 7
    %v560 = vsub.s32 0, %v559
    %v561 = vrot.slane %v556, %v560
    %v562 = vlaneseq
    %v563 = vshrl.u32 %v562, 7
    %v564 = vsub.s32 1, %v563
    %v565 = vrot.slane %v556, %v564
    %v566 = vlaneseq
    %v567 = vshrl.u32 %v566, 7
    %v568 = vsub.s32 2, %v567
    %v569 = vrot.slane %v556, %v568
    %v570 = vlaneseq
    %v571 = vshrl.u32 %v570, 7
    %v572 = vsub.s32 3, %v571
    %v573 = vrot.slane %v556, %v572
    %v774 = vunpack.c.l.b16 %v360
    %v775 = vunpack.c.h.b16 %v360
    %v776 = vunpack.c.l.b16 %v361
    %v777 = vunpack.c.h.b16 %v361
    %v778 = vunpack.c.l.b16 %v362
    %v779 = vunpack.c.h.b16 %v362
    %v780 = vunpack.c.l.b16 %v363
    %v781 = vunpack.c.h.b16 %v363
    %v782 = vunpack.c.l.b16 %v364
    %v783 = vunpack.c.h.b16 %v364
    %v784 = vunpack.c.l.b16 %v365
    %v785 = vunpack.c.h.b16 %v365
    %v786 = vunpack.c.l.b16 %v366
    %v787 = vunpack.c.h.b16 %v366
    %v788 = vunpack.c.l.b16 %v367
    %v789 = vunpack.c.h.b16 %v367
    %v790 = vunpack.c.l.b16 %v368
    %v791 = vunpack.c.h.b16 %v368
    %v792 = vunpack.c.l.b16 %v369
    %v793 = vunpack.c.h.b16 %v369
    %v794 = vunpack.c.l.b16 %v370
    %v795 = vunpack.c.h.b16 %v370
    %v796 = vunpack.c.l.b16 %v371
    %v797 = vunpack.c.h.b16 %v371
    %v798 = vunpack.c.l.b16 %v372
    %v799 = vunpack.c.h.b16 %v372
    %v800 = vunpack.c.l.b16 %v373
    %v801 = vunpack.c.h.b16 %v373
    %v802 = vunpack.c.l.b16 %v374
    %v803 = vunpack.c.h.b16 %v374
    %v804 = vunpack.c.l.b16 %v375
    %v805 = vunpack.c.h.b16 %v375
    %v806 = vunpack.c.l.b16 %v376
    %v807 = vunpack.c.h.b16 %v376
    %v808 = vunpack.c.l.b16 %v377
    %v809 = vunpack.c.h.b16 %v377
    %v810 = vunpack.c.l.b16 %v378
    %v811 = vunpack.c.h.b16 %v378
    %v812 = vunpack.c.l.b16 %v379
    %v813 = vunpack.c.h.b16 %v379
    %v814 = vunpack.c.l.b16 %v380
    %v815 = vunpack.c.h.b16 %v380
    %v816 = vunpack.c.l.b16 %v381
    %v817 = vunpack.c.h.b16 %v381
    %v818 = vunpack.c.l.b16 %v382
    %v819 = vunpack.c.h.b16 %v382
    %v820 = vunpack.c.l.b16 %v383
    %v821 = vunpack.c.h.b16 %v383
    %v822 = vunpack.c.l.b16 %v384
    %v823 = vunpack.c.h.b16 %v384
    %v824 = vunpack.c.l.b16 %v385
    %v825 = vunpack.c.h.b16 %v385
    %v826 = vunpack.c.l.b16 %v386
    %v827 = vunpack.c.h.b16 %v386
    %v828 = vunpack.c.l.b16 %v387
    %v829 = vunpack.c.h.b16 %v387
    %v830 = vunpack.c.l.b16 %v388
    %v831 = vunpack.c.h.b16 %v388
    %v832 = vunpack.c.l.b16 %v389
    %v833 = vunpack.c.h.b16 %v389
    %v834 = vunpack.c.l.b16 %v390
    %v835 = vunpack.c.h.b16 %v390
    %v836 = vunpack.c.l.b16 %v391
    %v837 = vunpack.c.h.b16 %v391
    %v838 = vunpack.c.l.b16 %v392
    %v839 = vunpack.c.h.b16 %v392
    %v840 = vunpack.c.l.b16 %v393
    %v841 = vunpack.c.h.b16 %v393
    %v842 = vunpack.c.l.b16 %v394
    %v843 = vunpack.c.h.b16 %v394
    %v844 = vunpack.c.l.b16 %v395
    %v845 = vunpack.c.h.b16 %v395
    %v846 = vunpack.c.l.b16 %v396
    %v847 = vunpack.c.h.b16 %v396
    %v848 = vunpack.c.l.b16 %v397
    %v849 = vunpack.c.h.b16 %v397
    %v850 = vunpack.c.l.b16 %v398
    %v851 = vunpack.c.h.b16 %v398
    %v852 = vunpack.c.l.b16 %v399
    %v853 = vunpack.c.h.b16 %v399
    %v854 = vunpack.c.l.b16 %v400
    %v855 = vunpack.c.h.b16 %v400
    %v856 = vunpack.c.l.b16 %v401
    %v857 = vunpack.c.h.b16 %v401
    %v858 = vunpack.c.l.b16 %v402
    %v859 = vunpack.c.h.b16 %v402
    %v860 = vunpack.c.l.b16 %v403
    %v861 = vunpack.c.h.b16 %v403
    %v862 = vunpack.c.l.b16 %v404
    %v863 = vunpack.c.h.b16 %v404
    %v864 = vunpack.c.l.b16 %v405
    %v865 = vunpack.c.h.b16 %v405
    %v866 = vunpack.c.l.b16 %v406
    %v867 = vunpack.c.h.b16 %v406
    %v868 = vunpack.c.l.b16 %v407
    %v869 = vunpack.c.h.b16 %v407
    %v870 = vunpack.c.l.b16 %v408
    %v871 = vunpack.c.h.b16 %v408
    %v872 = vunpack.c.l.b16 %v409
    %v873 = vunpack.c.h.b16 %v409
    %v874 = vunpack.c.l.b16 %v410
    %v875 = vunpack.c.h.b16 %v410
    %v876 = vunpack.c.l.b16 %v411
    %v877 = vunpack.c.h.b16 %v411
    %v878 = vunpack.c.l.b16 %v412
    %v879 = vunpack.c.h.b16 %v412
    %v880 = vunpack.c.l.b16 %v413
    %v881 = vunpack.c.h.b16 %v413
    %v882 = vunpack.c.l.b16 %v414
    %v883 = vunpack.c.h.b16 %v414
    %v884 = vunpack.c.l.b16 %v415
    %v885 = vunpack.c.h.b16 %v415
    %v886 = vunpack.c.l.b16 %v416
    %v887 = vunpack.c.h.b16 %v416
    %v888 = vunpack.c.l.b16 %v417
    %v889 = vunpack.c.h.b16 %v417
    %v890 = vunpack.c.l.b16 %v418
    %v891 = vunpack.c.h.b16 %v418
    %v892 = vunpack.c.l.b16 %v419
    %v893 = vunpack.c.h.b16 %v419
    %v894 = vunpack.c.l.b16 %v420
    %v895 = vunpack.c.h.b16 %v420
    %v896 = vunpack.c.l.b16 %v421
    %v897 = vunpack.c.h.b16 %v421
    %v898 = vunpack.c.l.b16 %v422
    %v899 = vunpack.c.h.b16 %v422
    %v900 = vunpack.c.l.b16 %v423
    %v901 = vunpack.c.h.b16 %v423
    %v902 = vunpack.c.l.b16 %v424
    %v903 = vunpack.c.h.b16 %v424
    %v904 = vunpack.c.l.b16 %v425
    %v905 = vunpack.c.h.b16 %v425
    %v906 = vunpack.c.l.b16 %v426
    %v907 = vunpack.c.h.b16 %v426
    %v908 = vunpack.c.l.b16 %v427
    %v909 = vunpack.c.h.b16 %v427
    %v910 = vunpack.c.l.b16 %v428
    %v911 = vunpack.c.h.b16 %v428
    %v912 = vunpack.c.l.b16 %v429
    %v913 = vunpack.c.h.b16 %v429
    %v914 = vunpack.c.l.b16 %v430
    %v915 = vunpack.c.h.b16 %v430
    %v916 = vunpack.c.l.b16 %v431
    %v917 = vunpack.c.h.b16 %v431
    %v918 = vunpack.c.l.b16 %v432
    %v919 = vunpack.c.h.b16 %v432
    %v920 = vunpack.c.l.b16 %v433
    %v921 = vunpack.c.h.b16 %v433
    %v922 = vunpack.c.l.b16 %v434
    %v923 = vunpack.c.h.b16 %v434
    %v924 = vunpack.c.l.b16 %v435
    %v925 = vunpack.c.h.b16 %v435
    %v926 = vunpack.c.l.b16 %v436
    %v927 = vunpack.c.h.b16 %v436
    %v928 = vunpack.c.l.b16 %v437
    %v929 = vunpack.c.h.b16 %v437
    %v930 = vunpack.c.l.b16 %v438
    %v931 = vunpack.c.h.b16 %v438
    %v932 = vunpack.c.l.b16 %v439
    %v933 = vunpack.c.h.b16 %v439
    %v934 = vunpack.c.l.b16 %v440
    %v935 = vunpack.c.h.b16 %v440
    %v936 = vunpack.c.l.b16 %v441
    %v937 = vunpack.c.h.b16 %v441
    %v938 = vunpack.c.l.b16 %v442
    %v939 = vunpack.c.h.b16 %v442
    %v940 = vunpack.c.l.b16 %v443
    %v941 = vunpack.c.h.b16 %v443
    %v942 = vunpack.c.l.b16 %v444
    %v943 = vunpack.c.h.b16 %v444
    %v944 = vunpack.c.l.b16 %v445
    %v945 = vunpack.c.h.b16 %v445
    %v946 = vunpack.c.l.b16 %v446
    %v947 = vunpack.c.h.b16 %v446
    %v948 = vunpack.c.l.b16 %v447
    %v949 = vunpack.c.h.b16 %v447
    %v950 = vunpack.c.l.b16 %v448
    %v951 = vunpack.c.h.b16 %v448
    %v952 = vunpack.c.l.b16 %v449
    %v953 = vunpack.c.h.b16 %v449
    %v954 = vunpack.c.l.b16 %v450
    %v955 = vunpack.c.h.b16 %v450
    %v956 = vunpack.c.l.b16 %v451
    %v957 = vunpack.c.h.b16 %v451
    %v958 = vunpack.c.l.b16 %v452
    %v959 = vunpack.c.h.b16 %v452
    %v960 = vunpack.c.l.b16 %v453
    %v961 = vunpack.c.h.b16 %v453
    %v962 = vunpack.c.l.b16 %v454
    %v963 = vunpack.c.h.b16 %v454
    %v964 = vunpack.c.l.b16 %v455
    %v965 = vunpack.c.h.b16 %v455
    %v966 = vunpack.c.l.b16 %v456
    %v967 = vunpack.c.h.b16 %v456
    %v968 = vunpack.c.l.b16 %v457
    %v969 = vunpack.c.h.b16 %v457
    %v970 = vunpack.c.l.b16 %v458
    %v971 = vunpack.c.h.b16 %v458
    %v972 = vunpack.c.l.b16 %v459
    %v973 = vunpack.c.h.b16 %v459
    %v974 = vunpack.c.l.b16 %v460
    %v975 = vunpack.c.h.b16 %v460
    %v976 = vunpack.c.l.b16 %v461
    %v977 = vunpack.c.h.b16 %v461
    %v978 = vunpack.c.l.b16 %v462
    %v979 = vunpack.c.h.b16 %v462
    %v980 = vunpack.c.l.b16 %v463
    %v981 = vunpack.c.h.b16 %v463
    %v982 = vunpack.c.l.b16 %v464
    %v983 = vunpack.c.h.b16 %v464
    %v984 = vunpack.c.l.b16 %v465
    %v985 = vunpack.c.h.b16 %v465
    %v986 = vunpack.c.l.b16 %v466
    %v987 = vunpack.c.h.b16 %v466
    %v988 = vunpack.c.l.b16 %v467
    %v989 = vunpack.c.h.b16 %v467
    %v990 = vunpack.c.l.b16 %v468
    %v991 = vunpack.c.h.b16 %v468
    %v992 = vunpack.c.l.b16 %v469
    %v993 = vunpack.c.h.b16 %v469
    %v994 = vunpack.c.l.b16 %v470
    %v995 = vunpack.c.h.b16 %v470
    %v996 = vunpack.c.l.b16 %v471
    %v997 = vunpack.c.h.b16 %v471
    %v998 = vunpack.c.l.b16 %v472
    %v999 = vunpack.c.h.b16 %v472
    %v1000 = vunpack.c.l.b16 %v473
    %v1001 = vunpack.c.h.b16 %v473
    %v1002 = vunpack.c.l.b16 %v474
    %v1003 = vunpack.c.h.b16 %v474
    %v1004 = vunpack.c.l.b16 %v475
    %v1005 = vunpack.c.h.b16 %v475
    %v1006 = vunpack.c.l.b16 %v476
    %v1007 = vunpack.c.h.b16 %v476
    %v1008 = vunpack.c.l.b16 %v477
    %v1009 = vunpack.c.h.b16 %v477
    %v1010 = vunpack.c.l.b16 %v478
    %v1011 = vunpack.c.h.b16 %v478
    %v1012 = vunpack.c.l.b16 %v479
    %v1013 = vunpack.c.h.b16 %v479
    %v1014 = vunpack.c.l.b16 %v480
    %v1015 = vunpack.c.h.b16 %v480
    %v1016 = vunpack.c.l.b16 %v481
    %v1017 = vunpack.c.h.b16 %v481
    %v1018 = vunpack.c.l.b16 %v482
    %v1019 = vunpack.c.h.b16 %v482
    %v1020 = vunpack.c.l.b16 %v483
    %v1021 = vunpack.c.h.b16 %v483
    %v1022 = vunpack.c.l.b16 %v484
    %v1023 = vunpack.c.h.b16 %v484
    %v1024 = vunpack.c.l.b16 %v485
    %v1025 = vunpack.c.h.b16 %v485
    %v1026 = vunpack.c.l.b16 %v486
    %v1027 = vunpack.c.h.b16 %v486
    %v1028 = vunpack.c.l.b16 %v487
    %v1029 = vunpack.c.h.b16 %v487
    %v1030 = vunpack.c.l.b16 %v488
    %v1031 = vunpack.c.h.b16 %v488
    %v1032 = vunpack.c.l.b16 %v489
    %v1033 = vunpack.c.h.b16 %v489
    %v1034 = vunpack.c.l.b16 %v490
    %v1035 = vunpack.c.h.b16 %v490
    %v1036 = vunpack.c.l.b16 %v491
    %v1037 = vunpack.c.h.b16 %v491
    %v1038 = vunpack.c.l.b16 %v492
    %v1039 = vunpack.c.h.b16 %v492
    %v1040 = vunpack.c.l.b16 %v493
    %v1041 = vunpack.c.h.b16 %v493
    %v1042 = vunpack.c.l.b16 %v494
    %v1043 = vunpack.c.h.b16 %v494
    %v1044 = vunpack.c.l.b16 %v495
    %v1045 = vunpack.c.h.b16 %v495
    %v1046 = vunpack.c.l.b16 %v496
    %v1047 = vunpack.c.h.b16 %v496
    %v1048 = vunpack.c.l.b16 %v497
    %v1049 = vunpack.c.h.b16 %v497
    %v1050 = vunpack.c.l.b16 %v498
    %v1051 = vunpack.c.h.b16 %v498
    %v1052 = vunpack.c.l.b16 %v499
    %v1053 = vunpack.c.h.b16 %v499
    %v1054 = vunpack.c.l.b16 %v500
    %v1055 = vunpack.c.h.b16 %v500
    %v1056 = vunpack.c.l.b16 %v501
    %v1057 = vunpack.c.h.b16 %v501
    %v1058 = vunpack.c.l.b16 %v502
    %v1059 = vunpack.c.h.b16 %v502
    %v1060 = vunpack.c.l.b16 %v503
    %v1061 = vunpack.c.h.b16 %v503
    %v1062 = vunpack.c.l.b16 %v504
    %v1063 = vunpack.c.h.b16 %v504
    %v1064 = vunpack.c.l.b16 %v505
    %v1065 = vunpack.c.h.b16 %v505
    %v1066 = vunpack.c.l.b16 %v506
    %v1067 = vunpack.c.h.b16 %v506
    %v1068 = vunpack.c.l.b16 %v507
    %v1069 = vunpack.c.h.b16 %v507
    %v1070 = vunpack.c.l.b16 %v508
    %v1071 = vunpack.c.h.b16 %v508
    %v1072 = vunpack.c.l.b16 %v509
    %v1073 = vunpack.c.h.b16 %v509
    %v1074 = vunpack.c.l.b16 %v510
    %v1075 = vunpack.c.h.b16 %v510
    %v1076 = vunpack.c.l.b16 %v511
    %v1077 = vunpack.c.h.b16 %v511
    %v1078 = vunpack.c.l.b16 %v512
    %v1079 = vunpack.c.h.b16 %v512
    %v1080 = vunpack.c.l.b16 %v513
    %v1081 = vunpack.c.h.b16 %v513
    %v1082 = vunpack.c.l.b16 %v514
    %v1083 = vunpack.c.h.b16 %v514
    %v1084 = vunpack.c.l.b16 %v515
    %v1085 = vunpack.c.h.b16 %v515
    %v1086 = vunpack.c.l.b16 %v516
    %v1087 = vunpack.c.h.b16 %v516
    %v1088 = vunpack.c.l.b16 %v517
    %v1089 = vunpack.c.h.b16 %v517
    %v1090 = vunpack.c.l.b16 %v518
    %v1091 = vunpack.c.h.b16 %v518
    %v1092 = vunpack.c.l.b16 %v519
    %v1093 = vunpack.c.h.b16 %v519
    %v1094 = vunpack.c.l.b16 %v520
    %v1095 = vunpack.c.h.b16 %v520
    %v1096 = vunpack.c.l.b16 %v521
    %v1097 = vunpack.c.h.b16 %v521
    %v1098 = vunpack.c.l.b16 %v522
    %v1099 = vunpack.c.h.b16 %v522
    %v1100 = vunpack.c.l.b16 %v523
    %v1101 = vunpack.c.h.b16 %v523
    %v1102 = vunpack.c.l.b16 %v524
    %v1103 = vunpack.c.h.b16 %v524
    %v1104 = vunpack.c.l.b16 %v525
    %v1105 = vunpack.c.h.b16 %v525
    %v1106 = vunpack.c.l.b16 %v526
    %v1107 = vunpack.c.h.b16 %v526
    %v1108 = vunpack.c.l.b16 %v527
    %v1109 = vunpack.c.h.b16 %v527
    %v1110 = vunpack.c.l.b16 %v528
    %v1111 = vunpack.c.h.b16 %v528
    %v1112 = vunpack.c.l.b16 %v529
    %v1113 = vunpack.c.h.b16 %v529
    %v1114 = vunpack.c.l.b16 %v530
    %v1115 = vunpack.c.h.b16 %v530
    %v1116 = vunpack.c.l.b16 %v531
    %v1117 = vunpack.c.h.b16 %v531
    %v1118 = vunpack.c.l.b16 %v532
    %v1119 = vunpack.c.h.b16 %v532
    %v1120 = vunpack.c.l.b16 %v533
    %v1121 = vunpack.c.h.b16 %v533
    %v1122 = vunpack.c.l.b16 %v534
    %v1123 = vunpack.c.h.b16 %v534
    %v1124 = vunpack.c.l.b16 %v535
    %v1125 = vunpack.c.h.b16 %v535
    %v1126 = vunpack.c.l.b16 %v536
    %v1127 = vunpack.c.h.b16 %v536
    %v1128 = vunpack.c.l.b16 %v537
    %v1129 = vunpack.c.h.b16 %v537
    %v1130 = vunpack.c.l.b16 %v538
    %v1131 = vunpack.c.h.b16 %v538
    %v1132 = vunpack.c.l.b16 %v539
    %v1133 = vunpack.c.h.b16 %v539
    %v1134 = vunpack.c.l.b16 %v540
    %v1135 = vunpack.c.h.b16 %v540
    %v1136 = vunpack.c.l.b16 %v541
    %v1137 = vunpack.c.h.b16 %v541
    %v1138 = vunpack.c.l.b16 %v542
    %v1139 = vunpack.c.h.b16 %v542
    %v1140 = vunpack.c.l.b16 %v543
    %v1141 = vunpack.c.h.b16 %v543
    %v1142 = vunpack.c.l.b16 %v544
    %v1143 = vunpack.c.h.b16 %v544
    %v1144 = vunpack.c.l.b16 %v545
    %v1145 = vunpack.c.h.b16 %v545
    %v1146 = vunpack.c.l.b16 %v546
    %v1147 = vunpack.c.h.b16 %v546
    %v1148 = vunpack.c.l.b16 %v547
    %v1149 = vunpack.c.h.b16 %v547
    %v1150 = vunpack.c.l.b16 %v548
    %v1151 = vunpack.c.h.b16 %v548
    %v1152 = vunpack.c.l.b16 %v549
    %v1153 = vunpack.c.h.b16 %v549
    %v1154 = vunpack.c.l.b16 %v550
    %v1155 = vunpack.c.h.b16 %v550
    %v1156 = vunpack.c.l.b16 %v551
    %v1157 = vunpack.c.h.b16 %v551
    %v1158 = vunpack.c.l.b16 %v552
    %v1159 = vunpack.c.h.b16 %v552
    %v1160 = vunpack.c.l.b16 %v553
    %v1161 = vunpack.c.h.b16 %v553
    %v1162 = vunpack.c.l.b16 %v554
    %v1163 = vunpack.c.h.b16 %v554
    %v1164 = vunpack.c.l.b16 %v555
    %v1165 = vunpack.c.h.b16 %v555
    %v1166 = vpack.c.b16 %v778, %v774
    %v1167 = vpack.c.b16 %v779, %v775
    %v1168 = vpack.c.b16 %v780, %v776
    %v1169 = vpack.c.b16 %v781, %v777
    %v1170 = vpack.c.b16 %v786, %v782
    %v1171 = vpack.c.b16 %v787, %v783
    %v1172 = vpack.c.b16 %v788, %v784
    %v1173 = vpack.c.b16 %v789, %v785
    %v1174 = vpack.c.b16 %v794, %v790
    %v1175 = vpack.c.b16 %v795, %v791
    %v1176 = vpack.c.b16 %v796, %v792
    %v1177 = vpack.c.b16 %v797, %v793
    %v1178 = vpack.c.b16 %v802, %v798
    %v1179 = vpack.c.b16 %v803, %v799
    %v1180 = vpack.c.b16 %v804, %v800
    %v1181 = vpack.c.b16 %v805, %v801
    %v1182 = vpack.c.b16 %v810, %v806
    %v1183 = vpack.c.b16 %v811, %v807
    %v1184 = vpack.c.b16 %v812, %v808
    %v1185 = vpack.c.b16 %v813, %v809
    %v1186 = vpack.c.b16 %v818, %v814
    %v1187 = vpack.c.b16 %v819, %v815
    %v1188 = vpack.c.b16 %v820, %v816
    %v1189 = vpack.c.b16 %v821, %v817
    %v1190 = vpack.c.b16 %v826, %v822
    %v1191 = vpack.c.b16 %v827, %v823
    %v1192 = vpack.c.b16 %v828, %v824
    %v1193 = vpack.c.b16 %v829, %v825
    %v1194 = vpack.c.b16 %v834, %v830
    %v1195 = vpack.c.b16 %v835, %v831
    %v1196 = vpack.c.b16 %v836, %v832
    %v1197 = vpack.c.b16 %v837, %v833
    %v1198 = vpack.c.b16 %v842, %v838
    %v1199 = vpack.c.b16 %v843, %v839
    %v1200 = vpack.c.b16 %v844, %v840
    %v1201 = vpack.c.b16 %v845, %v841
    %v1202 = vpack.c.b16 %v850, %v846
    %v1203 = vpack.c.b16 %v851, %v847
    %v1204 = vpack.c.b16 %v852, %v848
    %v1205 = vpack.c.b16 %v853, %v849
    %v1206 = vpack.c.b16 %v858, %v854
    %v1207 = vpack.c.b16 %v859, %v855
    %v1208 = vpack.c.b16 %v860, %v856
    %v1209 = vpack.c.b16 %v861, %v857
    %v1210 = vpack.c.b16 %v866, %v862
    %v1211 = vpack.c.b16 %v867, %v863
    %v1212 = vpack.c.b16 %v868, %v864
    %v1213 = vpack.c.b16 %v869, %v865
    %v1214 = vpack.c.b16 %v874, %v870
    %v1215 = vpack.c.b16 %v875, %v871
    %v1216 = vpack.c.b16 %v876, %v872
    %v1217 = vpack.c.b16 %v877, %v873
    %v1218 = vpack.c.b16 %v882, %v878
    %v1219 = vpack.c.b16 %v883, %v879
    %v1220 = vpack.c.b16 %v884, %v880
    %v1221 = vpack.c.b16 %v885, %v881
    %v1222 = vpack.c.b16 %v890, %v886
    %v1223 = vpack.c.b16 %v891, %v887
    %v1224 = vpack.c.b16 %v892, %v888
    %v1225 = vpack.c.b16 %v893, %v889
    %v1226 = vpack.c.b16 %v898, %v894
    %v1227 = vpack.c.b16 %v899, %v895
    %v1228 = vpack.c.b16 %v900, %v896
    %v1229 = vpack.c.b16 %v901, %v897
    %v1230 = vpack.c.b16 %v906, %v902
    %v1231 = vpack.c.b16 %v907, %v903
    %v1232 = vpack.c.b16 %v908, %v904
    %v1233 = vpack.c.b16 %v909, %v905
    %v1234 = vpack.c.b16 %v914, %v910
    %v1235 = vpack.c.b16 %v915, %v911
    %v1236 = vpack.c.b16 %v916, %v912
    %v1237 = vpack.c.b16 %v917, %v913
    %v1238 = vpack.c.b16 %v922, %v918
    %v1239 = vpack.c.b16 %v923, %v919
    %v1240 = vpack.c.b16 %v924, %v920
    %v1241 = vpack.c.b16 %v925, %v921
    %v1242 = vpack.c.b16 %v930, %v926
    %v1243 = vpack.c.b16 %v931, %v927
    %v1244 = vpack.c.b16 %v932, %v928
    %v1245 = vpack.c.b16 %v933, %v929
    %v1246 = vpack.c.b16 %v938, %v934
    %v1247 = vpack.c.b16 %v939, %v935
    %v1248 = vpack.c.b16 %v940, %v936
    %v1249 = vpack.c.b16 %v941, %v937
    %v1250 = vpack.c.b16 %v946, %v942
    %v1251 = vpack.c.b16 %v947, %v943
    %v1252 = vpack.c.b16 %v948, %v944
    %v1253 = vpack.c.b16 %v949, %v945
    %v1254 = vpack.c.b16 %v954, %v950
    %v1255 = vpack.c.b16 %v955, %v951
    %v1256 = vpack.c.b16 %v956, %v952
    %v1257 = vpack.c.b16 %v957, %v953
    %v1258 = vpack.c.b16 %v962, %v958
    %v1259 = vpack.c.b16 %v963, %v959
    %v1260 = vpack.c.b16 %v964, %v960
    %v1261 = vpack.c.b16 %v965, %v961
    %v1262 = vpack.c.b16 %v970, %v966
    %v1263 = vpack.c.b16 %v971, %v967
    %v1264 = vpack.c.b16 %v972, %v968
    %v1265 = vpack.c.b16 %v973, %v969
    %v1266 = vpack.c.b16 %v978, %v974
    %v1267 = vpack.c.b16 %v979, %v975
    %v1268 = vpack.c.b16 %v980, %v976
    %v1269 = vpack.c.b16 %v981, %v977
    %v1270 = vpack.c.b16 %v986, %v982
    %v1271 = vpack.c.b16 %v987, %v983
    %v1272 = vpack.c.b16 %v988, %v984
    %v1273 = vpack.c.b16 %v989, %v985
    %v1274 = vpack.c.b16 %v994, %v990
    %v1275 = vpack.c.b16 %v995, %v991
    %v1276 = vpack.c.b16 %v996, %v992
    %v1277 = vpack.c.b16 %v997, %v993
    %v1278 = vpack.c.b16 %v1002, %v998
    %v1279 = vpack.c.b16 %v1003, %v999
    %v1280 = vpack.c.b16 %v1004, %v1000
    %v1281 = vpack.c.b16 %v1005, %v1001
    %v1282 = vpack.c.b16 %v1010, %v1006
    %v1283 = vpack.c.b16 %v1011, %v1007
    %v1284 = vpack.c.b16 %v1012, %v1008
    %v1285 = vpack.c.b16 %v1013, %v1009
    %v1286 = vpack.c.b16 %v1018, %v1014
    %v1287 = vpack.c.b16 %v1019, %v1015
    %v1288 = vpack.c.b16 %v1020, %v1016
    %v1289 = vpack.c.b16 %v1021, %v1017
    %v1290 = vpack.c.b16 %v1026, %v1022
    %v1291 = vpack.c.b16 %v1027, %v1023
    %v1292 = vpack.c.b16 %v1028, %v1024
    %v1293 = vpack.c.b16 %v1029, %v1025
    %v1294 = vpack.c.b16 %v1034, %v1030
    %v1295 = vpack.c.b16 %v1035, %v1031
    %v1296 = vpack.c.b16 %v1036, %v1032
    %v1297 = vpack.c.b16 %v1037, %v1033
    %v1298 = vpack.c.b16 %v1042, %v1038
    %v1299 = vpack.c.b16 %v1043, %v1039
    %v1300 = vpack.c.b16 %v1044, %v1040
    %v1301 = vpack.c.b16 %v1045, %v1041
    %v1302 = vpack.c.b16 %v1050, %v1046
    %v1303 = vpack.c.b16 %v1051, %v1047
    %v1304 = vpack.c.b16 %v1052, %v1048
    %v1305 = vpack.c.b16 %v1053, %v1049
    %v1306 = vpack.c.b16 %v1058, %v1054
    %v1307 = vpack.c.b16 %v1059, %v1055
    %v1308 = vpack.c.b16 %v1060, %v1056
    %v1309 = vpack.c.b16 %v1061, %v1057
    %v1310 = vpack.c.b16 %v1066, %v1062
    %v1311 = vpack.c.b16 %v1067, %v1063
    %v1312 = vpack.c.b16 %v1068, %v1064
    %v1313 = vpack.c.b16 %v1069, %v1065
    %v1314 = vpack.c.b16 %v1074, %v1070
    %v1315 = vpack.c.b16 %v1075, %v1071
    %v1316 = vpack.c.b16 %v1076, %v1072
    %v1317 = vpack.c.b16 %v1077, %v1073
    %v1318 = vpack.c.b16 %v1082, %v1078
    %v1319 = vpack.c.b16 %v1083, %v1079
    %v1320 = vpack.c.b16 %v1084, %v1080
    %v1321 = vpack.c.b16 %v1085, %v1081
    %v1322 = vpack.c.b16 %v1090, %v1086
    %v1323 = vpack.c.b16 %v1091, %v1087
    %v1324 = vpack.c.b16 %v1092, %v1088
    %v1325 = vpack.c.b16 %v1093, %v1089
    %v1326 = vpack.c.b16 %v1098, %v1094
    %v1327 = vpack.c.b16 %v1099, %v1095
    %v1328 = vpack.c.b16 %v1100, %v1096
    %v1329 = vpack.c.b16 %v1101, %v1097
    %v1330 = vpack.c.b16 %v1106, %v1102
    %v1331 = vpack.c.b16 %v1107, %v1103
    %v1332 = vpack.c.b16 %v1108, %v1104
    %v1333 = vpack.c.b16 %v1109, %v1105
    %v1334 = vpack.c.b16 %v1114, %v1110
    %v1335 = vpack.c.b16 %v1115, %v1111
    %v1336 = vpack.c.b16 %v1116, %v1112
    %v1337 = vpack.c.b16 %v1117, %v1113
    %v1338 = vpack.c.b16 %v1122, %v1118
    %v1339 = vpack.c.b16 %v1123, %v1119
    %v1340 = vpack.c.b16 %v1124, %v1120
    %v1341 = vpack.c.b16 %v1125, %v1121
    %v1342 = vpack.c.b16 %v1130, %v1126
    %v1343 = vpack.c.b16 %v1131, %v1127
    %v1344 = vpack.c.b16 %v1132, %v1128
    %v1345 = vpack.c.b16 %v1133, %v1129
    %v1346 = vpack.c.b16 %v1138, %v1134
    %v1347 = vpack.c.b16 %v1139, %v1135
    %v1348 = vpack.c.b16 %v1140, %v1136
    %v1349 = vpack.c.b16 %v1141, %v1137
    %v1350 = vpack.c.b16 %v1146, %v1142
    %v1351 = vpack.c.b16 %v1147, %v1143
    %v1352 = vpack.c.b16 %v1148, %v1144
    %v1353 = vpack.c.b16 %v1149, %v1145
    %v1354 = vpack.c.b16 %v1154, %v1150
    %v1355 = vpack.c.b16 %v1155, %v1151
    %v1356 = vpack.c.b16 %v1156, %v1152
    %v1357 = vpack.c.b16 %v1157, %v1153
    %v1358 = vpack.c.b16 %v1162, %v1158
    %v1359 = vpack.c.b16 %v1163, %v1159
    %v1360 = vpack.c.b16 %v1164, %v1160
    %v1361 = vpack.c.b16 %v1165, %v1161
    %vm1558 = vcmask 130048
    %v1560 = vsel %vm1558, %v275, 0
    %v1563 = vsel %vm1558, %v282, 0
    %v1566 = vsel %vm1558, %v289, 0
    %v1569 = vsel %vm1558, %v296, 0
    %v1572 = vsel %vm1558, %v303, 0
    %v1575 = vsel %vm1558, %v310, 0
    %v1578 = vsel %vm1558, %v317, 0
    %v1581 = vsel %vm1558, %v324, 0
    %v1584 = vsel %vm1558, %v331, 0
    %v1587 = vsel %vm1558, %v338, 0
    %v1590 = vsel %vm1558, %v345, 0
    %v1593 = vsel %vm1558, %v352, 0
    %v1596 = vsel %vm1558, %v359, 0
    %1598 = vmatprep.subr.bf16.mxu0 %v1195
    %1599 = vmatpush1.bf16.msra.mxu0 %v1194
    %1600 = vmatprep.subr.bf16.mxu0 %v1191
    %1601 = vmatpush1.bf16.msra.mxu0 %v1190
    %1602 = vmatprep.subr.bf16.mxu0 %v1187
    %1603 = vmatpush1.bf16.msra.mxu0 %v1186
    %1604 = vmatprep.subr.bf16.mxu0 %v1183
    %1605 = vmatpush1.bf16.msra.mxu0 %v1182
    %1606 = vmatprep.subr.bf16.mxu0 %v1179
    %1607 = vmatpush1.bf16.msra.mxu0 %v1178
    %1608 = vmatprep.subr.bf16.mxu0 %v1175
    %1609 = vmatpush1.bf16.msra.mxu0 %v1174
    %1610 = vmatprep.subr.bf16.mxu0 %v1171
    %1611 = vmatpush1.bf16.msra.mxu0 %v1170
    %1612 = vmatprep.subr.bf16.mxu0 %v1167
    %1613 = vmatpush1.bf16.msra.mxu0 %v1166
    %1614 = vmatprep.subr.bf16.mxu0 %v1227
    %1615 = vmatpush2.bf16.msra.mxu0 %v1226
    %1616 = vmatprep.subr.bf16.mxu0 %v1223
    %1617 = vmatpush2.bf16.msra.mxu0 %v1222
    %1618 = vmatprep.subr.bf16.mxu0 %v1219
    %1619 = vmatpush2.bf16.msra.mxu0 %v1218
    %1620 = vmatprep.subr.bf16.mxu0 %v1215
    %1621 = vmatpush2.bf16.msra.mxu0 %v1214
    %1622 = vmatprep.subr.bf16.mxu0 %v1211
    %1623 = vmatpush2.bf16.msra.mxu0 %v1210
    %1624 = vmatprep.subr.bf16.mxu0 %v1207
    %1625 = vmatpush2.bf16.msra.mxu0 %v1206
    %1626 = vmatprep.subr.bf16.mxu0 %v1203
    %1627 = vmatpush2.bf16.msra.mxu0 %v1202
    %1628 = vmatprep.subr.bf16.mxu0 %v1199
    %1629 = vmatpush2.bf16.msra.mxu0 %v1198
    %1630 = vmatprep.mubr.bf16.mxu0 %v270
    %1631 = vmatmul.mubr.bf16.gmra.mxu0 %v269
    %v1632 = vpop.f32.mrf.mxu0
    %v1633 = vadd.f32 %v561, %v1632
    %v1634 = vpop.f32.mrf.mxu0
    %v1635 = vadd.f32 %v565, %v1634
    %v1636 = vpop.f32.mrf.mxu0
    %v1637 = vadd.f32 %v561, %v1636
    %v1638 = vpop.f32.mrf.mxu0
    %v1639 = vadd.f32 %v565, %v1638
    %1640 = vmatprep.mubr.bf16.mxu0 %v277
    %1641 = vmatmul.mubr.bf16.gmra.mxu0 %v276
    %v1642 = vpop.f32.mrf.mxu0
    %v1643 = vadd.f32 %v561, %v1642
    %v1644 = vpop.f32.mrf.mxu0
    %v1645 = vadd.f32 %v565, %v1644
    %v1646 = vpop.f32.mrf.mxu0
    %v1647 = vadd.f32 %v561, %v1646
    %v1648 = vpop.f32.mrf.mxu0
    %v1649 = vadd.f32 %v565, %v1648
    %1650 = vmatprep.mubr.bf16.mxu0 %v284
    %1651 = vmatmul.mubr.bf16.gmra.mxu0 %v283
    %v1652 = vpop.f32.mrf.mxu0
    %v1653 = vadd.f32 %v561, %v1652
    %v1654 = vpop.f32.mrf.mxu0
    %v1655 = vadd.f32 %v565, %v1654
    %v1656 = vpop.f32.mrf.mxu0
    %v1657 = vadd.f32 %v561, %v1656
    %v1658 = vpop.f32.mrf.mxu0
    %v1659 = vadd.f32 %v565, %v1658
    %1660 = vmatprep.mubr.bf16.mxu0 %v291
    %1661 = vmatmul.mubr.bf16.gmra.mxu0 %v290
    %v1662 = vpop.f32.mrf.mxu0
    %v1663 = vadd.f32 %v561, %v1662
    %v1664 = vpop.f32.mrf.mxu0
    %v1665 = vadd.f32 %v565, %v1664
    %v1666 = vpop.f32.mrf.mxu0
    %v1667 = vadd.f32 %v561, %v1666
    %v1668 = vpop.f32.mrf.mxu0
    %v1669 = vadd.f32 %v565, %v1668
    %1670 = vmatprep.mubr.bf16.mxu0 %v298
    %1671 = vmatmul.mubr.bf16.gmra.mxu0 %v297
    %v1672 = vpop.f32.mrf.mxu0
    %v1673 = vadd.f32 %v561, %v1672
    %v1674 = vpop.f32.mrf.mxu0
    %v1675 = vadd.f32 %v565, %v1674
    %v1676 = vpop.f32.mrf.mxu0
    %v1677 = vadd.f32 %v561, %v1676
    %v1678 = vpop.f32.mrf.mxu0
    %v1679 = vadd.f32 %v565, %v1678
    %1680 = vmatprep.mubr.bf16.mxu0 %v305
    %1681 = vmatmul.mubr.bf16.gmra.mxu0 %v304
    %v1682 = vpop.f32.mrf.mxu0
    %v1683 = vadd.f32 %v561, %v1682
    %v1684 = vpop.f32.mrf.mxu0
    %v1685 = vadd.f32 %v565, %v1684
    %v1686 = vpop.f32.mrf.mxu0
    %v1687 = vadd.f32 %v561, %v1686
    %v1688 = vpop.f32.mrf.mxu0
    %v1689 = vadd.f32 %v565, %v1688
    %1690 = vmatprep.mubr.bf16.mxu0 %v312
    %1691 = vmatmul.mubr.bf16.gmra.mxu0 %v311
    %v1692 = vpop.f32.mrf.mxu0
    %v1693 = vadd.f32 %v561, %v1692
    %v1694 = vpop.f32.mrf.mxu0
    %v1695 = vadd.f32 %v565, %v1694
    %v1696 = vpop.f32.mrf.mxu0
    %v1697 = vadd.f32 %v561, %v1696
    %v1698 = vpop.f32.mrf.mxu0
    %v1699 = vadd.f32 %v565, %v1698
    %1700 = vmatprep.mubr.bf16.mxu0 %v319
    %1701 = vmatmul.mubr.bf16.gmra.mxu0 %v318
    %v1702 = vpop.f32.mrf.mxu0
    %v1703 = vadd.f32 %v561, %v1702
    %v1704 = vpop.f32.mrf.mxu0
    %v1705 = vadd.f32 %v565, %v1704
    %v1706 = vpop.f32.mrf.mxu0
    %v1707 = vadd.f32 %v561, %v1706
    %v1708 = vpop.f32.mrf.mxu0
    %v1709 = vadd.f32 %v565, %v1708
    %1710 = vmatprep.mubr.bf16.mxu0 %v326
    %1711 = vmatmul.mubr.bf16.gmra.mxu0 %v325
    %v1712 = vpop.f32.mrf.mxu0
    %v1713 = vadd.f32 %v561, %v1712
    %v1714 = vpop.f32.mrf.mxu0
    %v1715 = vadd.f32 %v565, %v1714
    %v1716 = vpop.f32.mrf.mxu0
    %v1717 = vadd.f32 %v561, %v1716
    %v1718 = vpop.f32.mrf.mxu0
    %v1719 = vadd.f32 %v565, %v1718
    %1720 = vmatprep.mubr.bf16.mxu0 %v333
    %1721 = vmatmul.mubr.bf16.gmra.mxu0 %v332
    %v1722 = vpop.f32.mrf.mxu0
    %v1723 = vadd.f32 %v561, %v1722
    %v1724 = vpop.f32.mrf.mxu0
    %v1725 = vadd.f32 %v565, %v1724
    %v1726 = vpop.f32.mrf.mxu0
    %v1727 = vadd.f32 %v561, %v1726
    %v1728 = vpop.f32.mrf.mxu0
    %v1729 = vadd.f32 %v565, %v1728
    %1730 = vmatprep.mubr.bf16.mxu0 %v340
    %1731 = vmatmul.mubr.bf16.gmra.mxu0 %v339
    %v1732 = vpop.f32.mrf.mxu0
    %v1733 = vadd.f32 %v561, %v1732
    %v1734 = vpop.f32.mrf.mxu0
    %v1735 = vadd.f32 %v565, %v1734
    %v1736 = vpop.f32.mrf.mxu0
    %v1737 = vadd.f32 %v561, %v1736
    %v1738 = vpop.f32.mrf.mxu0
    %v1739 = vadd.f32 %v565, %v1738
    %1740 = vmatprep.mubr.bf16.mxu0 %v347
    %1741 = vmatmul.mubr.bf16.gmra.mxu0 %v346
    %v1742 = vpop.f32.mrf.mxu0
    %v1743 = vadd.f32 %v561, %v1742
    %v1744 = vpop.f32.mrf.mxu0
    %v1745 = vadd.f32 %v565, %v1744
    %v1746 = vpop.f32.mrf.mxu0
    %v1747 = vadd.f32 %v561, %v1746
    %v1748 = vpop.f32.mrf.mxu0
    %v1749 = vadd.f32 %v565, %v1748
    %1750 = vmatprep.mubr.bf16.mxu0 %v354
    %1751 = vmatmul.mubr.bf16.gmra.mxu0 %v353
    %v1752 = vpop.f32.mrf.mxu0
    %v1753 = vadd.f32 %v561, %v1752
    %v1754 = vpop.f32.mrf.mxu0
    %v1755 = vadd.f32 %v565, %v1754
    %v1756 = vpop.f32.mrf.mxu0
    %v1757 = vpop.f32.mrf.mxu0
    %1758 = vdwg.mxu0
    %1759 = vmatprep.subr.bf16.mxu0 %v1259
    %1760 = vmatpush1.bf16.msra.mxu0 %v1258
    %1761 = vmatprep.subr.bf16.mxu0 %v1255
    %1762 = vmatpush1.bf16.msra.mxu0 %v1254
    %1763 = vmatprep.subr.bf16.mxu0 %v1251
    %1764 = vmatpush1.bf16.msra.mxu0 %v1250
    %1765 = vmatprep.subr.bf16.mxu0 %v1247
    %1766 = vmatpush1.bf16.msra.mxu0 %v1246
    %1767 = vmatprep.subr.bf16.mxu0 %v1243
    %1768 = vmatpush1.bf16.msra.mxu0 %v1242
    %1769 = vmatprep.subr.bf16.mxu0 %v1239
    %1770 = vmatpush1.bf16.msra.mxu0 %v1238
    %1771 = vmatprep.subr.bf16.mxu0 %v1235
    %1772 = vmatpush1.bf16.msra.mxu0 %v1234
    %1773 = vmatprep.subr.bf16.mxu0 %v1231
    %1774 = vmatpush1.bf16.msra.mxu0 %v1230
    %1775 = vmatprep.subr.bf16.mxu0 %v1291
    %1776 = vmatpush2.bf16.msra.mxu0 %v1290
    %1777 = vmatprep.subr.bf16.mxu0 %v1287
    %1778 = vmatpush2.bf16.msra.mxu0 %v1286
    %1779 = vmatprep.subr.bf16.mxu0 %v1283
    %1780 = vmatpush2.bf16.msra.mxu0 %v1282
    %1781 = vmatprep.subr.bf16.mxu0 %v1279
    %1782 = vmatpush2.bf16.msra.mxu0 %v1278
    %1783 = vmatprep.subr.bf16.mxu0 %v1275
    %1784 = vmatpush2.bf16.msra.mxu0 %v1274
    %1785 = vmatprep.subr.bf16.mxu0 %v1271
    %1786 = vmatpush2.bf16.msra.mxu0 %v1270
    %1787 = vmatprep.subr.bf16.mxu0 %v1267
    %1788 = vmatpush2.bf16.msra.mxu0 %v1266
    %1789 = vmatprep.subr.bf16.mxu0 %v1263
    %1790 = vmatpush2.bf16.msra.mxu0 %v1262
    %1791 = vmatprep.mubr.bf16.mxu0 %v272
    %1792 = vmatmul.mubr.bf16.gmra.mxu0 %v271
    %v1793 = vpop.f32.mrf.mxu0
    %v1794 = vadd.f32 %v1633, %v1793
    %v1795 = vpop.f32.mrf.mxu0
    %v1796 = vadd.f32 %v1635, %v1795
    %v1797 = vpop.f32.mrf.mxu0
    %v1798 = vadd.f32 %v1637, %v1797
    %v1799 = vpop.f32.mrf.mxu0
    %v1800 = vadd.f32 %v1639, %v1799
    %1801 = vmatprep.mubr.bf16.mxu0 %v279
    %1802 = vmatmul.mubr.bf16.gmra.mxu0 %v278
    %v1803 = vpop.f32.mrf.mxu0
    %v1804 = vadd.f32 %v1643, %v1803
    %v1805 = vpop.f32.mrf.mxu0
    %v1806 = vadd.f32 %v1645, %v1805
    %v1807 = vpop.f32.mrf.mxu0
    %v1808 = vadd.f32 %v1647, %v1807
    %v1809 = vpop.f32.mrf.mxu0
    %v1810 = vadd.f32 %v1649, %v1809
    %1811 = vmatprep.mubr.bf16.mxu0 %v286
    %1812 = vmatmul.mubr.bf16.gmra.mxu0 %v285
    %v1813 = vpop.f32.mrf.mxu0
    %v1814 = vadd.f32 %v1653, %v1813
    %v1815 = vpop.f32.mrf.mxu0
    %v1816 = vadd.f32 %v1655, %v1815
    %v1817 = vpop.f32.mrf.mxu0
    %v1818 = vadd.f32 %v1657, %v1817
    %v1819 = vpop.f32.mrf.mxu0
    %v1820 = vadd.f32 %v1659, %v1819
    %1821 = vmatprep.mubr.bf16.mxu0 %v293
    %1822 = vmatmul.mubr.bf16.gmra.mxu0 %v292
    %v1823 = vpop.f32.mrf.mxu0
    %v1824 = vadd.f32 %v1663, %v1823
    %v1825 = vpop.f32.mrf.mxu0
    %v1826 = vadd.f32 %v1665, %v1825
    %v1827 = vpop.f32.mrf.mxu0
    %v1828 = vadd.f32 %v1667, %v1827
    %v1829 = vpop.f32.mrf.mxu0
    %v1830 = vadd.f32 %v1669, %v1829
    %1831 = vmatprep.mubr.bf16.mxu0 %v300
    %1832 = vmatmul.mubr.bf16.gmra.mxu0 %v299
    %v1833 = vpop.f32.mrf.mxu0
    %v1834 = vadd.f32 %v1673, %v1833
    %v1835 = vpop.f32.mrf.mxu0
    %v1836 = vadd.f32 %v1675, %v1835
    %v1837 = vpop.f32.mrf.mxu0
    %v1838 = vadd.f32 %v1677, %v1837
    %v1839 = vpop.f32.mrf.mxu0
    %v1840 = vadd.f32 %v1679, %v1839
    %1841 = vmatprep.mubr.bf16.mxu0 %v307
    %1842 = vmatmul.mubr.bf16.gmra.mxu0 %v306
    %v1843 = vpop.f32.mrf.mxu0
    %v1844 = vadd.f32 %v1683, %v1843
    %v1845 = vpop.f32.mrf.mxu0
    %v1846 = vadd.f32 %v1685, %v1845
    %v1847 = vpop.f32.mrf.mxu0
    %v1848 = vadd.f32 %v1687, %v1847
    %v1849 = vpop.f32.mrf.mxu0
    %v1850 = vadd.f32 %v1689, %v1849
    %1851 = vmatprep.mubr.bf16.mxu0 %v314
    %1852 = vmatmul.mubr.bf16.gmra.mxu0 %v313
    %v1853 = vpop.f32.mrf.mxu0
    %v1854 = vadd.f32 %v1693, %v1853
    %v1855 = vpop.f32.mrf.mxu0
    %v1856 = vadd.f32 %v1695, %v1855
    %v1857 = vpop.f32.mrf.mxu0
    %v1858 = vadd.f32 %v1697, %v1857
    %v1859 = vpop.f32.mrf.mxu0
    %v1860 = vadd.f32 %v1699, %v1859
    %1861 = vmatprep.mubr.bf16.mxu0 %v321
    %1862 = vmatmul.mubr.bf16.gmra.mxu0 %v320
    %v1863 = vpop.f32.mrf.mxu0
    %v1864 = vadd.f32 %v1703, %v1863
    %v1865 = vpop.f32.mrf.mxu0
    %v1866 = vadd.f32 %v1705, %v1865
    %v1867 = vpop.f32.mrf.mxu0
    %v1868 = vadd.f32 %v1707, %v1867
    %v1869 = vpop.f32.mrf.mxu0
    %v1870 = vadd.f32 %v1709, %v1869
    %1871 = vmatprep.mubr.bf16.mxu0 %v328
    %1872 = vmatmul.mubr.bf16.gmra.mxu0 %v327
    %v1873 = vpop.f32.mrf.mxu0
    %v1874 = vadd.f32 %v1713, %v1873
    %v1875 = vpop.f32.mrf.mxu0
    %v1876 = vadd.f32 %v1715, %v1875
    %v1877 = vpop.f32.mrf.mxu0
    %v1878 = vadd.f32 %v1717, %v1877
    %v1879 = vpop.f32.mrf.mxu0
    %v1880 = vadd.f32 %v1719, %v1879
    %1881 = vmatprep.mubr.bf16.mxu0 %v335
    %1882 = vmatmul.mubr.bf16.gmra.mxu0 %v334
    %v1883 = vpop.f32.mrf.mxu0
    %v1884 = vadd.f32 %v1723, %v1883
    %v1885 = vpop.f32.mrf.mxu0
    %v1886 = vadd.f32 %v1725, %v1885
    %v1887 = vpop.f32.mrf.mxu0
    %v1888 = vadd.f32 %v1727, %v1887
    %v1889 = vpop.f32.mrf.mxu0
    %v1890 = vadd.f32 %v1729, %v1889
    %1891 = vmatprep.mubr.bf16.mxu0 %v342
    %1892 = vmatmul.mubr.bf16.gmra.mxu0 %v341
    %v1893 = vpop.f32.mrf.mxu0
    %v1894 = vadd.f32 %v1733, %v1893
    %v1895 = vpop.f32.mrf.mxu0
    %v1896 = vadd.f32 %v1735, %v1895
    %v1897 = vpop.f32.mrf.mxu0
    %v1898 = vadd.f32 %v1737, %v1897
    %v1899 = vpop.f32.mrf.mxu0
    %v1900 = vadd.f32 %v1739, %v1899
    %1901 = vmatprep.mubr.bf16.mxu0 %v349
    %1902 = vmatmul.mubr.bf16.gmra.mxu0 %v348
    %v1903 = vpop.f32.mrf.mxu0
    %v1904 = vadd.f32 %v1743, %v1903
    %v1905 = vpop.f32.mrf.mxu0
    %v1906 = vadd.f32 %v1745, %v1905
    %v1907 = vpop.f32.mrf.mxu0
    %v1908 = vadd.f32 %v1747, %v1907
    %v1909 = vpop.f32.mrf.mxu0
    %v1910 = vadd.f32 %v1749, %v1909
    %1911 = vmatprep.mubr.bf16.mxu0 %v356
    %1912 = vmatmul.mubr.bf16.gmra.mxu0 %v355
    %v1913 = vpop.f32.mrf.mxu0
    %v1914 = vadd.f32 %v1753, %v1913
    %v1915 = vpop.f32.mrf.mxu0
    %v1916 = vadd.f32 %v1755, %v1915
    %v1917 = vpop.f32.mrf.mxu0
    %v1918 = vpop.f32.mrf.mxu0
    %1919 = vdwg.mxu0
    %1920 = vmatprep.subr.bf16.mxu0 %v1323
    %1921 = vmatpush1.bf16.msra.mxu0 %v1322
    %1922 = vmatprep.subr.bf16.mxu0 %v1319
    %1923 = vmatpush1.bf16.msra.mxu0 %v1318
    %1924 = vmatprep.subr.bf16.mxu0 %v1315
    %1925 = vmatpush1.bf16.msra.mxu0 %v1314
    %1926 = vmatprep.subr.bf16.mxu0 %v1311
    %1927 = vmatpush1.bf16.msra.mxu0 %v1310
    %1928 = vmatprep.subr.bf16.mxu0 %v1307
    %1929 = vmatpush1.bf16.msra.mxu0 %v1306
    %1930 = vmatprep.subr.bf16.mxu0 %v1303
    %1931 = vmatpush1.bf16.msra.mxu0 %v1302
    %1932 = vmatprep.subr.bf16.mxu0 %v1299
    %1933 = vmatpush1.bf16.msra.mxu0 %v1298
    %1934 = vmatprep.subr.bf16.mxu0 %v1295
    %1935 = vmatpush1.bf16.msra.mxu0 %v1294
    %1936 = vmatprep.subr.bf16.mxu0 %v1355
    %1937 = vmatpush2.bf16.msra.mxu0 %v1354
    %1938 = vmatprep.subr.bf16.mxu0 %v1351
    %1939 = vmatpush2.bf16.msra.mxu0 %v1350
    %1940 = vmatprep.subr.bf16.mxu0 %v1347
    %1941 = vmatpush2.bf16.msra.mxu0 %v1346
    %1942 = vmatprep.subr.bf16.mxu0 %v1343
    %1943 = vmatpush2.bf16.msra.mxu0 %v1342
    %1944 = vmatprep.subr.bf16.mxu0 %v1339
    %1945 = vmatpush2.bf16.msra.mxu0 %v1338
    %1946 = vmatprep.subr.bf16.mxu0 %v1335
    %1947 = vmatpush2.bf16.msra.mxu0 %v1334
    %1948 = vmatprep.subr.bf16.mxu0 %v1331
    %1949 = vmatpush2.bf16.msra.mxu0 %v1330
    %1950 = vmatprep.subr.bf16.mxu0 %v1327
    %1951 = vmatpush2.bf16.msra.mxu0 %v1326
    %1952 = vmatprep.mubr.bf16.mxu0 %v274
    %1953 = vmatmul.mubr.bf16.gmra.mxu0 %v273
    %v1954 = vpop.f32.mrf.mxu0
    %v1955 = vadd.f32 %v1794, %v1954
    %v1956 = vpop.f32.mrf.mxu0
    %v1957 = vadd.f32 %v1796, %v1956
    %v1958 = vpop.f32.mrf.mxu0
    %v1959 = vadd.f32 %v1798, %v1958
    %v1960 = vpop.f32.mrf.mxu0
    %v1961 = vadd.f32 %v1800, %v1960
    %1962 = vmatprep.mubr.bf16.mxu0 %v281
    %1963 = vmatmul.mubr.bf16.gmra.mxu0 %v280
    %v1964 = vpop.f32.mrf.mxu0
    %v1965 = vadd.f32 %v1804, %v1964
    %v1966 = vpop.f32.mrf.mxu0
    %v1967 = vadd.f32 %v1806, %v1966
    %v1968 = vpop.f32.mrf.mxu0
    %v1969 = vadd.f32 %v1808, %v1968
    %v1970 = vpop.f32.mrf.mxu0
    %v1971 = vadd.f32 %v1810, %v1970
    %1972 = vmatprep.mubr.bf16.mxu0 %v288
    %1973 = vmatmul.mubr.bf16.gmra.mxu0 %v287
    %v1974 = vpop.f32.mrf.mxu0
    %v1975 = vadd.f32 %v1814, %v1974
    %v1976 = vpop.f32.mrf.mxu0
    %v1977 = vadd.f32 %v1816, %v1976
    %v1978 = vpop.f32.mrf.mxu0
    %v1979 = vadd.f32 %v1818, %v1978
    %v1980 = vpop.f32.mrf.mxu0
    %v1981 = vadd.f32 %v1820, %v1980
    %1982 = vmatprep.mubr.bf16.mxu0 %v295
    %1983 = vmatmul.mubr.bf16.gmra.mxu0 %v294
    %v1984 = vpop.f32.mrf.mxu0
    %v1985 = vadd.f32 %v1824, %v1984
    %v1986 = vpop.f32.mrf.mxu0
    %v1987 = vadd.f32 %v1826, %v1986
    %v1988 = vpop.f32.mrf.mxu0
    %v1989 = vadd.f32 %v1828, %v1988
    %v1990 = vpop.f32.mrf.mxu0
    %v1991 = vadd.f32 %v1830, %v1990
    %1992 = vmatprep.mubr.bf16.mxu0 %v302
    %1993 = vmatmul.mubr.bf16.gmra.mxu0 %v301
    %v1994 = vpop.f32.mrf.mxu0
    %v1995 = vadd.f32 %v1834, %v1994
    %v1996 = vpop.f32.mrf.mxu0
    %v1997 = vadd.f32 %v1836, %v1996
    %v1998 = vpop.f32.mrf.mxu0
    %v1999 = vadd.f32 %v1838, %v1998
    %v2000 = vpop.f32.mrf.mxu0
    %v2001 = vadd.f32 %v1840, %v2000
    %2002 = vmatprep.mubr.bf16.mxu0 %v309
    %2003 = vmatmul.mubr.bf16.gmra.mxu0 %v308
    %v2004 = vpop.f32.mrf.mxu0
    %v2005 = vadd.f32 %v1844, %v2004
    %v2006 = vpop.f32.mrf.mxu0
    %v2007 = vadd.f32 %v1846, %v2006
    %v2008 = vpop.f32.mrf.mxu0
    %v2009 = vadd.f32 %v1848, %v2008
    %v2010 = vpop.f32.mrf.mxu0
    %v2011 = vadd.f32 %v1850, %v2010
    %2012 = vmatprep.mubr.bf16.mxu0 %v316
    %2013 = vmatmul.mubr.bf16.gmra.mxu0 %v315
    %v2014 = vpop.f32.mrf.mxu0
    %v2015 = vadd.f32 %v1854, %v2014
    %v2016 = vpop.f32.mrf.mxu0
    %v2017 = vadd.f32 %v1856, %v2016
    %v2018 = vpop.f32.mrf.mxu0
    %v2019 = vadd.f32 %v1858, %v2018
    %v2020 = vpop.f32.mrf.mxu0
    %v2021 = vadd.f32 %v1860, %v2020
    %2022 = vmatprep.mubr.bf16.mxu0 %v323
    %2023 = vmatmul.mubr.bf16.gmra.mxu0 %v322
    %v2024 = vpop.f32.mrf.mxu0
    %v2025 = vadd.f32 %v1864, %v2024
    %v2026 = vpop.f32.mrf.mxu0
    %v2027 = vadd.f32 %v1866, %v2026
    %v2028 = vpop.f32.mrf.mxu0
    %v2029 = vadd.f32 %v1868, %v2028
    %v2030 = vpop.f32.mrf.mxu0
    %v2031 = vadd.f32 %v1870, %v2030
    %2032 = vmatprep.mubr.bf16.mxu0 %v330
    %2033 = vmatmul.mubr.bf16.gmra.mxu0 %v329
    %v2034 = vpop.f32.mrf.mxu0
    %v2035 = vadd.f32 %v1874, %v2034
    %v2036 = vpop.f32.mrf.mxu0
    %v2037 = vadd.f32 %v1876, %v2036
    %v2038 = vpop.f32.mrf.mxu0
    %v2039 = vadd.f32 %v1878, %v2038
    %v2040 = vpop.f32.mrf.mxu0
    %v2041 = vadd.f32 %v1880, %v2040
    %2042 = vmatprep.mubr.bf16.mxu0 %v337
    %2043 = vmatmul.mubr.bf16.gmra.mxu0 %v336
    %v2044 = vpop.f32.mrf.mxu0
    %v2045 = vadd.f32 %v1884, %v2044
    %v2046 = vpop.f32.mrf.mxu0
    %v2047 = vadd.f32 %v1886, %v2046
    %v2048 = vpop.f32.mrf.mxu0
    %v2049 = vadd.f32 %v1888, %v2048
    %v2050 = vpop.f32.mrf.mxu0
    %v2051 = vadd.f32 %v1890, %v2050
    %2052 = vmatprep.mubr.bf16.mxu0 %v344
    %2053 = vmatmul.mubr.bf16.gmra.mxu0 %v343
    %v2054 = vpop.f32.mrf.mxu0
    %v2055 = vadd.f32 %v1894, %v2054
    %v2056 = vpop.f32.mrf.mxu0
    %v2057 = vadd.f32 %v1896, %v2056
    %v2058 = vpop.f32.mrf.mxu0
    %v2059 = vadd.f32 %v1898, %v2058
    %v2060 = vpop.f32.mrf.mxu0
    %v2061 = vadd.f32 %v1900, %v2060
    %2062 = vmatprep.mubr.bf16.mxu0 %v351
    %2063 = vmatmul.mubr.bf16.gmra.mxu0 %v350
    %v2064 = vpop.f32.mrf.mxu0
    %v2065 = vadd.f32 %v1904, %v2064
    %v2066 = vpop.f32.mrf.mxu0
    %v2067 = vadd.f32 %v1906, %v2066
    %v2068 = vpop.f32.mrf.mxu0
    %v2069 = vadd.f32 %v1908, %v2068
    %v2070 = vpop.f32.mrf.mxu0
    %v2071 = vadd.f32 %v1910, %v2070
    %2072 = vmatprep.mubr.bf16.mxu0 %v358
    %2073 = vmatmul.mubr.bf16.gmra.mxu0 %v357
    %v2074 = vpop.f32.mrf.mxu0
    %v2075 = vadd.f32 %v1914, %v2074
    %v2076 = vpop.f32.mrf.mxu0
    %v2077 = vadd.f32 %v1916, %v2076
    %v2078 = vpop.f32.mrf.mxu0
    %v2079 = vpop.f32.mrf.mxu0
    %2080 = vdwg.mxu0
    %2081 = vmatprep.subr.bf16.mxu0 0
    %2082 = vmatpush1.bf16.msra.mxu0 0
    %2083 = vmatprep.subr.bf16.mxu0 0
    %2084 = vmatpush1.bf16.msra.mxu0 0
    %2085 = vmatprep.subr.bf16.mxu0 0
    %2086 = vmatpush1.bf16.msra.mxu0 0
    %2087 = vmatprep.subr.bf16.mxu0 0
    %2088 = vmatpush1.bf16.msra.mxu0 0
    %2089 = vmatprep.subr.bf16.mxu0 0
    %2090 = vmatpush1.bf16.msra.mxu0 0
    %2091 = vmatprep.subr.bf16.mxu0 0
    %2092 = vmatpush1.bf16.msra.mxu0 0
    %2093 = vmatprep.subr.bf16.mxu0 0
    %2094 = vmatpush1.bf16.msra.mxu0 0
    %2095 = vmatprep.subr.bf16.mxu0 %v1359
    %2096 = vmatpush1.bf16.msra.mxu0 %v1358
    %2097 = vmatprep.subr.bf16.mxu0 0
    %2098 = vmatpush2.bf16.msra.mxu0 0
    %2099 = vmatprep.subr.bf16.mxu0 0
    %2100 = vmatpush2.bf16.msra.mxu0 0
    %2101 = vmatprep.subr.bf16.mxu0 0
    %2102 = vmatpush2.bf16.msra.mxu0 0
    %2103 = vmatprep.subr.bf16.mxu0 0
    %2104 = vmatpush2.bf16.msra.mxu0 0
    %2105 = vmatprep.subr.bf16.mxu0 0
    %2106 = vmatpush2.bf16.msra.mxu0 0
    %2107 = vmatprep.subr.bf16.mxu0 0
    %2108 = vmatpush2.bf16.msra.mxu0 0
    %2109 = vmatprep.subr.bf16.mxu0 0
    %2110 = vmatpush2.bf16.msra.mxu0 0
    %2111 = vmatprep.subr.bf16.mxu0 0
    %2112 = vmatpush2.bf16.msra.mxu0 0
    %2113 = vmatprep.mubr.bf16.mxu0 0
    %2114 = vmatmul.mubr.bf16.gmra.mxu0 %v1560
    %v2115 = vpop.f32.mrf.mxu0
    %v2116 = vadd.f32 %v1955, %v2115
    %v2117 = vpop.f32.mrf.mxu0
    %v2118 = vadd.f32 %v1957, %v2117
    %v2119 = vpop.f32.mrf.mxu0
    %v2120 = vadd.f32 %v1959, %v2119
    %v2121 = vpop.f32.mrf.mxu0
    %v2122 = vadd.f32 %v1961, %v2121
    %2123 = vmatprep.mubr.bf16.mxu0 0
    %2124 = vmatmul.mubr.bf16.gmra.mxu0 %v1563
    %v2125 = vpop.f32.mrf.mxu0
    %v2126 = vadd.f32 %v1965, %v2125
    %v2127 = vpop.f32.mrf.mxu0
    %v2128 = vadd.f32 %v1967, %v2127
    %v2129 = vpop.f32.mrf.mxu0
    %v2130 = vadd.f32 %v1969, %v2129
    %v2131 = vpop.f32.mrf.mxu0
    %v2132 = vadd.f32 %v1971, %v2131
    %2133 = vmatprep.mubr.bf16.mxu0 0
    %2134 = vmatmul.mubr.bf16.gmra.mxu0 %v1566
    %v2135 = vpop.f32.mrf.mxu0
    %v2136 = vadd.f32 %v1975, %v2135
    %v2137 = vpop.f32.mrf.mxu0
    %v2138 = vadd.f32 %v1977, %v2137
    %v2139 = vpop.f32.mrf.mxu0
    %v2140 = vadd.f32 %v1979, %v2139
    %v2141 = vpop.f32.mrf.mxu0
    %v2142 = vadd.f32 %v1981, %v2141
    %2143 = vmatprep.mubr.bf16.mxu0 0
    %2144 = vmatmul.mubr.bf16.gmra.mxu0 %v1569
    %v2145 = vpop.f32.mrf.mxu0
    %v2146 = vadd.f32 %v1985, %v2145
    %v2147 = vpop.f32.mrf.mxu0
    %v2148 = vadd.f32 %v1987, %v2147
    %v2149 = vpop.f32.mrf.mxu0
    %v2150 = vadd.f32 %v1989, %v2149
    %v2151 = vpop.f32.mrf.mxu0
    %v2152 = vadd.f32 %v1991, %v2151
    %2153 = vmatprep.mubr.bf16.mxu0 0
    %2154 = vmatmul.mubr.bf16.gmra.mxu0 %v1572
    %v2155 = vpop.f32.mrf.mxu0
    %v2156 = vadd.f32 %v1995, %v2155
    %v2157 = vpop.f32.mrf.mxu0
    %v2158 = vadd.f32 %v1997, %v2157
    %v2159 = vpop.f32.mrf.mxu0
    %v2160 = vadd.f32 %v1999, %v2159
    %v2161 = vpop.f32.mrf.mxu0
    %v2162 = vadd.f32 %v2001, %v2161
    %2163 = vmatprep.mubr.bf16.mxu0 0
    %2164 = vmatmul.mubr.bf16.gmra.mxu0 %v1575
    %v2165 = vpop.f32.mrf.mxu0
    %v2166 = vadd.f32 %v2005, %v2165
    %v2167 = vpop.f32.mrf.mxu0
    %v2168 = vadd.f32 %v2007, %v2167
    %v2169 = vpop.f32.mrf.mxu0
    %v2170 = vadd.f32 %v2009, %v2169
    %v2171 = vpop.f32.mrf.mxu0
    %v2172 = vadd.f32 %v2011, %v2171
    %2173 = vmatprep.mubr.bf16.mxu0 0
    %2174 = vmatmul.mubr.bf16.gmra.mxu0 %v1578
    %v2175 = vpop.f32.mrf.mxu0
    %v2176 = vadd.f32 %v2015, %v2175
    %v2177 = vpop.f32.mrf.mxu0
    %v2178 = vadd.f32 %v2017, %v2177
    %v2179 = vpop.f32.mrf.mxu0
    %v2180 = vadd.f32 %v2019, %v2179
    %v2181 = vpop.f32.mrf.mxu0
    %v2182 = vadd.f32 %v2021, %v2181
    %2183 = vmatprep.mubr.bf16.mxu0 0
    %2184 = vmatmul.mubr.bf16.gmra.mxu0 %v1581
    %v2185 = vpop.f32.mrf.mxu0
    %v2186 = vadd.f32 %v2025, %v2185
    %v2187 = vpop.f32.mrf.mxu0
    %v2188 = vadd.f32 %v2027, %v2187
    %v2189 = vpop.f32.mrf.mxu0
    %v2190 = vadd.f32 %v2029, %v2189
    %v2191 = vpop.f32.mrf.mxu0
    %v2192 = vadd.f32 %v2031, %v2191
    %2193 = vmatprep.mubr.bf16.mxu0 0
    %2194 = vmatmul.mubr.bf16.gmra.mxu0 %v1584
    %v2195 = vpop.f32.mrf.mxu0
    %v2196 = vadd.f32 %v2035, %v2195
    %v2197 = vpop.f32.mrf.mxu0
    %v2198 = vadd.f32 %v2037, %v2197
    %v2199 = vpop.f32.mrf.mxu0
    %v2200 = vadd.f32 %v2039, %v2199
    %v2201 = vpop.f32.mrf.mxu0
    %v2202 = vadd.f32 %v2041, %v2201
    %2203 = vmatprep.mubr.bf16.mxu0 0
    %2204 = vmatmul.mubr.bf16.gmra.mxu0 %v1587
    %v2205 = vpop.f32.mrf.mxu0
    %v2206 = vadd.f32 %v2045, %v2205
    %v2207 = vpop.f32.mrf.mxu0
    %v2208 = vadd.f32 %v2047, %v2207
    %v2209 = vpop.f32.mrf.mxu0
    %v2210 = vadd.f32 %v2049, %v2209
    %v2211 = vpop.f32.mrf.mxu0
    %v2212 = vadd.f32 %v2051, %v2211
    %2213 = vmatprep.mubr.bf16.mxu0 0
    %2214 = vmatmul.mubr.bf16.gmra.mxu0 %v1590
    %v2215 = vpop.f32.mrf.mxu0
    %v2216 = vadd.f32 %v2055, %v2215
    %v2217 = vpop.f32.mrf.mxu0
    %v2218 = vadd.f32 %v2057, %v2217
    %v2219 = vpop.f32.mrf.mxu0
    %v2220 = vadd.f32 %v2059, %v2219
    %v2221 = vpop.f32.mrf.mxu0
    %v2222 = vadd.f32 %v2061, %v2221
    %2223 = vmatprep.mubr.bf16.mxu0 0
    %2224 = vmatmul.mubr.bf16.gmra.mxu0 %v1593
    %v2225 = vpop.f32.mrf.mxu0
    %v2226 = vadd.f32 %v2065, %v2225
    %v2227 = vpop.f32.mrf.mxu0
    %v2228 = vadd.f32 %v2067, %v2227
    %v2229 = vpop.f32.mrf.mxu0
    %v2230 = vadd.f32 %v2069, %v2229
    %v2231 = vpop.f32.mrf.mxu0
    %v2232 = vadd.f32 %v2071, %v2231
    %2233 = vmatprep.mubr.bf16.mxu0 0
    %2234 = vmatmul.mubr.bf16.gmra.mxu0 %v1596
    %v2235 = vpop.f32.mrf.mxu0
    %v2236 = vadd.f32 %v2075, %v2235
    %v2237 = vpop.f32.mrf.mxu0
    %v2238 = vadd.f32 %v2077, %v2237
    %v2239 = vpop.f32.mrf.mxu0
    %v2240 = vpop.f32.mrf.mxu0
    %2241 = vdwg.mxu0
    %2242 = vmatprep.subr.bf16.mxu0 %v1197
    %2243 = vmatpush1.bf16.msra.mxu0 %v1196
    %2244 = vmatprep.subr.bf16.mxu0 %v1193
    %2245 = vmatpush1.bf16.msra.mxu0 %v1192
    %2246 = vmatprep.subr.bf16.mxu0 %v1189
    %2247 = vmatpush1.bf16.msra.mxu0 %v1188
    %2248 = vmatprep.subr.bf16.mxu0 %v1185
    %2249 = vmatpush1.bf16.msra.mxu0 %v1184
    %2250 = vmatprep.subr.bf16.mxu0 %v1181
    %2251 = vmatpush1.bf16.msra.mxu0 %v1180
    %2252 = vmatprep.subr.bf16.mxu0 %v1177
    %2253 = vmatpush1.bf16.msra.mxu0 %v1176
    %2254 = vmatprep.subr.bf16.mxu0 %v1173
    %2255 = vmatpush1.bf16.msra.mxu0 %v1172
    %2256 = vmatprep.subr.bf16.mxu0 %v1169
    %2257 = vmatpush1.bf16.msra.mxu0 %v1168
    %2258 = vmatprep.subr.bf16.mxu0 %v1229
    %2259 = vmatpush2.bf16.msra.mxu0 %v1228
    %2260 = vmatprep.subr.bf16.mxu0 %v1225
    %2261 = vmatpush2.bf16.msra.mxu0 %v1224
    %2262 = vmatprep.subr.bf16.mxu0 %v1221
    %2263 = vmatpush2.bf16.msra.mxu0 %v1220
    %2264 = vmatprep.subr.bf16.mxu0 %v1217
    %2265 = vmatpush2.bf16.msra.mxu0 %v1216
    %2266 = vmatprep.subr.bf16.mxu0 %v1213
    %2267 = vmatpush2.bf16.msra.mxu0 %v1212
    %2268 = vmatprep.subr.bf16.mxu0 %v1209
    %2269 = vmatpush2.bf16.msra.mxu0 %v1208
    %2270 = vmatprep.subr.bf16.mxu0 %v1205
    %2271 = vmatpush2.bf16.msra.mxu0 %v1204
    %2272 = vmatprep.subr.bf16.mxu0 %v1201
    %2273 = vmatpush2.bf16.msra.mxu0 %v1200
    %2274 = vmatprep.mubr.bf16.mxu0 %v270
    %2275 = vmatmul.mubr.bf16.gmra.mxu0 %v269
    %v2276 = vpop.f32.mrf.mxu0
    %v2277 = vadd.f32 %v569, %v2276
    %v2278 = vpop.f32.mrf.mxu0
    %v2279 = vadd.f32 %v573, %v2278
    %v2280 = vpop.f32.mrf.mxu0
    %v2281 = vadd.f32 %v569, %v2280
    %v2282 = vpop.f32.mrf.mxu0
    %v2283 = vadd.f32 %v573, %v2282
    %2284 = vmatprep.mubr.bf16.mxu0 %v277
    %2285 = vmatmul.mubr.bf16.gmra.mxu0 %v276
    %v2286 = vpop.f32.mrf.mxu0
    %v2287 = vadd.f32 %v569, %v2286
    %v2288 = vpop.f32.mrf.mxu0
    %v2289 = vadd.f32 %v573, %v2288
    %v2290 = vpop.f32.mrf.mxu0
    %v2291 = vadd.f32 %v569, %v2290
    %v2292 = vpop.f32.mrf.mxu0
    %v2293 = vadd.f32 %v573, %v2292
    %2294 = vmatprep.mubr.bf16.mxu0 %v284
    %2295 = vmatmul.mubr.bf16.gmra.mxu0 %v283
    %v2296 = vpop.f32.mrf.mxu0
    %v2297 = vadd.f32 %v569, %v2296
    %v2298 = vpop.f32.mrf.mxu0
    %v2299 = vadd.f32 %v573, %v2298
    %v2300 = vpop.f32.mrf.mxu0
    %v2301 = vadd.f32 %v569, %v2300
    %v2302 = vpop.f32.mrf.mxu0
    %v2303 = vadd.f32 %v573, %v2302
    %2304 = vmatprep.mubr.bf16.mxu0 %v291
    %2305 = vmatmul.mubr.bf16.gmra.mxu0 %v290
    %v2306 = vpop.f32.mrf.mxu0
    %v2307 = vadd.f32 %v569, %v2306
    %v2308 = vpop.f32.mrf.mxu0
    %v2309 = vadd.f32 %v573, %v2308
    %v2310 = vpop.f32.mrf.mxu0
    %v2311 = vadd.f32 %v569, %v2310
    %v2312 = vpop.f32.mrf.mxu0
    %v2313 = vadd.f32 %v573, %v2312
    %2314 = vmatprep.mubr.bf16.mxu0 %v298
    %2315 = vmatmul.mubr.bf16.gmra.mxu0 %v297
    %v2316 = vpop.f32.mrf.mxu0
    %v2317 = vadd.f32 %v569, %v2316
    %v2318 = vpop.f32.mrf.mxu0
    %v2319 = vadd.f32 %v573, %v2318
    %v2320 = vpop.f32.mrf.mxu0
    %v2321 = vadd.f32 %v569, %v2320
    %v2322 = vpop.f32.mrf.mxu0
    %v2323 = vadd.f32 %v573, %v2322
    %2324 = vmatprep.mubr.bf16.mxu0 %v305
    %2325 = vmatmul.mubr.bf16.gmra.mxu0 %v304
    %v2326 = vpop.f32.mrf.mxu0
    %v2327 = vadd.f32 %v569, %v2326
    %v2328 = vpop.f32.mrf.mxu0
    %v2329 = vadd.f32 %v573, %v2328
    %v2330 = vpop.f32.mrf.mxu0
    %v2331 = vadd.f32 %v569, %v2330
    %v2332 = vpop.f32.mrf.mxu0
    %v2333 = vadd.f32 %v573, %v2332
    %2334 = vmatprep.mubr.bf16.mxu0 %v312
    %2335 = vmatmul.mubr.bf16.gmra.mxu0 %v311
    %v2336 = vpop.f32.mrf.mxu0
    %v2337 = vadd.f32 %v569, %v2336
    %v2338 = vpop.f32.mrf.mxu0
    %v2339 = vadd.f32 %v573, %v2338
    %v2340 = vpop.f32.mrf.mxu0
    %v2341 = vadd.f32 %v569, %v2340
    %v2342 = vpop.f32.mrf.mxu0
    %v2343 = vadd.f32 %v573, %v2342
    %2344 = vmatprep.mubr.bf16.mxu0 %v319
    %2345 = vmatmul.mubr.bf16.gmra.mxu0 %v318
    %v2346 = vpop.f32.mrf.mxu0
    %v2347 = vadd.f32 %v569, %v2346
    %v2348 = vpop.f32.mrf.mxu0
    %v2349 = vadd.f32 %v573, %v2348
    %v2350 = vpop.f32.mrf.mxu0
    %v2351 = vadd.f32 %v569, %v2350
    %v2352 = vpop.f32.mrf.mxu0
    %v2353 = vadd.f32 %v573, %v2352
    %2354 = vmatprep.mubr.bf16.mxu0 %v326
    %2355 = vmatmul.mubr.bf16.gmra.mxu0 %v325
    %v2356 = vpop.f32.mrf.mxu0
    %v2357 = vadd.f32 %v569, %v2356
    %v2358 = vpop.f32.mrf.mxu0
    %v2359 = vadd.f32 %v573, %v2358
    %v2360 = vpop.f32.mrf.mxu0
    %v2361 = vadd.f32 %v569, %v2360
    %v2362 = vpop.f32.mrf.mxu0
    %v2363 = vadd.f32 %v573, %v2362
    %2364 = vmatprep.mubr.bf16.mxu0 %v333
    %2365 = vmatmul.mubr.bf16.gmra.mxu0 %v332
    %v2366 = vpop.f32.mrf.mxu0
    %v2367 = vadd.f32 %v569, %v2366
    %v2368 = vpop.f32.mrf.mxu0
    %v2369 = vadd.f32 %v573, %v2368
    %v2370 = vpop.f32.mrf.mxu0
    %v2371 = vadd.f32 %v569, %v2370
    %v2372 = vpop.f32.mrf.mxu0
    %v2373 = vadd.f32 %v573, %v2372
    %2374 = vmatprep.mubr.bf16.mxu0 %v340
    %2375 = vmatmul.mubr.bf16.gmra.mxu0 %v339
    %v2376 = vpop.f32.mrf.mxu0
    %v2377 = vadd.f32 %v569, %v2376
    %v2378 = vpop.f32.mrf.mxu0
    %v2379 = vadd.f32 %v573, %v2378
    %v2380 = vpop.f32.mrf.mxu0
    %v2381 = vadd.f32 %v569, %v2380
    %v2382 = vpop.f32.mrf.mxu0
    %v2383 = vadd.f32 %v573, %v2382
    %2384 = vmatprep.mubr.bf16.mxu0 %v347
    %2385 = vmatmul.mubr.bf16.gmra.mxu0 %v346
    %v2386 = vpop.f32.mrf.mxu0
    %v2387 = vadd.f32 %v569, %v2386
    %v2388 = vpop.f32.mrf.mxu0
    %v2389 = vadd.f32 %v573, %v2388
    %v2390 = vpop.f32.mrf.mxu0
    %v2391 = vadd.f32 %v569, %v2390
    %v2392 = vpop.f32.mrf.mxu0
    %v2393 = vadd.f32 %v573, %v2392
    %2394 = vmatprep.mubr.bf16.mxu0 %v354
    %2395 = vmatmul.mubr.bf16.gmra.mxu0 %v353
    %v2396 = vpop.f32.mrf.mxu0
    %v2397 = vadd.f32 %v569, %v2396
    %v2398 = vpop.f32.mrf.mxu0
    %v2399 = vadd.f32 %v573, %v2398
    %v2400 = vpop.f32.mrf.mxu0
    %v2401 = vpop.f32.mrf.mxu0
    %2402 = vdwg.mxu0
    %2403 = vmatprep.subr.bf16.mxu0 %v1261
    %2404 = vmatpush1.bf16.msra.mxu0 %v1260
    %2405 = vmatprep.subr.bf16.mxu0 %v1257
    %2406 = vmatpush1.bf16.msra.mxu0 %v1256
    %2407 = vmatprep.subr.bf16.mxu0 %v1253
    %2408 = vmatpush1.bf16.msra.mxu0 %v1252
    %2409 = vmatprep.subr.bf16.mxu0 %v1249
    %2410 = vmatpush1.bf16.msra.mxu0 %v1248
    %2411 = vmatprep.subr.bf16.mxu0 %v1245
    %2412 = vmatpush1.bf16.msra.mxu0 %v1244
    %2413 = vmatprep.subr.bf16.mxu0 %v1241
    %2414 = vmatpush1.bf16.msra.mxu0 %v1240
    %2415 = vmatprep.subr.bf16.mxu0 %v1237
    %2416 = vmatpush1.bf16.msra.mxu0 %v1236
    %2417 = vmatprep.subr.bf16.mxu0 %v1233
    %2418 = vmatpush1.bf16.msra.mxu0 %v1232
    %2419 = vmatprep.subr.bf16.mxu0 %v1293
    %2420 = vmatpush2.bf16.msra.mxu0 %v1292
    %2421 = vmatprep.subr.bf16.mxu0 %v1289
    %2422 = vmatpush2.bf16.msra.mxu0 %v1288
    %2423 = vmatprep.subr.bf16.mxu0 %v1285
    %2424 = vmatpush2.bf16.msra.mxu0 %v1284
    %2425 = vmatprep.subr.bf16.mxu0 %v1281
    %2426 = vmatpush2.bf16.msra.mxu0 %v1280
    %2427 = vmatprep.subr.bf16.mxu0 %v1277
    %2428 = vmatpush2.bf16.msra.mxu0 %v1276
    %2429 = vmatprep.subr.bf16.mxu0 %v1273
    %2430 = vmatpush2.bf16.msra.mxu0 %v1272
    %2431 = vmatprep.subr.bf16.mxu0 %v1269
    %2432 = vmatpush2.bf16.msra.mxu0 %v1268
    %2433 = vmatprep.subr.bf16.mxu0 %v1265
    %2434 = vmatpush2.bf16.msra.mxu0 %v1264
    %2435 = vmatprep.mubr.bf16.mxu0 %v272
    %2436 = vmatmul.mubr.bf16.gmra.mxu0 %v271
    %v2437 = vpop.f32.mrf.mxu0
    %v2438 = vadd.f32 %v2277, %v2437
    %v2439 = vpop.f32.mrf.mxu0
    %v2440 = vadd.f32 %v2279, %v2439
    %v2441 = vpop.f32.mrf.mxu0
    %v2442 = vadd.f32 %v2281, %v2441
    %v2443 = vpop.f32.mrf.mxu0
    %v2444 = vadd.f32 %v2283, %v2443
    %2445 = vmatprep.mubr.bf16.mxu0 %v279
    %2446 = vmatmul.mubr.bf16.gmra.mxu0 %v278
    %v2447 = vpop.f32.mrf.mxu0
    %v2448 = vadd.f32 %v2287, %v2447
    %v2449 = vpop.f32.mrf.mxu0
    %v2450 = vadd.f32 %v2289, %v2449
    %v2451 = vpop.f32.mrf.mxu0
    %v2452 = vadd.f32 %v2291, %v2451
    %v2453 = vpop.f32.mrf.mxu0
    %v2454 = vadd.f32 %v2293, %v2453
    %2455 = vmatprep.mubr.bf16.mxu0 %v286
    %2456 = vmatmul.mubr.bf16.gmra.mxu0 %v285
    %v2457 = vpop.f32.mrf.mxu0
    %v2458 = vadd.f32 %v2297, %v2457
    %v2459 = vpop.f32.mrf.mxu0
    %v2460 = vadd.f32 %v2299, %v2459
    %v2461 = vpop.f32.mrf.mxu0
    %v2462 = vadd.f32 %v2301, %v2461
    %v2463 = vpop.f32.mrf.mxu0
    %v2464 = vadd.f32 %v2303, %v2463
    %2465 = vmatprep.mubr.bf16.mxu0 %v293
    %2466 = vmatmul.mubr.bf16.gmra.mxu0 %v292
    %v2467 = vpop.f32.mrf.mxu0
    %v2468 = vadd.f32 %v2307, %v2467
    %v2469 = vpop.f32.mrf.mxu0
    %v2470 = vadd.f32 %v2309, %v2469
    %v2471 = vpop.f32.mrf.mxu0
    %v2472 = vadd.f32 %v2311, %v2471
    %v2473 = vpop.f32.mrf.mxu0
    %v2474 = vadd.f32 %v2313, %v2473
    %2475 = vmatprep.mubr.bf16.mxu0 %v300
    %2476 = vmatmul.mubr.bf16.gmra.mxu0 %v299
    %v2477 = vpop.f32.mrf.mxu0
    %v2478 = vadd.f32 %v2317, %v2477
    %v2479 = vpop.f32.mrf.mxu0
    %v2480 = vadd.f32 %v2319, %v2479
    %v2481 = vpop.f32.mrf.mxu0
    %v2482 = vadd.f32 %v2321, %v2481
    %v2483 = vpop.f32.mrf.mxu0
    %v2484 = vadd.f32 %v2323, %v2483
    %2485 = vmatprep.mubr.bf16.mxu0 %v307
    %2486 = vmatmul.mubr.bf16.gmra.mxu0 %v306
    %v2487 = vpop.f32.mrf.mxu0
    %v2488 = vadd.f32 %v2327, %v2487
    %v2489 = vpop.f32.mrf.mxu0
    %v2490 = vadd.f32 %v2329, %v2489
    %v2491 = vpop.f32.mrf.mxu0
    %v2492 = vadd.f32 %v2331, %v2491
    %v2493 = vpop.f32.mrf.mxu0
    %v2494 = vadd.f32 %v2333, %v2493
    %2495 = vmatprep.mubr.bf16.mxu0 %v314
    %2496 = vmatmul.mubr.bf16.gmra.mxu0 %v313
    %v2497 = vpop.f32.mrf.mxu0
    %v2498 = vadd.f32 %v2337, %v2497
    %v2499 = vpop.f32.mrf.mxu0
    %v2500 = vadd.f32 %v2339, %v2499
    %v2501 = vpop.f32.mrf.mxu0
    %v2502 = vadd.f32 %v2341, %v2501
    %v2503 = vpop.f32.mrf.mxu0
    %v2504 = vadd.f32 %v2343, %v2503
    %2505 = vmatprep.mubr.bf16.mxu0 %v321
    %2506 = vmatmul.mubr.bf16.gmra.mxu0 %v320
    %v2507 = vpop.f32.mrf.mxu0
    %v2508 = vadd.f32 %v2347, %v2507
    %v2509 = vpop.f32.mrf.mxu0
    %v2510 = vadd.f32 %v2349, %v2509
    %v2511 = vpop.f32.mrf.mxu0
    %v2512 = vadd.f32 %v2351, %v2511
    %v2513 = vpop.f32.mrf.mxu0
    %v2514 = vadd.f32 %v2353, %v2513
    %2515 = vmatprep.mubr.bf16.mxu0 %v328
    %2516 = vmatmul.mubr.bf16.gmra.mxu0 %v327
    %v2517 = vpop.f32.mrf.mxu0
    %v2518 = vadd.f32 %v2357, %v2517
    %v2519 = vpop.f32.mrf.mxu0
    %v2520 = vadd.f32 %v2359, %v2519
    %v2521 = vpop.f32.mrf.mxu0
    %v2522 = vadd.f32 %v2361, %v2521
    %v2523 = vpop.f32.mrf.mxu0
    %v2524 = vadd.f32 %v2363, %v2523
    %2525 = vmatprep.mubr.bf16.mxu0 %v335
    %2526 = vmatmul.mubr.bf16.gmra.mxu0 %v334
    %v2527 = vpop.f32.mrf.mxu0
    %v2528 = vadd.f32 %v2367, %v2527
    %v2529 = vpop.f32.mrf.mxu0
    %v2530 = vadd.f32 %v2369, %v2529
    %v2531 = vpop.f32.mrf.mxu0
    %v2532 = vadd.f32 %v2371, %v2531
    %v2533 = vpop.f32.mrf.mxu0
    %v2534 = vadd.f32 %v2373, %v2533
    %2535 = vmatprep.mubr.bf16.mxu0 %v342
    %2536 = vmatmul.mubr.bf16.gmra.mxu0 %v341
    %v2537 = vpop.f32.mrf.mxu0
    %v2538 = vadd.f32 %v2377, %v2537
    %v2539 = vpop.f32.mrf.mxu0
    %v2540 = vadd.f32 %v2379, %v2539
    %v2541 = vpop.f32.mrf.mxu0
    %v2542 = vadd.f32 %v2381, %v2541
    %v2543 = vpop.f32.mrf.mxu0
    %v2544 = vadd.f32 %v2383, %v2543
    %2545 = vmatprep.mubr.bf16.mxu0 %v349
    %2546 = vmatmul.mubr.bf16.gmra.mxu0 %v348
    %v2547 = vpop.f32.mrf.mxu0
    %v2548 = vadd.f32 %v2387, %v2547
    %v2549 = vpop.f32.mrf.mxu0
    %v2550 = vadd.f32 %v2389, %v2549
    %v2551 = vpop.f32.mrf.mxu0
    %v2552 = vadd.f32 %v2391, %v2551
    %v2553 = vpop.f32.mrf.mxu0
    %v2554 = vadd.f32 %v2393, %v2553
    %2555 = vmatprep.mubr.bf16.mxu0 %v356
    %2556 = vmatmul.mubr.bf16.gmra.mxu0 %v355
    %v2557 = vpop.f32.mrf.mxu0
    %v2558 = vadd.f32 %v2397, %v2557
    %v2559 = vpop.f32.mrf.mxu0
    %v2560 = vadd.f32 %v2399, %v2559
    %v2561 = vpop.f32.mrf.mxu0
    %v2562 = vpop.f32.mrf.mxu0
    %2563 = vdwg.mxu0
    %2564 = vmatprep.subr.bf16.mxu0 %v1325
    %2565 = vmatpush1.bf16.msra.mxu0 %v1324
    %2566 = vmatprep.subr.bf16.mxu0 %v1321
    %2567 = vmatpush1.bf16.msra.mxu0 %v1320
    %2568 = vmatprep.subr.bf16.mxu0 %v1317
    %2569 = vmatpush1.bf16.msra.mxu0 %v1316
    %2570 = vmatprep.subr.bf16.mxu0 %v1313
    %2571 = vmatpush1.bf16.msra.mxu0 %v1312
    %2572 = vmatprep.subr.bf16.mxu0 %v1309
    %2573 = vmatpush1.bf16.msra.mxu0 %v1308
    %2574 = vmatprep.subr.bf16.mxu0 %v1305
    %2575 = vmatpush1.bf16.msra.mxu0 %v1304
    %2576 = vmatprep.subr.bf16.mxu0 %v1301
    %2577 = vmatpush1.bf16.msra.mxu0 %v1300
    %2578 = vmatprep.subr.bf16.mxu0 %v1297
    %2579 = vmatpush1.bf16.msra.mxu0 %v1296
    %2580 = vmatprep.subr.bf16.mxu0 %v1357
    %2581 = vmatpush2.bf16.msra.mxu0 %v1356
    %2582 = vmatprep.subr.bf16.mxu0 %v1353
    %2583 = vmatpush2.bf16.msra.mxu0 %v1352
    %2584 = vmatprep.subr.bf16.mxu0 %v1349
    %2585 = vmatpush2.bf16.msra.mxu0 %v1348
    %2586 = vmatprep.subr.bf16.mxu0 %v1345
    %2587 = vmatpush2.bf16.msra.mxu0 %v1344
    %2588 = vmatprep.subr.bf16.mxu0 %v1341
    %2589 = vmatpush2.bf16.msra.mxu0 %v1340
    %2590 = vmatprep.subr.bf16.mxu0 %v1337
    %2591 = vmatpush2.bf16.msra.mxu0 %v1336
    %2592 = vmatprep.subr.bf16.mxu0 %v1333
    %2593 = vmatpush2.bf16.msra.mxu0 %v1332
    %2594 = vmatprep.subr.bf16.mxu0 %v1329
    %2595 = vmatpush2.bf16.msra.mxu0 %v1328
    %2596 = vmatprep.mubr.bf16.mxu0 %v274
    %2597 = vmatmul.mubr.bf16.gmra.mxu0 %v273
    %v2598 = vpop.f32.mrf.mxu0
    %v2599 = vadd.f32 %v2438, %v2598
    %v2600 = vpop.f32.mrf.mxu0
    %v2601 = vadd.f32 %v2440, %v2600
    %v2602 = vpop.f32.mrf.mxu0
    %v2603 = vadd.f32 %v2442, %v2602
    %v2604 = vpop.f32.mrf.mxu0
    %v2605 = vadd.f32 %v2444, %v2604
    %2606 = vmatprep.mubr.bf16.mxu0 %v281
    %2607 = vmatmul.mubr.bf16.gmra.mxu0 %v280
    %v2608 = vpop.f32.mrf.mxu0
    %v2609 = vadd.f32 %v2448, %v2608
    %v2610 = vpop.f32.mrf.mxu0
    %v2611 = vadd.f32 %v2450, %v2610
    %v2612 = vpop.f32.mrf.mxu0
    %v2613 = vadd.f32 %v2452, %v2612
    %v2614 = vpop.f32.mrf.mxu0
    %v2615 = vadd.f32 %v2454, %v2614
    %2616 = vmatprep.mubr.bf16.mxu0 %v288
    %2617 = vmatmul.mubr.bf16.gmra.mxu0 %v287
    %v2618 = vpop.f32.mrf.mxu0
    %v2619 = vadd.f32 %v2458, %v2618
    %v2620 = vpop.f32.mrf.mxu0
    %v2621 = vadd.f32 %v2460, %v2620
    %v2622 = vpop.f32.mrf.mxu0
    %v2623 = vadd.f32 %v2462, %v2622
    %v2624 = vpop.f32.mrf.mxu0
    %v2625 = vadd.f32 %v2464, %v2624
    %2626 = vmatprep.mubr.bf16.mxu0 %v295
    %2627 = vmatmul.mubr.bf16.gmra.mxu0 %v294
    %v2628 = vpop.f32.mrf.mxu0
    %v2629 = vadd.f32 %v2468, %v2628
    %v2630 = vpop.f32.mrf.mxu0
    %v2631 = vadd.f32 %v2470, %v2630
    %v2632 = vpop.f32.mrf.mxu0
    %v2633 = vadd.f32 %v2472, %v2632
    %v2634 = vpop.f32.mrf.mxu0
    %v2635 = vadd.f32 %v2474, %v2634
    %2636 = vmatprep.mubr.bf16.mxu0 %v302
    %2637 = vmatmul.mubr.bf16.gmra.mxu0 %v301
    %v2638 = vpop.f32.mrf.mxu0
    %v2639 = vadd.f32 %v2478, %v2638
    %v2640 = vpop.f32.mrf.mxu0
    %v2641 = vadd.f32 %v2480, %v2640
    %v2642 = vpop.f32.mrf.mxu0
    %v2643 = vadd.f32 %v2482, %v2642
    %v2644 = vpop.f32.mrf.mxu0
    %v2645 = vadd.f32 %v2484, %v2644
    %2646 = vmatprep.mubr.bf16.mxu0 %v309
    %2647 = vmatmul.mubr.bf16.gmra.mxu0 %v308
    %v2648 = vpop.f32.mrf.mxu0
    %v2649 = vadd.f32 %v2488, %v2648
    %v2650 = vpop.f32.mrf.mxu0
    %v2651 = vadd.f32 %v2490, %v2650
    %v2652 = vpop.f32.mrf.mxu0
    %v2653 = vadd.f32 %v2492, %v2652
    %v2654 = vpop.f32.mrf.mxu0
    %v2655 = vadd.f32 %v2494, %v2654
    %2656 = vmatprep.mubr.bf16.mxu0 %v316
    %2657 = vmatmul.mubr.bf16.gmra.mxu0 %v315
    %v2658 = vpop.f32.mrf.mxu0
    %v2659 = vadd.f32 %v2498, %v2658
    %v2660 = vpop.f32.mrf.mxu0
    %v2661 = vadd.f32 %v2500, %v2660
    %v2662 = vpop.f32.mrf.mxu0
    %v2663 = vadd.f32 %v2502, %v2662
    %v2664 = vpop.f32.mrf.mxu0
    %v2665 = vadd.f32 %v2504, %v2664
    %2666 = vmatprep.mubr.bf16.mxu0 %v323
    %2667 = vmatmul.mubr.bf16.gmra.mxu0 %v322
    %v2668 = vpop.f32.mrf.mxu0
    %v2669 = vadd.f32 %v2508, %v2668
    %v2670 = vpop.f32.mrf.mxu0
    %v2671 = vadd.f32 %v2510, %v2670
    %v2672 = vpop.f32.mrf.mxu0
    %v2673 = vadd.f32 %v2512, %v2672
    %v2674 = vpop.f32.mrf.mxu0
    %v2675 = vadd.f32 %v2514, %v2674
    %2676 = vmatprep.mubr.bf16.mxu0 %v330
    %2677 = vmatmul.mubr.bf16.gmra.mxu0 %v329
    %v2678 = vpop.f32.mrf.mxu0
    %v2679 = vadd.f32 %v2518, %v2678
    %v2680 = vpop.f32.mrf.mxu0
    %v2681 = vadd.f32 %v2520, %v2680
    %v2682 = vpop.f32.mrf.mxu0
    %v2683 = vadd.f32 %v2522, %v2682
    %v2684 = vpop.f32.mrf.mxu0
    %v2685 = vadd.f32 %v2524, %v2684
    %2686 = vmatprep.mubr.bf16.mxu0 %v337
    %2687 = vmatmul.mubr.bf16.gmra.mxu0 %v336
    %v2688 = vpop.f32.mrf.mxu0
    %v2689 = vadd.f32 %v2528, %v2688
    %v2690 = vpop.f32.mrf.mxu0
    %v2691 = vadd.f32 %v2530, %v2690
    %v2692 = vpop.f32.mrf.mxu0
    %v2693 = vadd.f32 %v2532, %v2692
    %v2694 = vpop.f32.mrf.mxu0
    %v2695 = vadd.f32 %v2534, %v2694
    %2696 = vmatprep.mubr.bf16.mxu0 %v344
    %2697 = vmatmul.mubr.bf16.gmra.mxu0 %v343
    %v2698 = vpop.f32.mrf.mxu0
    %v2699 = vadd.f32 %v2538, %v2698
    %v2700 = vpop.f32.mrf.mxu0
    %v2701 = vadd.f32 %v2540, %v2700
    %v2702 = vpop.f32.mrf.mxu0
    %v2703 = vadd.f32 %v2542, %v2702
    %v2704 = vpop.f32.mrf.mxu0
    %v2705 = vadd.f32 %v2544, %v2704
    %2706 = vmatprep.mubr.bf16.mxu0 %v351
    %2707 = vmatmul.mubr.bf16.gmra.mxu0 %v350
    %v2708 = vpop.f32.mrf.mxu0
    %v2709 = vadd.f32 %v2548, %v2708
    %v2710 = vpop.f32.mrf.mxu0
    %v2711 = vadd.f32 %v2550, %v2710
    %v2712 = vpop.f32.mrf.mxu0
    %v2713 = vadd.f32 %v2552, %v2712
    %v2714 = vpop.f32.mrf.mxu0
    %v2715 = vadd.f32 %v2554, %v2714
    %2716 = vmatprep.mubr.bf16.mxu0 %v358
    %2717 = vmatmul.mubr.bf16.gmra.mxu0 %v357
    %v2718 = vpop.f32.mrf.mxu0
    %v2719 = vadd.f32 %v2558, %v2718
    %v2720 = vpop.f32.mrf.mxu0
    %v2721 = vadd.f32 %v2560, %v2720
    %v2722 = vpop.f32.mrf.mxu0
    %v2723 = vpop.f32.mrf.mxu0
    %2724 = vdwg.mxu0
    %2725 = vmatprep.subr.bf16.mxu0 0
    %2726 = vmatpush1.bf16.msra.mxu0 0
    %2727 = vmatprep.subr.bf16.mxu0 0
    %2728 = vmatpush1.bf16.msra.mxu0 0
    %2729 = vmatprep.subr.bf16.mxu0 0
    %2730 = vmatpush1.bf16.msra.mxu0 0
    %2731 = vmatprep.subr.bf16.mxu0 0
    %2732 = vmatpush1.bf16.msra.mxu0 0
    %2733 = vmatprep.subr.bf16.mxu0 0
    %2734 = vmatpush1.bf16.msra.mxu0 0
    %2735 = vmatprep.subr.bf16.mxu0 0
    %2736 = vmatpush1.bf16.msra.mxu0 0
    %2737 = vmatprep.subr.bf16.mxu0 0
    %2738 = vmatpush1.bf16.msra.mxu0 0
    %2739 = vmatprep.subr.bf16.mxu0 %v1361
    %2740 = vmatpush1.bf16.msra.mxu0 %v1360
    %2741 = vmatprep.subr.bf16.mxu0 0
    %2742 = vmatpush2.bf16.msra.mxu0 0
    %2743 = vmatprep.subr.bf16.mxu0 0
    %2744 = vmatpush2.bf16.msra.mxu0 0
    %2745 = vmatprep.subr.bf16.mxu0 0
    %2746 = vmatpush2.bf16.msra.mxu0 0
    %2747 = vmatprep.subr.bf16.mxu0 0
    %2748 = vmatpush2.bf16.msra.mxu0 0
    %2749 = vmatprep.subr.bf16.mxu0 0
    %2750 = vmatpush2.bf16.msra.mxu0 0
    %2751 = vmatprep.subr.bf16.mxu0 0
    %2752 = vmatpush2.bf16.msra.mxu0 0
    %2753 = vmatprep.subr.bf16.mxu0 0
    %2754 = vmatpush2.bf16.msra.mxu0 0
    %2755 = vmatprep.subr.bf16.mxu0 0
    %2756 = vmatpush2.bf16.msra.mxu0 0
    %2757 = vmatprep.mubr.bf16.mxu0 0
    %2758 = vmatmul.mubr.bf16.gmra.mxu0 %v1560
    %v2759 = vpop.f32.mrf.mxu0
    %v2760 = vadd.f32 %v2599, %v2759
    %v2761 = vpop.f32.mrf.mxu0
    %v2762 = vadd.f32 %v2601, %v2761
    %v2763 = vpop.f32.mrf.mxu0
    %v2764 = vadd.f32 %v2603, %v2763
    %v2765 = vpop.f32.mrf.mxu0
    %v2766 = vadd.f32 %v2605, %v2765
    %2767 = vmatprep.mubr.bf16.mxu0 0
    %2768 = vmatmul.mubr.bf16.gmra.mxu0 %v1563
    %v2769 = vpop.f32.mrf.mxu0
    %v2770 = vadd.f32 %v2609, %v2769
    %v2771 = vpop.f32.mrf.mxu0
    %v2772 = vadd.f32 %v2611, %v2771
    %v2773 = vpop.f32.mrf.mxu0
    %v2774 = vadd.f32 %v2613, %v2773
    %v2775 = vpop.f32.mrf.mxu0
    %v2776 = vadd.f32 %v2615, %v2775
    %2777 = vmatprep.mubr.bf16.mxu0 0
    %2778 = vmatmul.mubr.bf16.gmra.mxu0 %v1566
    %v2779 = vpop.f32.mrf.mxu0
    %v2780 = vadd.f32 %v2619, %v2779
    %v2781 = vpop.f32.mrf.mxu0
    %v2782 = vadd.f32 %v2621, %v2781
    %v2783 = vpop.f32.mrf.mxu0
    %v2784 = vadd.f32 %v2623, %v2783
    %v2785 = vpop.f32.mrf.mxu0
    %v2786 = vadd.f32 %v2625, %v2785
    %2787 = vmatprep.mubr.bf16.mxu0 0
    %2788 = vmatmul.mubr.bf16.gmra.mxu0 %v1569
    %v2789 = vpop.f32.mrf.mxu0
    %v2790 = vadd.f32 %v2629, %v2789
    %v2791 = vpop.f32.mrf.mxu0
    %v2792 = vadd.f32 %v2631, %v2791
    %v2793 = vpop.f32.mrf.mxu0
    %v2794 = vadd.f32 %v2633, %v2793
    %v2795 = vpop.f32.mrf.mxu0
    %v2796 = vadd.f32 %v2635, %v2795
    %2797 = vmatprep.mubr.bf16.mxu0 0
    %2798 = vmatmul.mubr.bf16.gmra.mxu0 %v1572
    %v2799 = vpop.f32.mrf.mxu0
    %v2800 = vadd.f32 %v2639, %v2799
    %v2801 = vpop.f32.mrf.mxu0
    %v2802 = vadd.f32 %v2641, %v2801
    %v2803 = vpop.f32.mrf.mxu0
    %v2804 = vadd.f32 %v2643, %v2803
    %v2805 = vpop.f32.mrf.mxu0
    %v2806 = vadd.f32 %v2645, %v2805
    %2807 = vmatprep.mubr.bf16.mxu0 0
    %2808 = vmatmul.mubr.bf16.gmra.mxu0 %v1575
    %v2809 = vpop.f32.mrf.mxu0
    %v2810 = vadd.f32 %v2649, %v2809
    %v2811 = vpop.f32.mrf.mxu0
    %v2812 = vadd.f32 %v2651, %v2811
    %v2813 = vpop.f32.mrf.mxu0
    %v2814 = vadd.f32 %v2653, %v2813
    %v2815 = vpop.f32.mrf.mxu0
    %v2816 = vadd.f32 %v2655, %v2815
    %2817 = vmatprep.mubr.bf16.mxu0 0
    %2818 = vmatmul.mubr.bf16.gmra.mxu0 %v1578
    %v2819 = vpop.f32.mrf.mxu0
    %v2820 = vadd.f32 %v2659, %v2819
    %v2821 = vpop.f32.mrf.mxu0
    %v2822 = vadd.f32 %v2661, %v2821
    %v2823 = vpop.f32.mrf.mxu0
    %v2824 = vadd.f32 %v2663, %v2823
    %v2825 = vpop.f32.mrf.mxu0
    %v2826 = vadd.f32 %v2665, %v2825
    %2827 = vmatprep.mubr.bf16.mxu0 0
    %2828 = vmatmul.mubr.bf16.gmra.mxu0 %v1581
    %v2829 = vpop.f32.mrf.mxu0
    %v2830 = vadd.f32 %v2669, %v2829
    %v2831 = vpop.f32.mrf.mxu0
    %v2832 = vadd.f32 %v2671, %v2831
    %v2833 = vpop.f32.mrf.mxu0
    %v2834 = vadd.f32 %v2673, %v2833
    %v2835 = vpop.f32.mrf.mxu0
    %v2836 = vadd.f32 %v2675, %v2835
    %2837 = vmatprep.mubr.bf16.mxu0 0
    %2838 = vmatmul.mubr.bf16.gmra.mxu0 %v1584
    %v2839 = vpop.f32.mrf.mxu0
    %v2840 = vadd.f32 %v2679, %v2839
    %v2841 = vpop.f32.mrf.mxu0
    %v2842 = vadd.f32 %v2681, %v2841
    %v2843 = vpop.f32.mrf.mxu0
    %v2844 = vadd.f32 %v2683, %v2843
    %v2845 = vpop.f32.mrf.mxu0
    %v2846 = vadd.f32 %v2685, %v2845
    %2847 = vmatprep.mubr.bf16.mxu0 0
    %2848 = vmatmul.mubr.bf16.gmra.mxu0 %v1587
    %v2849 = vpop.f32.mrf.mxu0
    %v2850 = vadd.f32 %v2689, %v2849
    %v2851 = vpop.f32.mrf.mxu0
    %v2852 = vadd.f32 %v2691, %v2851
    %v2853 = vpop.f32.mrf.mxu0
    %v2854 = vadd.f32 %v2693, %v2853
    %v2855 = vpop.f32.mrf.mxu0
    %v2856 = vadd.f32 %v2695, %v2855
    %2857 = vmatprep.mubr.bf16.mxu0 0
    %2858 = vmatmul.mubr.bf16.gmra.mxu0 %v1590
    %v2859 = vpop.f32.mrf.mxu0
    %v2860 = vadd.f32 %v2699, %v2859
    %v2861 = vpop.f32.mrf.mxu0
    %v2862 = vadd.f32 %v2701, %v2861
    %v2863 = vpop.f32.mrf.mxu0
    %v2864 = vadd.f32 %v2703, %v2863
    %v2865 = vpop.f32.mrf.mxu0
    %v2866 = vadd.f32 %v2705, %v2865
    %2867 = vmatprep.mubr.bf16.mxu0 0
    %2868 = vmatmul.mubr.bf16.gmra.mxu0 %v1593
    %v2869 = vpop.f32.mrf.mxu0
    %v2870 = vadd.f32 %v2709, %v2869
    %v2871 = vpop.f32.mrf.mxu0
    %v2872 = vadd.f32 %v2711, %v2871
    %v2873 = vpop.f32.mrf.mxu0
    %v2874 = vadd.f32 %v2713, %v2873
    %v2875 = vpop.f32.mrf.mxu0
    %v2876 = vadd.f32 %v2715, %v2875
    %2877 = vmatprep.mubr.bf16.mxu0 0
    %2878 = vmatmul.mubr.bf16.gmra.mxu0 %v1596
    %v2879 = vpop.f32.mrf.mxu0
    %v2880 = vadd.f32 %v2719, %v2879
    %v2881 = vpop.f32.mrf.mxu0
    %v2882 = vadd.f32 %v2721, %v2881
    %v2883 = vpop.f32.mrf.mxu0
    %v2884 = vpop.f32.mrf.mxu0
    %2885 = vdwg.mxu0
    %v2886 = vmax.f32 %v2116, 0.0
    %v2887 = vmax.f32 %v2118, 0.0
    %v2888 = vmax.f32 %v2760, 0.0
    %v2889 = vmax.f32 %v2762, 0.0
    %v2890 = vmax.f32 %v2120, 0.0
    %v2891 = vmax.f32 %v2122, 0.0
    %v2892 = vmax.f32 %v2764, 0.0
    %v2893 = vmax.f32 %v2766, 0.0
    %v2894 = vmax.f32 %v2126, 0.0
    %v2895 = vmax.f32 %v2128, 0.0
    %v2896 = vmax.f32 %v2770, 0.0
    %v2897 = vmax.f32 %v2772, 0.0
    %v2898 = vmax.f32 %v2130, 0.0
    %v2899 = vmax.f32 %v2132, 0.0
    %v2900 = vmax.f32 %v2774, 0.0
    %v2901 = vmax.f32 %v2776, 0.0
    %v2902 = vmax.f32 %v2136, 0.0
    %v2903 = vmax.f32 %v2138, 0.0
    %v2904 = vmax.f32 %v2780, 0.0
    %v2905 = vmax.f32 %v2782, 0.0
    %v2906 = vmax.f32 %v2140, 0.0
    %v2907 = vmax.f32 %v2142, 0.0
    %v2908 = vmax.f32 %v2784, 0.0
    %v2909 = vmax.f32 %v2786, 0.0
    %v2910 = vmax.f32 %v2146, 0.0
    %v2911 = vmax.f32 %v2148, 0.0
    %v2912 = vmax.f32 %v2790, 0.0
    %v2913 = vmax.f32 %v2792, 0.0
    %v2914 = vmax.f32 %v2150, 0.0
    %v2915 = vmax.f32 %v2152, 0.0
    %v2916 = vmax.f32 %v2794, 0.0
    %v2917 = vmax.f32 %v2796, 0.0
    %v2918 = vmax.f32 %v2156, 0.0
    %v2919 = vmax.f32 %v2158, 0.0
    %v2920 = vmax.f32 %v2800, 0.0
    %v2921 = vmax.f32 %v2802, 0.0
    %v2922 = vmax.f32 %v2160, 0.0
    %v2923 = vmax.f32 %v2162, 0.0
    %v2924 = vmax.f32 %v2804, 0.0
    %v2925 = vmax.f32 %v2806, 0.0
    %v2926 = vmax.f32 %v2166, 0.0
    %v2927 = vmax.f32 %v2168, 0.0
    %v2928 = vmax.f32 %v2810, 0.0
    %v2929 = vmax.f32 %v2812, 0.0
    %v2930 = vmax.f32 %v2170, 0.0
    %v2931 = vmax.f32 %v2172, 0.0
    %v2932 = vmax.f32 %v2814, 0.0
    %v2933 = vmax.f32 %v2816, 0.0
    %v2934 = vmax.f32 %v2176, 0.0
    %v2935 = vmax.f32 %v2178, 0.0
    %v2936 = vmax.f32 %v2820, 0.0
    %v2937 = vmax.f32 %v2822, 0.0
    %v2938 = vmax.f32 %v2180, 0.0
    %v2939 = vmax.f32 %v2182, 0.0
    %v2940 = vmax.f32 %v2824, 0.0
    %v2941 = vmax.f32 %v2826, 0.0
    %v2942 = vmax.f32 %v2186, 0.0
    %v2943 = vmax.f32 %v2188, 0.0
    %v2944 = vmax.f32 %v2830, 0.0
    %v2945 = vmax.f32 %v2832, 0.0
    %v2946 = vmax.f32 %v2190, 0.0
    %v2947 = vmax.f32 %v2192, 0.0
    %v2948 = vmax.f32 %v2834, 0.0
    %v2949 = vmax.f32 %v2836, 0.0
    %v2950 = vmax.f32 %v2196, 0.0
    %v2951 = vmax.f32 %v2198, 0.0
    %v2952 = vmax.f32 %v2840, 0.0
    %v2953 = vmax.f32 %v2842, 0.0
    %v2954 = vmax.f32 %v2200, 0.0
    %v2955 = vmax.f32 %v2202, 0.0
    %v2956 = vmax.f32 %v2844, 0.0
    %v2957 = vmax.f32 %v2846, 0.0
    %v2958 = vmax.f32 %v2206, 0.0
    %v2959 = vmax.f32 %v2208, 0.0
    %v2960 = vmax.f32 %v2850, 0.0
    %v2961 = vmax.f32 %v2852, 0.0
    %v2962 = vmax.f32 %v2210, 0.0
    %v2963 = vmax.f32 %v2212, 0.0
    %v2964 = vmax.f32 %v2854, 0.0
    %v2965 = vmax.f32 %v2856, 0.0
    %v2966 = vmax.f32 %v2216, 0.0
    %v2967 = vmax.f32 %v2218, 0.0
    %v2968 = vmax.f32 %v2860, 0.0
    %v2969 = vmax.f32 %v2862, 0.0
    %v2970 = vmax.f32 %v2220, 0.0
    %v2971 = vmax.f32 %v2222, 0.0
    %v2972 = vmax.f32 %v2864, 0.0
    %v2973 = vmax.f32 %v2866, 0.0
    %v2974 = vmax.f32 %v2226, 0.0
    %v2975 = vmax.f32 %v2228, 0.0
    %v2976 = vmax.f32 %v2870, 0.0
    %v2977 = vmax.f32 %v2872, 0.0
    %v2978 = vmax.f32 %v2230, 0.0
    %v2979 = vmax.f32 %v2232, 0.0
    %v2980 = vmax.f32 %v2874, 0.0
    %v2981 = vmax.f32 %v2876, 0.0
    %v2982 = vmax.f32 %v2236, 0.0
    %v2983 = vmax.f32 %v2238, 0.0
    %v2984 = vmax.f32 %v2880, 0.0
    %v2985 = vmax.f32 %v2882, 0.0
    %v2986 = vpack.c.bf16 %v2890, %v2886
    %v2987 = vpack.c.bf16 %v2891, %v2887
    %v2988 = vpack.c.bf16 %v2892, %v2888
    %v2989 = vpack.c.bf16 %v2893, %v2889
    %v2990 = vpack.c.bf16 %v2898, %v2894
    %v2991 = vpack.c.bf16 %v2899, %v2895
    %v2992 = vpack.c.bf16 %v2900, %v2896
    %v2993 = vpack.c.bf16 %v2901, %v2897
    %v2994 = vpack.c.bf16 %v2906, %v2902
    %v2995 = vpack.c.bf16 %v2907, %v2903
    %v2996 = vpack.c.bf16 %v2908, %v2904
    %v2997 = vpack.c.bf16 %v2909, %v2905
    %v2998 = vpack.c.bf16 %v2914, %v2910
    %v2999 = vpack.c.bf16 %v2915, %v2911
    %v3000 = vpack.c.bf16 %v2916, %v2912
    %v3001 = vpack.c.bf16 %v2917, %v2913
    %v3002 = vpack.c.bf16 %v2922, %v2918
    %v3003 = vpack.c.bf16 %v2923, %v2919
    %v3004 = vpack.c.bf16 %v2924, %v2920
    %v3005 = vpack.c.bf16 %v2925, %v2921
    %v3006 = vpack.c.bf16 %v2930, %v2926
    %v3007 = vpack.c.bf16 %v2931, %v2927
    %v3008 = vpack.c.bf16 %v2932, %v2928
    %v3009 = vpack.c.bf16 %v2933, %v2929
    %v3010 = vpack.c.bf16 %v2938, %v2934
    %v3011 = vpack.c.bf16 %v2939, %v2935
    %v3012 = vpack.c.bf16 %v2940, %v2936
    %v3013 = vpack.c.bf16 %v2941, %v2937
    %v3014 = vpack.c.bf16 %v2946, %v2942
    %v3015 = vpack.c.bf16 %v2947, %v2943
    %v3016 = vpack.c.bf16 %v2948, %v2944
    %v3017 = vpack.c.bf16 %v2949, %v2945
    %v3018 = vpack.c.bf16 %v2954, %v2950
    %v3019 = vpack.c.bf16 %v2955, %v2951
    %v3020 = vpack.c.bf16 %v2956, %v2952
    %v3021 = vpack.c.bf16 %v2957, %v2953
    %v3022 = vpack.c.bf16 %v2962, %v2958
    %v3023 = vpack.c.bf16 %v2963, %v2959
    %v3024 = vpack.c.bf16 %v2964, %v2960
    %v3025 = vpack.c.bf16 %v2965, %v2961
    %v3026 = vpack.c.bf16 %v2970, %v2966
    %v3027 = vpack.c.bf16 %v2971, %v2967
    %v3028 = vpack.c.bf16 %v2972, %v2968
    %v3029 = vpack.c.bf16 %v2973, %v2969
    %v3030 = vpack.c.bf16 %v2978, %v2974
    %v3031 = vpack.c.bf16 %v2979, %v2975
    %v3032 = vpack.c.bf16 %v2980, %v2976
    %v3033 = vpack.c.bf16 %v2981, %v2977
    %v3034 = vpack.c.bf16 %v2982, %v2982
    %v3035 = vpack.c.bf16 %v2983, %v2983
    %v3036 = vpack.c.bf16 %v2984, %v2984
    %v3037 = vpack.c.bf16 %v2985, %v2985
    %v3038 = vld [vmem:[#allocation8] sm:$0xff]
    %v3039 = vld [vmem:[#allocation8 + $0x8] sm:$0xff]
    %v3040 = vld [vmem:[#allocation8 + $0x10] sm:$0xff]
    %v3041 = vld [vmem:[#allocation8 + $0x18] sm:$0xff]
    %v3042 = vld [vmem:[#allocation8 + $0x20] sm:$0xff]
    %v3043 = vld [vmem:[#allocation8 + $0x28] sm:$0xff]
    %v3044 = vld [vmem:[#allocation8 + $0x30] sm:$0xff]
    %v3045 = vld [vmem:[#allocation8 + $0x38] sm:$0xff]
    %v3046 = vld [vmem:[#allocation8 + $0x40] sm:$0xff]
    %v3047 = vld [vmem:[#allocation8 + $0x48] sm:$0xff]
    %v3048 = vld [vmem:[#allocation8 + $0x50] sm:$0xff]
    %v3049 = vld [vmem:[#allocation8 + $0x58] sm:$0xff]
    %v3050 = vld [vmem:[#allocation8 + $0x60] sm:$0xff]
    %v3051 = vld [vmem:[#allocation8 + $0x68] sm:$0xff]
    %v3052 = vld [vmem:[#allocation8 + $0x70] sm:$0xff]
    %v3053 = vld [vmem:[#allocation8 + $0x78] sm:$0xff]
    %v3054 = vld [vmem:[#allocation8 + $0x80] sm:$0xff]
    %v3055 = vld [vmem:[#allocation8 + $0x88] sm:$0xff]
    %v3056 = vld [vmem:[#allocation8 + $0x90] sm:$0xff]
    %v3057 = vld [vmem:[#allocation8 + $0x98] sm:$0xff]
    %v3058 = vld [vmem:[#allocation8 + $0xa0] sm:$0xff]
    %v3059 = vld [vmem:[#allocation8 + $0xa8] sm:$0xff]
    %v3060 = vld [vmem:[#allocation8 + $0xb0] sm:$0xff]
    %v3061 = vld [vmem:[#allocation8 + $0xb8] sm:$0xff]
    %v3062 = vld [vmem:[#allocation8 + $0xc0] sm:$0xff]
    %v3063 = vld [vmem:[#allocation8 + $0xc8] sm:$0xff]
    %v3064 = vld [vmem:[#allocation8 + $0xd0] sm:$0xff]
    %v3065 = vld [vmem:[#allocation8 + $0xd8] sm:$0xff]
    %v3066 = vld [vmem:[#allocation8 + $0xe0] sm:$0xff]
    %v3067 = vld [vmem:[#allocation8 + $0xe8] sm:$0xff]
    %v3068 = vld [vmem:[#allocation8 + $0xf0] sm:$0xff]
    %v3069 = vld [vmem:[#allocation8 + $0xf8] sm:$0xff]
    %v3070 = vld [vmem:[#allocation8 + $0x100] sm:$0xff]
    %v3071 = vld [vmem:[#allocation8 + $0x108] sm:$0xff]
    %v3072 = vld [vmem:[#allocation8 + $0x110] sm:$0xff]
    %v3073 = vld [vmem:[#allocation8 + $0x118] sm:$0xff]
    %v3074 = vld [vmem:[#allocation8 + $0x120] sm:$0xff]
    %v3075 = vld [vmem:[#allocation8 + $0x128] sm:$0xff]
    %v3076 = vld [vmem:[#allocation8 + $0x130] sm:$0xff]
    %v3077 = vld [vmem:[#allocation8 + $0x138] sm:$0xff]
    %v3078 = vld [vmem:[#allocation8 + $0x140] sm:$0xff]
    %v3079 = vld [vmem:[#allocation8 + $0x148] sm:$0xff]
    %v3080 = vld [vmem:[#allocation8 + $0x150] sm:$0xff]
    %v3081 = vld [vmem:[#allocation8 + $0x158] sm:$0xff]
    %v3082 = vld [vmem:[#allocation8 + $0x160] sm:$0xff]
    %v3083 = vld [vmem:[#allocation8 + $0x168] sm:$0xff]
    %v3084 = vld [vmem:[#allocation8 + $0x170] sm:$0xff]
    %v3085 = vld [vmem:[#allocation8 + $0x178] sm:$0xff]
    %v3086 = vld [vmem:[#allocation8 + $0x180] sm:$0xff]
    %v3087 = vld [vmem:[#allocation8 + $0x188] sm:$0xff]
    %v3088 = vld [vmem:[#allocation8 + $0x190] sm:$0xff]
    %v3089 = vld [vmem:[#allocation8 + $0x198] sm:$0xff]
    %v3090 = vld [vmem:[#allocation8 + $0x1a0] sm:$0xff]
    %v3091 = vld [vmem:[#allocation8 + $0x1a8] sm:$0xff]
    %v3092 = vld [vmem:[#allocation8 + $0x1b0] sm:$0xff]
    %v3093 = vld [vmem:[#allocation8 + $0x1b8] sm:$0xff]
    %v3094 = vld [vmem:[#allocation8 + $0x1c0] sm:$0xff]
    %v3095 = vld [vmem:[#allocation8 + $0x1c8] sm:$0xff]
    %v3096 = vld [vmem:[#allocation8 + $0x1d0] sm:$0xff]
    %v3097 = vld [vmem:[#allocation8 + $0x1d8] sm:$0xff]
    %v3098 = vld [vmem:[#allocation8 + $0x1e0] sm:$0xff]
    %v3099 = vld [vmem:[#allocation8 + $0x1e8] sm:$0xff]
    %v3100 = vld [vmem:[#allocation8 + $0x1f0] sm:$0xff]
    %v3101 = vld [vmem:[#allocation8 + $0x1f8] sm:$0xff]
    %v3102 = vld [vmem:[#allocation8 + $0x200] sm:$0xff]
    %v3103 = vld [vmem:[#allocation8 + $0x208] sm:$0xff]
    %v3104 = vld [vmem:[#allocation8 + $0x210] sm:$0xff]
    %v3105 = vld [vmem:[#allocation8 + $0x218] sm:$0xff]
    %v3106 = vld [vmem:[#allocation8 + $0x220] sm:$0xff]
    %v3107 = vld [vmem:[#allocation8 + $0x228] sm:$0xff]
    %v3108 = vld [vmem:[#allocation8 + $0x230] sm:$0xff]
    %v3109 = vld [vmem:[#allocation8 + $0x238] sm:$0xff]
    %v3110 = vld [vmem:[#allocation8 + $0x240] sm:$0xff]
    %v3111 = vld [vmem:[#allocation8 + $0x248] sm:$0xff]
    %v3112 = vld [vmem:[#allocation8 + $0x250] sm:$0xff]
    %v3113 = vld [vmem:[#allocation8 + $0x258] sm:$0xff]
    %v3114 = vld [vmem:[#allocation8 + $0x260] sm:$0xff]
    %v3115 = vld [vmem:[#allocation8 + $0x268] sm:$0xff]
    %v3116 = vld [vmem:[#allocation8 + $0x270] sm:$0xff]
    %v3117 = vld [vmem:[#allocation8 + $0x278] sm:$0xff]
    %v3118 = vld [vmem:[#allocation8 + $0x280] sm:$0xff]
    %v3119 = vld [vmem:[#allocation8 + $0x288] sm:$0xff]
    %v3120 = vld [vmem:[#allocation8 + $0x290] sm:$0xff]
    %v3121 = vld [vmem:[#allocation8 + $0x298] sm:$0xff]
    %v3122 = vld [vmem:[#allocation8 + $0x2a0] sm:$0xff]
    %v3123 = vld [vmem:[#allocation8 + $0x2a8] sm:$0xff]
    %v3124 = vld [vmem:[#allocation8 + $0x2b0] sm:$0xff]
    %v3125 = vld [vmem:[#allocation8 + $0x2b8] sm:$0xff]
    %v3126 = vld [vmem:[#allocation8 + $0x2c0] sm:$0xff]
    %v3127 = vld [vmem:[#allocation8 + $0x2c8] sm:$0xff]
    %v3128 = vld [vmem:[#allocation8 + $0x2d0] sm:$0xff]
    %v3129 = vld [vmem:[#allocation8 + $0x2d8] sm:$0xff]
    %v3130 = vld [vmem:[#allocation8 + $0x2e0] sm:$0xff]
    %v3131 = vld [vmem:[#allocation8 + $0x2e8] sm:$0xff]
    %v3132 = vld [vmem:[#allocation8 + $0x2f0] sm:$0xff]
    %v3133 = vld [vmem:[#allocation8 + $0x2f8] sm:$0xff]
    %v3134 = vld [vmem:[#allocation8 + $0x300] sm:$0xff]
    %v3135 = vld [vmem:[#allocation8 + $0x308] sm:$0xff]
    %v3136 = vld [vmem:[#allocation8 + $0x310] sm:$0xff]
    %v3137 = vld [vmem:[#allocation8 + $0x318] sm:$0xff]
    %v3138 = vld [vmem:[#allocation8 + $0x320] sm:$0xff]
    %v3139 = vld [vmem:[#allocation8 + $0x328] sm:$0xff]
    %v3140 = vld [vmem:[#allocation8 + $0x330] sm:$0xff]
    %v3141 = vld [vmem:[#allocation8 + $0x338] sm:$0xff]
    %v3142 = vld [vmem:[#allocation8 + $0x340] sm:$0xff]
    %v3143 = vld [vmem:[#allocation8 + $0x348] sm:$0xff]
    %v3144 = vld [vmem:[#allocation8 + $0x350] sm:$0xff]
    %v3145 = vld [vmem:[#allocation8 + $0x358] sm:$0xff]
    %v3146 = vld [vmem:[#allocation8 + $0x360] sm:$0xff]
    %v3147 = vld [vmem:[#allocation8 + $0x368] sm:$0xff]
    %v3148 = vld [vmem:[#allocation8 + $0x370] sm:$0xff]
    %v3149 = vld [vmem:[#allocation8 + $0x378] sm:$0xff]
    %v3150 = vld [vmem:[#allocation8 + $0x380] sm:$0xff]
    %v3151 = vld [vmem:[#allocation8 + $0x388] sm:$0xff]
    %v3152 = vld [vmem:[#allocation8 + $0x390] sm:$0xff]
    %v3153 = vld [vmem:[#allocation8 + $0x398] sm:$0xff]
    %v3154 = vld [vmem:[#allocation8 + $0x3a0] sm:$0xff]
    %v3155 = vld [vmem:[#allocation8 + $0x3a8] sm:$0xff]
    %v3156 = vld [vmem:[#allocation8 + $0x3b0] sm:$0xff]
    %v3157 = vld [vmem:[#allocation8 + $0x3b8] sm:$0xff]
    %v3158 = vld [vmem:[#allocation8 + $0x3c0] sm:$0xff]
    %v3159 = vld [vmem:[#allocation8 + $0x3c8] sm:$0xff]
    %v3160 = vld [vmem:[#allocation8 + $0x3d0] sm:$0xff]
    %v3161 = vld [vmem:[#allocation8 + $0x3d8] sm:$0xff]
    %v3162 = vld [vmem:[#allocation8 + $0x3e0] sm:$0xff]
    %v3163 = vld [vmem:[#allocation8 + $0x3e8] sm:$0xff]
    %v3164 = vld [vmem:[#allocation8 + $0x3f0] sm:$0xff]
    %v3165 = vld [vmem:[#allocation8 + $0x3f8] sm:$0xff]
    %v3166 = vld [vmem:[%s4] sm:$0xf]
    %v3168 = vlaneseq
    %v3169 = vshrl.u32 %v3168, 7
    %v3170 = vsub.s32 0, %v3169
    %v3171 = vrot.slane %v3166, %v3170
    %v3172 = vlaneseq
    %v3173 = vshrl.u32 %v3172, 7
    %v3174 = vsub.s32 1, %v3173
    %v3175 = vrot.slane %v3166, %v3174
    %v3176 = vlaneseq
    %v3177 = vshrl.u32 %v3176, 7
    %v3178 = vsub.s32 2, %v3177
    %v3179 = vrot.slane %v3166, %v3178
    %v3180 = vlaneseq
    %v3181 = vshrl.u32 %v3180, 7
    %v3182 = vsub.s32 3, %v3181
    %v3183 = vrot.slane %v3166, %v3182
    %v3316 = vunpack.c.l.b16 %v3038
    %v3317 = vunpack.c.h.b16 %v3038
    %v3318 = vunpack.c.l.b16 %v3039
    %v3319 = vunpack.c.h.b16 %v3039
    %v3320 = vunpack.c.l.b16 %v3040
    %v3321 = vunpack.c.h.b16 %v3040
    %v3322 = vunpack.c.l.b16 %v3041
    %v3323 = vunpack.c.h.b16 %v3041
    %v3324 = vunpack.c.l.b16 %v3042
    %v3325 = vunpack.c.h.b16 %v3042
    %v3326 = vunpack.c.l.b16 %v3043
    %v3327 = vunpack.c.h.b16 %v3043
    %v3328 = vunpack.c.l.b16 %v3044
    %v3329 = vunpack.c.h.b16 %v3044
    %v3330 = vunpack.c.l.b16 %v3045
    %v3331 = vunpack.c.h.b16 %v3045
    %v3332 = vunpack.c.l.b16 %v3046
    %v3333 = vunpack.c.h.b16 %v3046
    %v3334 = vunpack.c.l.b16 %v3047
    %v3335 = vunpack.c.h.b16 %v3047
    %v3336 = vunpack.c.l.b16 %v3048
    %v3337 = vunpack.c.h.b16 %v3048
    %v3338 = vunpack.c.l.b16 %v3049
    %v3339 = vunpack.c.h.b16 %v3049
    %v3340 = vunpack.c.l.b16 %v3050
    %v3341 = vunpack.c.h.b16 %v3050
    %v3342 = vunpack.c.l.b16 %v3051
    %v3343 = vunpack.c.h.b16 %v3051
    %v3344 = vunpack.c.l.b16 %v3052
    %v3345 = vunpack.c.h.b16 %v3052
    %v3346 = vunpack.c.l.b16 %v3053
    %v3347 = vunpack.c.h.b16 %v3053
    %v3348 = vunpack.c.l.b16 %v3054
    %v3349 = vunpack.c.h.b16 %v3054
    %v3350 = vunpack.c.l.b16 %v3055
    %v3351 = vunpack.c.h.b16 %v3055
    %v3352 = vunpack.c.l.b16 %v3056
    %v3353 = vunpack.c.h.b16 %v3056
    %v3354 = vunpack.c.l.b16 %v3057
    %v3355 = vunpack.c.h.b16 %v3057
    %v3356 = vunpack.c.l.b16 %v3058
    %v3357 = vunpack.c.h.b16 %v3058
    %v3358 = vunpack.c.l.b16 %v3059
    %v3359 = vunpack.c.h.b16 %v3059
    %v3360 = vunpack.c.l.b16 %v3060
    %v3361 = vunpack.c.h.b16 %v3060
    %v3362 = vunpack.c.l.b16 %v3061
    %v3363 = vunpack.c.h.b16 %v3061
    %v3364 = vunpack.c.l.b16 %v3062
    %v3365 = vunpack.c.h.b16 %v3062
    %v3366 = vunpack.c.l.b16 %v3063
    %v3367 = vunpack.c.h.b16 %v3063
    %v3368 = vunpack.c.l.b16 %v3064
    %v3369 = vunpack.c.h.b16 %v3064
    %v3370 = vunpack.c.l.b16 %v3065
    %v3371 = vunpack.c.h.b16 %v3065
    %v3372 = vunpack.c.l.b16 %v3066
    %v3373 = vunpack.c.h.b16 %v3066
    %v3374 = vunpack.c.l.b16 %v3067
    %v3375 = vunpack.c.h.b16 %v3067
    %v3376 = vunpack.c.l.b16 %v3068
    %v3377 = vunpack.c.h.b16 %v3068
    %v3378 = vunpack.c.l.b16 %v3069
    %v3379 = vunpack.c.h.b16 %v3069
    %v3380 = vunpack.c.l.b16 %v3070
    %v3381 = vunpack.c.h.b16 %v3070
    %v3382 = vunpack.c.l.b16 %v3071
    %v3383 = vunpack.c.h.b16 %v3071
    %v3384 = vunpack.c.l.b16 %v3072
    %v3385 = vunpack.c.h.b16 %v3072
    %v3386 = vunpack.c.l.b16 %v3073
    %v3387 = vunpack.c.h.b16 %v3073
    %v3388 = vunpack.c.l.b16 %v3074
    %v3389 = vunpack.c.h.b16 %v3074
    %v3390 = vunpack.c.l.b16 %v3075
    %v3391 = vunpack.c.h.b16 %v3075
    %v3392 = vunpack.c.l.b16 %v3076
    %v3393 = vunpack.c.h.b16 %v3076
    %v3394 = vunpack.c.l.b16 %v3077
    %v3395 = vunpack.c.h.b16 %v3077
    %v3396 = vunpack.c.l.b16 %v3078
    %v3397 = vunpack.c.h.b16 %v3078
    %v3398 = vunpack.c.l.b16 %v3079
    %v3399 = vunpack.c.h.b16 %v3079
    %v3400 = vunpack.c.l.b16 %v3080
    %v3401 = vunpack.c.h.b16 %v3080
    %v3402 = vunpack.c.l.b16 %v3081
    %v3403 = vunpack.c.h.b16 %v3081
    %v3404 = vunpack.c.l.b16 %v3082
    %v3405 = vunpack.c.h.b16 %v3082
    %v3406 = vunpack.c.l.b16 %v3083
    %v3407 = vunpack.c.h.b16 %v3083
    %v3408 = vunpack.c.l.b16 %v3084
    %v3409 = vunpack.c.h.b16 %v3084
    %v3410 = vunpack.c.l.b16 %v3085
    %v3411 = vunpack.c.h.b16 %v3085
    %v3412 = vunpack.c.l.b16 %v3086
    %v3413 = vunpack.c.h.b16 %v3086
    %v3414 = vunpack.c.l.b16 %v3087
    %v3415 = vunpack.c.h.b16 %v3087
    %v3416 = vunpack.c.l.b16 %v3088
    %v3417 = vunpack.c.h.b16 %v3088
    %v3418 = vunpack.c.l.b16 %v3089
    %v3419 = vunpack.c.h.b16 %v3089
    %v3420 = vunpack.c.l.b16 %v3090
    %v3421 = vunpack.c.h.b16 %v3090
    %v3422 = vunpack.c.l.b16 %v3091
    %v3423 = vunpack.c.h.b16 %v3091
    %v3424 = vunpack.c.l.b16 %v3092
    %v3425 = vunpack.c.h.b16 %v3092
    %v3426 = vunpack.c.l.b16 %v3093
    %v3427 = vunpack.c.h.b16 %v3093
    %v3428 = vunpack.c.l.b16 %v3094
    %v3429 = vunpack.c.h.b16 %v3094
    %v3430 = vunpack.c.l.b16 %v3095
    %v3431 = vunpack.c.h.b16 %v3095
    %v3432 = vunpack.c.l.b16 %v3096
    %v3433 = vunpack.c.h.b16 %v3096
    %v3434 = vunpack.c.l.b16 %v3097
    %v3435 = vunpack.c.h.b16 %v3097
    %v3436 = vunpack.c.l.b16 %v3098
    %v3437 = vunpack.c.h.b16 %v3098
    %v3438 = vunpack.c.l.b16 %v3099
    %v3439 = vunpack.c.h.b16 %v3099
    %v3440 = vunpack.c.l.b16 %v3100
    %v3441 = vunpack.c.h.b16 %v3100
    %v3442 = vunpack.c.l.b16 %v3101
    %v3443 = vunpack.c.h.b16 %v3101
    %v3444 = vunpack.c.l.b16 %v3102
    %v3445 = vunpack.c.h.b16 %v3102
    %v3446 = vunpack.c.l.b16 %v3103
    %v3447 = vunpack.c.h.b16 %v3103
    %v3448 = vunpack.c.l.b16 %v3104
    %v3449 = vunpack.c.h.b16 %v3104
    %v3450 = vunpack.c.l.b16 %v3105
    %v3451 = vunpack.c.h.b16 %v3105
    %v3452 = vunpack.c.l.b16 %v3106
    %v3453 = vunpack.c.h.b16 %v3106
    %v3454 = vunpack.c.l.b16 %v3107
    %v3455 = vunpack.c.h.b16 %v3107
    %v3456 = vunpack.c.l.b16 %v3108
    %v3457 = vunpack.c.h.b16 %v3108
    %v3458 = vunpack.c.l.b16 %v3109
    %v3459 = vunpack.c.h.b16 %v3109
    %v3460 = vunpack.c.l.b16 %v3110
    %v3461 = vunpack.c.h.b16 %v3110
    %v3462 = vunpack.c.l.b16 %v3111
    %v3463 = vunpack.c.h.b16 %v3111
    %v3464 = vunpack.c.l.b16 %v3112
    %v3465 = vunpack.c.h.b16 %v3112
    %v3466 = vunpack.c.l.b16 %v3113
    %v3467 = vunpack.c.h.b16 %v3113
    %v3468 = vunpack.c.l.b16 %v3114
    %v3469 = vunpack.c.h.b16 %v3114
    %v3470 = vunpack.c.l.b16 %v3115
    %v3471 = vunpack.c.h.b16 %v3115
    %v3472 = vunpack.c.l.b16 %v3116
    %v3473 = vunpack.c.h.b16 %v3116
    %v3474 = vunpack.c.l.b16 %v3117
    %v3475 = vunpack.c.h.b16 %v3117
    %v3476 = vunpack.c.l.b16 %v3118
    %v3477 = vunpack.c.h.b16 %v3118
    %v3478 = vunpack.c.l.b16 %v3119
    %v3479 = vunpack.c.h.b16 %v3119
    %v3480 = vunpack.c.l.b16 %v3120
    %v3481 = vunpack.c.h.b16 %v3120
    %v3482 = vunpack.c.l.b16 %v3121
    %v3483 = vunpack.c.h.b16 %v3121
    %v3484 = vunpack.c.l.b16 %v3122
    %v3485 = vunpack.c.h.b16 %v3122
    %v3486 = vunpack.c.l.b16 %v3123
    %v3487 = vunpack.c.h.b16 %v3123
    %v3488 = vunpack.c.l.b16 %v3124
    %v3489 = vunpack.c.h.b16 %v3124
    %v3490 = vunpack.c.l.b16 %v3125
    %v3491 = vunpack.c.h.b16 %v3125
    %v3492 = vunpack.c.l.b16 %v3126
    %v3493 = vunpack.c.h.b16 %v3126
    %v3494 = vunpack.c.l.b16 %v3127
    %v3495 = vunpack.c.h.b16 %v3127
    %v3496 = vunpack.c.l.b16 %v3128
    %v3497 = vunpack.c.h.b16 %v3128
    %v3498 = vunpack.c.l.b16 %v3129
    %v3499 = vunpack.c.h.b16 %v3129
    %v3500 = vunpack.c.l.b16 %v3130
    %v3501 = vunpack.c.h.b16 %v3130
    %v3502 = vunpack.c.l.b16 %v3131
    %v3503 = vunpack.c.h.b16 %v3131
    %v3504 = vunpack.c.l.b16 %v3132
    %v3505 = vunpack.c.h.b16 %v3132
    %v3506 = vunpack.c.l.b16 %v3133
    %v3507 = vunpack.c.h.b16 %v3133
    %v3508 = vunpack.c.l.b16 %v3134
    %v3509 = vunpack.c.h.b16 %v3134
    %v3510 = vunpack.c.l.b16 %v3135
    %v3511 = vunpack.c.h.b16 %v3135
    %v3512 = vunpack.c.l.b16 %v3136
    %v3513 = vunpack.c.h.b16 %v3136
    %v3514 = vunpack.c.l.b16 %v3137
    %v3515 = vunpack.c.h.b16 %v3137
    %v3516 = vunpack.c.l.b16 %v3138
    %v3517 = vunpack.c.h.b16 %v3138
    %v3518 = vunpack.c.l.b16 %v3139
    %v3519 = vunpack.c.h.b16 %v3139
    %v3520 = vunpack.c.l.b16 %v3140
    %v3521 = vunpack.c.h.b16 %v3140
    %v3522 = vunpack.c.l.b16 %v3141
    %v3523 = vunpack.c.h.b16 %v3141
    %v3524 = vunpack.c.l.b16 %v3142
    %v3525 = vunpack.c.h.b16 %v3142
    %v3526 = vunpack.c.l.b16 %v3143
    %v3527 = vunpack.c.h.b16 %v3143
    %v3528 = vunpack.c.l.b16 %v3144
    %v3529 = vunpack.c.h.b16 %v3144
    %v3530 = vunpack.c.l.b16 %v3145
    %v3531 = vunpack.c.h.b16 %v3145
    %v3532 = vunpack.c.l.b16 %v3146
    %v3533 = vunpack.c.h.b16 %v3146
    %v3534 = vunpack.c.l.b16 %v3147
    %v3535 = vunpack.c.h.b16 %v3147
    %v3536 = vunpack.c.l.b16 %v3148
    %v3537 = vunpack.c.h.b16 %v3148
    %v3538 = vunpack.c.l.b16 %v3149
    %v3539 = vunpack.c.h.b16 %v3149
    %v3540 = vunpack.c.l.b16 %v3150
    %v3541 = vunpack.c.h.b16 %v3150
    %v3542 = vunpack.c.l.b16 %v3151
    %v3543 = vunpack.c.h.b16 %v3151
    %v3544 = vunpack.c.l.b16 %v3152
    %v3545 = vunpack.c.h.b16 %v3152
    %v3546 = vunpack.c.l.b16 %v3153
    %v3547 = vunpack.c.h.b16 %v3153
    %v3548 = vunpack.c.l.b16 %v3154
    %v3549 = vunpack.c.h.b16 %v3154
    %v3550 = vunpack.c.l.b16 %v3155
    %v3551 = vunpack.c.h.b16 %v3155
    %v3552 = vunpack.c.l.b16 %v3156
    %v3553 = vunpack.c.h.b16 %v3156
    %v3554 = vunpack.c.l.b16 %v3157
    %v3555 = vunpack.c.h.b16 %v3157
    %v3556 = vunpack.c.l.b16 %v3158
    %v3557 = vunpack.c.h.b16 %v3158
    %v3558 = vunpack.c.l.b16 %v3159
    %v3559 = vunpack.c.h.b16 %v3159
    %v3560 = vunpack.c.l.b16 %v3160
    %v3561 = vunpack.c.h.b16 %v3160
    %v3562 = vunpack.c.l.b16 %v3161
    %v3563 = vunpack.c.h.b16 %v3161
    %v3564 = vunpack.c.l.b16 %v3162
    %v3565 = vunpack.c.h.b16 %v3162
    %v3566 = vunpack.c.l.b16 %v3163
    %v3567 = vunpack.c.h.b16 %v3163
    %v3568 = vunpack.c.l.b16 %v3164
    %v3569 = vunpack.c.h.b16 %v3164
    %v3570 = vunpack.c.l.b16 %v3165
    %v3571 = vunpack.c.h.b16 %v3165
    %v3572 = vpack.c.b16 %v3320, %v3316
    %v3573 = vpack.c.b16 %v3321, %v3317
    %v3574 = vpack.c.b16 %v3322, %v3318
    %v3575 = vpack.c.b16 %v3323, %v3319
    %v3576 = vpack.c.b16 %v3328, %v3324
    %v3577 = vpack.c.b16 %v3329, %v3325
    %v3578 = vpack.c.b16 %v3330, %v3326
    %v3579 = vpack.c.b16 %v3331, %v3327
    %v3580 = vpack.c.b16 %v3336, %v3332
    %v3581 = vpack.c.b16 %v3337, %v3333
    %v3582 = vpack.c.b16 %v3338, %v3334
    %v3583 = vpack.c.b16 %v3339, %v3335
    %v3584 = vpack.c.b16 %v3344, %v3340
    %v3585 = vpack.c.b16 %v3345, %v3341
    %v3586 = vpack.c.b16 %v3346, %v3342
    %v3587 = vpack.c.b16 %v3347, %v3343
    %v3588 = vpack.c.b16 %v3352, %v3348
    %v3589 = vpack.c.b16 %v3353, %v3349
    %v3590 = vpack.c.b16 %v3354, %v3350
    %v3591 = vpack.c.b16 %v3355, %v3351
    %v3592 = vpack.c.b16 %v3360, %v3356
    %v3593 = vpack.c.b16 %v3361, %v3357
    %v3594 = vpack.c.b16 %v3362, %v3358
    %v3595 = vpack.c.b16 %v3363, %v3359
    %v3596 = vpack.c.b16 %v3368, %v3364
    %v3597 = vpack.c.b16 %v3369, %v3365
    %v3598 = vpack.c.b16 %v3370, %v3366
    %v3599 = vpack.c.b16 %v3371, %v3367
    %v3600 = vpack.c.b16 %v3376, %v3372
    %v3601 = vpack.c.b16 %v3377, %v3373
    %v3602 = vpack.c.b16 %v3378, %v3374
    %v3603 = vpack.c.b16 %v3379, %v3375
    %v3604 = vpack.c.b16 %v3384, %v3380
    %v3605 = vpack.c.b16 %v3385, %v3381
    %v3606 = vpack.c.b16 %v3386, %v3382
    %v3607 = vpack.c.b16 %v3387, %v3383
    %v3608 = vpack.c.b16 %v3392, %v3388
    %v3609 = vpack.c.b16 %v3393, %v3389
    %v3610 = vpack.c.b16 %v3394, %v3390
    %v3611 = vpack.c.b16 %v3395, %v3391
    %v3612 = vpack.c.b16 %v3400, %v3396
    %v3613 = vpack.c.b16 %v3401, %v3397
    %v3614 = vpack.c.b16 %v3402, %v3398
    %v3615 = vpack.c.b16 %v3403, %v3399
    %v3616 = vpack.c.b16 %v3408, %v3404
    %v3617 = vpack.c.b16 %v3409, %v3405
    %v3618 = vpack.c.b16 %v3410, %v3406
    %v3619 = vpack.c.b16 %v3411, %v3407
    %v3620 = vpack.c.b16 %v3416, %v3412
    %v3621 = vpack.c.b16 %v3417, %v3413
    %v3622 = vpack.c.b16 %v3418, %v3414
    %v3623 = vpack.c.b16 %v3419, %v3415
    %v3624 = vpack.c.b16 %v3424, %v3420
    %v3625 = vpack.c.b16 %v3425, %v3421
    %v3626 = vpack.c.b16 %v3426, %v3422
    %v3627 = vpack.c.b16 %v3427, %v3423
    %v3628 = vpack.c.b16 %v3432, %v3428
    %v3629 = vpack.c.b16 %v3433, %v3429
    %v3630 = vpack.c.b16 %v3434, %v3430
    %v3631 = vpack.c.b16 %v3435, %v3431
    %v3632 = vpack.c.b16 %v3440, %v3436
    %v3633 = vpack.c.b16 %v3441, %v3437
    %v3634 = vpack.c.b16 %v3442, %v3438
    %v3635 = vpack.c.b16 %v3443, %v3439
    %v3636 = vpack.c.b16 %v3448, %v3444
    %v3637 = vpack.c.b16 %v3449, %v3445
    %v3638 = vpack.c.b16 %v3450, %v3446
    %v3639 = vpack.c.b16 %v3451, %v3447
    %v3640 = vpack.c.b16 %v3456, %v3452
    %v3641 = vpack.c.b16 %v3457, %v3453
    %v3642 = vpack.c.b16 %v3458, %v3454
    %v3643 = vpack.c.b16 %v3459, %v3455
    %v3644 = vpack.c.b16 %v3464, %v3460
    %v3645 = vpack.c.b16 %v3465, %v3461
    %v3646 = vpack.c.b16 %v3466, %v3462
    %v3647 = vpack.c.b16 %v3467, %v3463
    %v3648 = vpack.c.b16 %v3472, %v3468
    %v3649 = vpack.c.b16 %v3473, %v3469
    %v3650 = vpack.c.b16 %v3474, %v3470
    %v3651 = vpack.c.b16 %v3475, %v3471
    %v3652 = vpack.c.b16 %v3480, %v3476
    %v3653 = vpack.c.b16 %v3481, %v3477
    %v3654 = vpack.c.b16 %v3482, %v3478
    %v3655 = vpack.c.b16 %v3483, %v3479
    %v3656 = vpack.c.b16 %v3488, %v3484
    %v3657 = vpack.c.b16 %v3489, %v3485
    %v3658 = vpack.c.b16 %v3490, %v3486
    %v3659 = vpack.c.b16 %v3491, %v3487
    %v3660 = vpack.c.b16 %v3496, %v3492
    %v3661 = vpack.c.b16 %v3497, %v3493
    %v3662 = vpack.c.b16 %v3498, %v3494
    %v3663 = vpack.c.b16 %v3499, %v3495
    %v3664 = vpack.c.b16 %v3504, %v3500
    %v3665 = vpack.c.b16 %v3505, %v3501
    %v3666 = vpack.c.b16 %v3506, %v3502
    %v3667 = vpack.c.b16 %v3507, %v3503
    %v3668 = vpack.c.b16 %v3512, %v3508
    %v3669 = vpack.c.b16 %v3513, %v3509
    %v3670 = vpack.c.b16 %v3514, %v3510
    %v3671 = vpack.c.b16 %v3515, %v3511
    %v3672 = vpack.c.b16 %v3520, %v3516
    %v3673 = vpack.c.b16 %v3521, %v3517
    %v3674 = vpack.c.b16 %v3522, %v3518
    %v3675 = vpack.c.b16 %v3523, %v3519
    %v3676 = vpack.c.b16 %v3528, %v3524
    %v3677 = vpack.c.b16 %v3529, %v3525
    %v3678 = vpack.c.b16 %v3530, %v3526
    %v3679 = vpack.c.b16 %v3531, %v3527
    %v3680 = vpack.c.b16 %v3536, %v3532
    %v3681 = vpack.c.b16 %v3537, %v3533
    %v3682 = vpack.c.b16 %v3538, %v3534
    %v3683 = vpack.c.b16 %v3539, %v3535
    %v3684 = vpack.c.b16 %v3544, %v3540
    %v3685 = vpack.c.b16 %v3545, %v3541
    %v3686 = vpack.c.b16 %v3546, %v3542
    %v3687 = vpack.c.b16 %v3547, %v3543
    %v3688 = vpack.c.b16 %v3552, %v3548
    %v3689 = vpack.c.b16 %v3553, %v3549
    %v3690 = vpack.c.b16 %v3554, %v3550
    %v3691 = vpack.c.b16 %v3555, %v3551
    %v3692 = vpack.c.b16 %v3560, %v3556
    %v3693 = vpack.c.b16 %v3561, %v3557
    %v3694 = vpack.c.b16 %v3562, %v3558
    %v3695 = vpack.c.b16 %v3563, %v3559
    %v3696 = vpack.c.b16 %v3568, %v3564
    %v3697 = vpack.c.b16 %v3569, %v3565
    %v3698 = vpack.c.b16 %v3570, %v3566
    %v3699 = vpack.c.b16 %v3571, %v3567
    %3828 = vmatprep.subr.bf16.mxu0 %v3601
    %3829 = vmatpush1.bf16.msra.mxu0 %v3600
    %3830 = vmatprep.subr.bf16.mxu0 %v3597
    %3831 = vmatpush1.bf16.msra.mxu0 %v3596
    %3832 = vmatprep.subr.bf16.mxu0 %v3593
    %3833 = vmatpush1.bf16.msra.mxu0 %v3592
    %3834 = vmatprep.subr.bf16.mxu0 %v3589
    %3835 = vmatpush1.bf16.msra.mxu0 %v3588
    %3836 = vmatprep.subr.bf16.mxu0 %v3585
    %3837 = vmatpush1.bf16.msra.mxu0 %v3584
    %3838 = vmatprep.subr.bf16.mxu0 %v3581
    %3839 = vmatpush1.bf16.msra.mxu0 %v3580
    %3840 = vmatprep.subr.bf16.mxu0 %v3577
    %3841 = vmatpush1.bf16.msra.mxu0 %v3576
    %3842 = vmatprep.subr.bf16.mxu0 %v3573
    %3843 = vmatpush1.bf16.msra.mxu0 %v3572
    %3844 = vmatprep.subr.bf16.mxu0 %v3633
    %3845 = vmatpush2.bf16.msra.mxu0 %v3632
    %3846 = vmatprep.subr.bf16.mxu0 %v3629
    %3847 = vmatpush2.bf16.msra.mxu0 %v3628
    %3848 = vmatprep.subr.bf16.mxu0 %v3625
    %3849 = vmatpush2.bf16.msra.mxu0 %v3624
    %3850 = vmatprep.subr.bf16.mxu0 %v3621
    %3851 = vmatpush2.bf16.msra.mxu0 %v3620
    %3852 = vmatprep.subr.bf16.mxu0 %v3617
    %3853 = vmatpush2.bf16.msra.mxu0 %v3616
    %3854 = vmatprep.subr.bf16.mxu0 %v3613
    %3855 = vmatpush2.bf16.msra.mxu0 %v3612
    %3856 = vmatprep.subr.bf16.mxu0 %v3609
    %3857 = vmatpush2.bf16.msra.mxu0 %v3608
    %3858 = vmatprep.subr.bf16.mxu0 %v3605
    %3859 = vmatpush2.bf16.msra.mxu0 %v3604
    %3860 = vmatprep.mubr.bf16.mxu0 %v2987
    %3861 = vmatmul.mubr.bf16.gmra.mxu0 %v2986
    %v3862 = vpop.f32.mrf.mxu0
    %v3863 = vadd.f32 %v3171, %v3862
    %v3864 = vpop.f32.mrf.mxu0
    %v3865 = vadd.f32 %v3175, %v3864
    %v3866 = vpop.f32.mrf.mxu0
    %v3867 = vadd.f32 %v3171, %v3866
    %v3868 = vpop.f32.mrf.mxu0
    %v3869 = vadd.f32 %v3175, %v3868
    %3870 = vmatprep.mubr.bf16.mxu0 %v2991
    %3871 = vmatmul.mubr.bf16.gmra.mxu0 %v2990
    %v3872 = vpop.f32.mrf.mxu0
    %v3873 = vadd.f32 %v3171, %v3872
    %v3874 = vpop.f32.mrf.mxu0
    %v3875 = vadd.f32 %v3175, %v3874
    %v3876 = vpop.f32.mrf.mxu0
    %v3877 = vadd.f32 %v3171, %v3876
    %v3878 = vpop.f32.mrf.mxu0
    %v3879 = vadd.f32 %v3175, %v3878
    %3880 = vmatprep.mubr.bf16.mxu0 %v2995
    %3881 = vmatmul.mubr.bf16.gmra.mxu0 %v2994
    %v3882 = vpop.f32.mrf.mxu0
    %v3883 = vadd.f32 %v3171, %v3882
    %v3884 = vpop.f32.mrf.mxu0
    %v3885 = vadd.f32 %v3175, %v3884
    %v3886 = vpop.f32.mrf.mxu0
    %v3887 = vadd.f32 %v3171, %v3886
    %v3888 = vpop.f32.mrf.mxu0
    %v3889 = vadd.f32 %v3175, %v3888
    %3890 = vmatprep.mubr.bf16.mxu0 %v2999
    %3891 = vmatmul.mubr.bf16.gmra.mxu0 %v2998
    %v3892 = vpop.f32.mrf.mxu0
    %v3893 = vadd.f32 %v3171, %v3892
    %v3894 = vpop.f32.mrf.mxu0
    %v3895 = vadd.f32 %v3175, %v3894
    %v3896 = vpop.f32.mrf.mxu0
    %v3897 = vadd.f32 %v3171, %v3896
    %v3898 = vpop.f32.mrf.mxu0
    %v3899 = vadd.f32 %v3175, %v3898
    %3900 = vmatprep.mubr.bf16.mxu0 %v3003
    %3901 = vmatmul.mubr.bf16.gmra.mxu0 %v3002
    %v3902 = vpop.f32.mrf.mxu0
    %v3903 = vadd.f32 %v3171, %v3902
    %v3904 = vpop.f32.mrf.mxu0
    %v3905 = vadd.f32 %v3175, %v3904
    %v3906 = vpop.f32.mrf.mxu0
    %v3907 = vadd.f32 %v3171, %v3906
    %v3908 = vpop.f32.mrf.mxu0
    %v3909 = vadd.f32 %v3175, %v3908
    %3910 = vmatprep.mubr.bf16.mxu0 %v3007
    %3911 = vmatmul.mubr.bf16.gmra.mxu0 %v3006
    %v3912 = vpop.f32.mrf.mxu0
    %v3913 = vadd.f32 %v3171, %v3912
    %v3914 = vpop.f32.mrf.mxu0
    %v3915 = vadd.f32 %v3175, %v3914
    %v3916 = vpop.f32.mrf.mxu0
    %v3917 = vadd.f32 %v3171, %v3916
    %v3918 = vpop.f32.mrf.mxu0
    %v3919 = vadd.f32 %v3175, %v3918
    %3920 = vmatprep.mubr.bf16.mxu0 %v3011
    %3921 = vmatmul.mubr.bf16.gmra.mxu0 %v3010
    %v3922 = vpop.f32.mrf.mxu0
    %v3923 = vadd.f32 %v3171, %v3922
    %v3924 = vpop.f32.mrf.mxu0
    %v3925 = vadd.f32 %v3175, %v3924
    %v3926 = vpop.f32.mrf.mxu0
    %v3927 = vadd.f32 %v3171, %v3926
    %v3928 = vpop.f32.mrf.mxu0
    %v3929 = vadd.f32 %v3175, %v3928
    %3930 = vmatprep.mubr.bf16.mxu0 %v3015
    %3931 = vmatmul.mubr.bf16.gmra.mxu0 %v3014
    %v3932 = vpop.f32.mrf.mxu0
    %v3933 = vadd.f32 %v3171, %v3932
    %v3934 = vpop.f32.mrf.mxu0
    %v3935 = vadd.f32 %v3175, %v3934
    %v3936 = vpop.f32.mrf.mxu0
    %v3937 = vadd.f32 %v3171, %v3936
    %v3938 = vpop.f32.mrf.mxu0
    %v3939 = vadd.f32 %v3175, %v3938
    %3940 = vmatprep.mubr.bf16.mxu0 %v3019
    %3941 = vmatmul.mubr.bf16.gmra.mxu0 %v3018
    %v3942 = vpop.f32.mrf.mxu0
    %v3943 = vadd.f32 %v3171, %v3942
    %v3944 = vpop.f32.mrf.mxu0
    %v3945 = vadd.f32 %v3175, %v3944
    %v3946 = vpop.f32.mrf.mxu0
    %v3947 = vadd.f32 %v3171, %v3946
    %v3948 = vpop.f32.mrf.mxu0
    %v3949 = vadd.f32 %v3175, %v3948
    %3950 = vmatprep.mubr.bf16.mxu0 %v3023
    %3951 = vmatmul.mubr.bf16.gmra.mxu0 %v3022
    %v3952 = vpop.f32.mrf.mxu0
    %v3953 = vadd.f32 %v3171, %v3952
    %v3954 = vpop.f32.mrf.mxu0
    %v3955 = vadd.f32 %v3175, %v3954
    %v3956 = vpop.f32.mrf.mxu0
    %v3957 = vadd.f32 %v3171, %v3956
    %v3958 = vpop.f32.mrf.mxu0
    %v3959 = vadd.f32 %v3175, %v3958
    %3960 = vmatprep.mubr.bf16.mxu0 %v3027
    %3961 = vmatmul.mubr.bf16.gmra.mxu0 %v3026
    %v3962 = vpop.f32.mrf.mxu0
    %v3963 = vadd.f32 %v3171, %v3962
    %v3964 = vpop.f32.mrf.mxu0
    %v3965 = vadd.f32 %v3175, %v3964
    %v3966 = vpop.f32.mrf.mxu0
    %v3967 = vadd.f32 %v3171, %v3966
    %v3968 = vpop.f32.mrf.mxu0
    %v3969 = vadd.f32 %v3175, %v3968
    %3970 = vmatprep.mubr.bf16.mxu0 %v3031
    %3971 = vmatmul.mubr.bf16.gmra.mxu0 %v3030
    %v3972 = vpop.f32.mrf.mxu0
    %v3973 = vadd.f32 %v3171, %v3972
    %v3974 = vpop.f32.mrf.mxu0
    %v3975 = vadd.f32 %v3175, %v3974
    %v3976 = vpop.f32.mrf.mxu0
    %v3977 = vadd.f32 %v3171, %v3976
    %v3978 = vpop.f32.mrf.mxu0
    %v3979 = vadd.f32 %v3175, %v3978
    %3980 = vmatprep.mubr.bf16.mxu0 %v3035
    %3981 = vmatmul.mubr.bf16.gmra.mxu0 %v3034
    %v3982 = vpop.f32.mrf.mxu0
    %v3983 = vadd.f32 %v3171, %v3982
    %v3984 = vpop.f32.mrf.mxu0
    %v3985 = vadd.f32 %v3175, %v3984
    %v3986 = vpop.f32.mrf.mxu0
    %v3987 = vpop.f32.mrf.mxu0
    %3988 = vdwg.mxu0
    %3989 = vmatprep.subr.bf16.mxu0 %v3665
    %3990 = vmatpush1.bf16.msra.mxu0 %v3664
    %3991 = vmatprep.subr.bf16.mxu0 %v3661
    %3992 = vmatpush1.bf16.msra.mxu0 %v3660
    %3993 = vmatprep.subr.bf16.mxu0 %v3657
    %3994 = vmatpush1.bf16.msra.mxu0 %v3656
    %3995 = vmatprep.subr.bf16.mxu0 %v3653
    %3996 = vmatpush1.bf16.msra.mxu0 %v3652
    %3997 = vmatprep.subr.bf16.mxu0 %v3649
    %3998 = vmatpush1.bf16.msra.mxu0 %v3648
    %3999 = vmatprep.subr.bf16.mxu0 %v3645
    %4000 = vmatpush1.bf16.msra.mxu0 %v3644
    %4001 = vmatprep.subr.bf16.mxu0 %v3641
    %4002 = vmatpush1.bf16.msra.mxu0 %v3640
    %4003 = vmatprep.subr.bf16.mxu0 %v3637
    %4004 = vmatpush1.bf16.msra.mxu0 %v3636
    %4005 = vmatprep.subr.bf16.mxu0 %v3697
    %4006 = vmatpush2.bf16.msra.mxu0 %v3696
    %4007 = vmatprep.subr.bf16.mxu0 %v3693
    %4008 = vmatpush2.bf16.msra.mxu0 %v3692
    %4009 = vmatprep.subr.bf16.mxu0 %v3689
    %4010 = vmatpush2.bf16.msra.mxu0 %v3688
    %4011 = vmatprep.subr.bf16.mxu0 %v3685
    %4012 = vmatpush2.bf16.msra.mxu0 %v3684
    %4013 = vmatprep.subr.bf16.mxu0 %v3681
    %4014 = vmatpush2.bf16.msra.mxu0 %v3680
    %4015 = vmatprep.subr.bf16.mxu0 %v3677
    %4016 = vmatpush2.bf16.msra.mxu0 %v3676
    %4017 = vmatprep.subr.bf16.mxu0 %v3673
    %4018 = vmatpush2.bf16.msra.mxu0 %v3672
    %4019 = vmatprep.subr.bf16.mxu0 %v3669
    %4020 = vmatpush2.bf16.msra.mxu0 %v3668
    %4021 = vmatprep.mubr.bf16.mxu0 %v2989
    %4022 = vmatmul.mubr.bf16.gmra.mxu0 %v2988
    %v4023 = vpop.f32.mrf.mxu0
    %v4024 = vadd.f32 %v3863, %v4023
    %v4025 = vpop.f32.mrf.mxu0
    %v4026 = vadd.f32 %v3865, %v4025
    %v4027 = vpop.f32.mrf.mxu0
    %v4028 = vadd.f32 %v3867, %v4027
    %v4029 = vpop.f32.mrf.mxu0
    %v4030 = vadd.f32 %v3869, %v4029
    %4031 = vmatprep.mubr.bf16.mxu0 %v2993
    %4032 = vmatmul.mubr.bf16.gmra.mxu0 %v2992
    %v4033 = vpop.f32.mrf.mxu0
    %v4034 = vadd.f32 %v3873, %v4033
    %v4035 = vpop.f32.mrf.mxu0
    %v4036 = vadd.f32 %v3875, %v4035
    %v4037 = vpop.f32.mrf.mxu0
    %v4038 = vadd.f32 %v3877, %v4037
    %v4039 = vpop.f32.mrf.mxu0
    %v4040 = vadd.f32 %v3879, %v4039
    %4041 = vmatprep.mubr.bf16.mxu0 %v2997
    %4042 = vmatmul.mubr.bf16.gmra.mxu0 %v2996
    %v4043 = vpop.f32.mrf.mxu0
    %v4044 = vadd.f32 %v3883, %v4043
    %v4045 = vpop.f32.mrf.mxu0
    %v4046 = vadd.f32 %v3885, %v4045
    %v4047 = vpop.f32.mrf.mxu0
    %v4048 = vadd.f32 %v3887, %v4047
    %v4049 = vpop.f32.mrf.mxu0
    %v4050 = vadd.f32 %v3889, %v4049
    %4051 = vmatprep.mubr.bf16.mxu0 %v3001
    %4052 = vmatmul.mubr.bf16.gmra.mxu0 %v3000
    %v4053 = vpop.f32.mrf.mxu0
    %v4054 = vadd.f32 %v3893, %v4053
    %v4055 = vpop.f32.mrf.mxu0
    %v4056 = vadd.f32 %v3895, %v4055
    %v4057 = vpop.f32.mrf.mxu0
    %v4058 = vadd.f32 %v3897, %v4057
    %v4059 = vpop.f32.mrf.mxu0
    %v4060 = vadd.f32 %v3899, %v4059
    %4061 = vmatprep.mubr.bf16.mxu0 %v3005
    %4062 = vmatmul.mubr.bf16.gmra.mxu0 %v3004
    %v4063 = vpop.f32.mrf.mxu0
    %v4064 = vadd.f32 %v3903, %v4063
    %v4065 = vpop.f32.mrf.mxu0
    %v4066 = vadd.f32 %v3905, %v4065
    %v4067 = vpop.f32.mrf.mxu0
    %v4068 = vadd.f32 %v3907, %v4067
    %v4069 = vpop.f32.mrf.mxu0
    %v4070 = vadd.f32 %v3909, %v4069
    %4071 = vmatprep.mubr.bf16.mxu0 %v3009
    %4072 = vmatmul.mubr.bf16.gmra.mxu0 %v3008
    %v4073 = vpop.f32.mrf.mxu0
    %v4074 = vadd.f32 %v3913, %v4073
    %v4075 = vpop.f32.mrf.mxu0
    %v4076 = vadd.f32 %v3915, %v4075
    %v4077 = vpop.f32.mrf.mxu0
    %v4078 = vadd.f32 %v3917, %v4077
    %v4079 = vpop.f32.mrf.mxu0
    %v4080 = vadd.f32 %v3919, %v4079
    %4081 = vmatprep.mubr.bf16.mxu0 %v3013
    %4082 = vmatmul.mubr.bf16.gmra.mxu0 %v3012
    %v4083 = vpop.f32.mrf.mxu0
    %v4084 = vadd.f32 %v3923, %v4083
    %v4085 = vpop.f32.mrf.mxu0
    %v4086 = vadd.f32 %v3925, %v4085
    %v4087 = vpop.f32.mrf.mxu0
    %v4088 = vadd.f32 %v3927, %v4087
    %v4089 = vpop.f32.mrf.mxu0
    %v4090 = vadd.f32 %v3929, %v4089
    %4091 = vmatprep.mubr.bf16.mxu0 %v3017
    %4092 = vmatmul.mubr.bf16.gmra.mxu0 %v3016
    %v4093 = vpop.f32.mrf.mxu0
    %v4094 = vadd.f32 %v3933, %v4093
    %v4095 = vpop.f32.mrf.mxu0
    %v4096 = vadd.f32 %v3935, %v4095
    %v4097 = vpop.f32.mrf.mxu0
    %v4098 = vadd.f32 %v3937, %v4097
    %v4099 = vpop.f32.mrf.mxu0
    %v4100 = vadd.f32 %v3939, %v4099
    %4101 = vmatprep.mubr.bf16.mxu0 %v3021
    %4102 = vmatmul.mubr.bf16.gmra.mxu0 %v3020
    %v4103 = vpop.f32.mrf.mxu0
    %v4104 = vadd.f32 %v3943, %v4103
    %v4105 = vpop.f32.mrf.mxu0
    %v4106 = vadd.f32 %v3945, %v4105
    %v4107 = vpop.f32.mrf.mxu0
    %v4108 = vadd.f32 %v3947, %v4107
    %v4109 = vpop.f32.mrf.mxu0
    %v4110 = vadd.f32 %v3949, %v4109
    %4111 = vmatprep.mubr.bf16.mxu0 %v3025
    %4112 = vmatmul.mubr.bf16.gmra.mxu0 %v3024
    %v4113 = vpop.f32.mrf.mxu0
    %v4114 = vadd.f32 %v3953, %v4113
    %v4115 = vpop.f32.mrf.mxu0
    %v4116 = vadd.f32 %v3955, %v4115
    %v4117 = vpop.f32.mrf.mxu0
    %v4118 = vadd.f32 %v3957, %v4117
    %v4119 = vpop.f32.mrf.mxu0
    %v4120 = vadd.f32 %v3959, %v4119
    %4121 = vmatprep.mubr.bf16.mxu0 %v3029
    %4122 = vmatmul.mubr.bf16.gmra.mxu0 %v3028
    %v4123 = vpop.f32.mrf.mxu0
    %v4124 = vadd.f32 %v3963, %v4123
    %v4125 = vpop.f32.mrf.mxu0
    %v4126 = vadd.f32 %v3965, %v4125
    %v4127 = vpop.f32.mrf.mxu0
    %v4128 = vadd.f32 %v3967, %v4127
    %v4129 = vpop.f32.mrf.mxu0
    %v4130 = vadd.f32 %v3969, %v4129
    %4131 = vmatprep.mubr.bf16.mxu0 %v3033
    %4132 = vmatmul.mubr.bf16.gmra.mxu0 %v3032
    %v4133 = vpop.f32.mrf.mxu0
    %v4134 = vadd.f32 %v3973, %v4133
    %v4135 = vpop.f32.mrf.mxu0
    %v4136 = vadd.f32 %v3975, %v4135
    %v4137 = vpop.f32.mrf.mxu0
    %v4138 = vadd.f32 %v3977, %v4137
    %v4139 = vpop.f32.mrf.mxu0
    %v4140 = vadd.f32 %v3979, %v4139
    %4141 = vmatprep.mubr.bf16.mxu0 %v3037
    %4142 = vmatmul.mubr.bf16.gmra.mxu0 %v3036
    %v4143 = vpop.f32.mrf.mxu0
    %v4144 = vadd.f32 %v3983, %v4143
    %v4145 = vpop.f32.mrf.mxu0
    %v4146 = vadd.f32 %v3985, %v4145
    %v4147 = vpop.f32.mrf.mxu0
    %v4148 = vpop.f32.mrf.mxu0
    %4149 = vdwg.mxu0
    %4150 = vmatprep.subr.bf16.mxu0 %v3603
    %4151 = vmatpush1.bf16.msra.mxu0 %v3602
    %4152 = vmatprep.subr.bf16.mxu0 %v3599
    %4153 = vmatpush1.bf16.msra.mxu0 %v3598
    %4154 = vmatprep.subr.bf16.mxu0 %v3595
    %4155 = vmatpush1.bf16.msra.mxu0 %v3594
    %4156 = vmatprep.subr.bf16.mxu0 %v3591
    %4157 = vmatpush1.bf16.msra.mxu0 %v3590
    %4158 = vmatprep.subr.bf16.mxu0 %v3587
    %4159 = vmatpush1.bf16.msra.mxu0 %v3586
    %4160 = vmatprep.subr.bf16.mxu0 %v3583
    %4161 = vmatpush1.bf16.msra.mxu0 %v3582
    %4162 = vmatprep.subr.bf16.mxu0 %v3579
    %4163 = vmatpush1.bf16.msra.mxu0 %v3578
    %4164 = vmatprep.subr.bf16.mxu0 %v3575
    %4165 = vmatpush1.bf16.msra.mxu0 %v3574
    %4166 = vmatprep.subr.bf16.mxu0 %v3635
    %4167 = vmatpush2.bf16.msra.mxu0 %v3634
    %4168 = vmatprep.subr.bf16.mxu0 %v3631
    %4169 = vmatpush2.bf16.msra.mxu0 %v3630
    %4170 = vmatprep.subr.bf16.mxu0 %v3627
    %4171 = vmatpush2.bf16.msra.mxu0 %v3626
    %4172 = vmatprep.subr.bf16.mxu0 %v3623
    %4173 = vmatpush2.bf16.msra.mxu0 %v3622
    %4174 = vmatprep.subr.bf16.mxu0 %v3619
    %4175 = vmatpush2.bf16.msra.mxu0 %v3618
    %4176 = vmatprep.subr.bf16.mxu0 %v3615
    %4177 = vmatpush2.bf16.msra.mxu0 %v3614
    %4178 = vmatprep.subr.bf16.mxu0 %v3611
    %4179 = vmatpush2.bf16.msra.mxu0 %v3610
    %4180 = vmatprep.subr.bf16.mxu0 %v3607
    %4181 = vmatpush2.bf16.msra.mxu0 %v3606
    %4182 = vmatprep.mubr.bf16.mxu0 %v2987
    %4183 = vmatmul.mubr.bf16.gmra.mxu0 %v2986
    %v4184 = vpop.f32.mrf.mxu0
    %v4185 = vadd.f32 %v3179, %v4184
    %v4186 = vpop.f32.mrf.mxu0
    %v4187 = vadd.f32 %v3183, %v4186
    %v4188 = vpop.f32.mrf.mxu0
    %v4189 = vadd.f32 %v3179, %v4188
    %v4190 = vpop.f32.mrf.mxu0
    %v4191 = vadd.f32 %v3183, %v4190
    %4192 = vmatprep.mubr.bf16.mxu0 %v2991
    %4193 = vmatmul.mubr.bf16.gmra.mxu0 %v2990
    %v4194 = vpop.f32.mrf.mxu0
    %v4195 = vadd.f32 %v3179, %v4194
    %v4196 = vpop.f32.mrf.mxu0
    %v4197 = vadd.f32 %v3183, %v4196
    %v4198 = vpop.f32.mrf.mxu0
    %v4199 = vadd.f32 %v3179, %v4198
    %v4200 = vpop.f32.mrf.mxu0
    %v4201 = vadd.f32 %v3183, %v4200
    %4202 = vmatprep.mubr.bf16.mxu0 %v2995
    %4203 = vmatmul.mubr.bf16.gmra.mxu0 %v2994
    %v4204 = vpop.f32.mrf.mxu0
    %v4205 = vadd.f32 %v3179, %v4204
    %v4206 = vpop.f32.mrf.mxu0
    %v4207 = vadd.f32 %v3183, %v4206
    %v4208 = vpop.f32.mrf.mxu0
    %v4209 = vadd.f32 %v3179, %v4208
    %v4210 = vpop.f32.mrf.mxu0
    %v4211 = vadd.f32 %v3183, %v4210
    %4212 = vmatprep.mubr.bf16.mxu0 %v2999
    %4213 = vmatmul.mubr.bf16.gmra.mxu0 %v2998
    %v4214 = vpop.f32.mrf.mxu0
    %v4215 = vadd.f32 %v3179, %v4214
    %v4216 = vpop.f32.mrf.mxu0
    %v4217 = vadd.f32 %v3183, %v4216
    %v4218 = vpop.f32.mrf.mxu0
    %v4219 = vadd.f32 %v3179, %v4218
    %v4220 = vpop.f32.mrf.mxu0
    %v4221 = vadd.f32 %v3183, %v4220
    %4222 = vmatprep.mubr.bf16.mxu0 %v3003
    %4223 = vmatmul.mubr.bf16.gmra.mxu0 %v3002
    %v4224 = vpop.f32.mrf.mxu0
    %v4225 = vadd.f32 %v3179, %v4224
    %v4226 = vpop.f32.mrf.mxu0
    %v4227 = vadd.f32 %v3183, %v4226
    %v4228 = vpop.f32.mrf.mxu0
    %v4229 = vadd.f32 %v3179, %v4228
    %v4230 = vpop.f32.mrf.mxu0
    %v4231 = vadd.f32 %v3183, %v4230
    %4232 = vmatprep.mubr.bf16.mxu0 %v3007
    %4233 = vmatmul.mubr.bf16.gmra.mxu0 %v3006
    %v4234 = vpop.f32.mrf.mxu0
    %v4235 = vadd.f32 %v3179, %v4234
    %v4236 = vpop.f32.mrf.mxu0
    %v4237 = vadd.f32 %v3183, %v4236
    %v4238 = vpop.f32.mrf.mxu0
    %v4239 = vadd.f32 %v3179, %v4238
    %v4240 = vpop.f32.mrf.mxu0
    %v4241 = vadd.f32 %v3183, %v4240
    %4242 = vmatprep.mubr.bf16.mxu0 %v3011
    %4243 = vmatmul.mubr.bf16.gmra.mxu0 %v3010
    %v4244 = vpop.f32.mrf.mxu0
    %v4245 = vadd.f32 %v3179, %v4244
    %v4246 = vpop.f32.mrf.mxu0
    %v4247 = vadd.f32 %v3183, %v4246
    %v4248 = vpop.f32.mrf.mxu0
    %v4249 = vadd.f32 %v3179, %v4248
    %v4250 = vpop.f32.mrf.mxu0
    %v4251 = vadd.f32 %v3183, %v4250
    %4252 = vmatprep.mubr.bf16.mxu0 %v3015
    %4253 = vmatmul.mubr.bf16.gmra.mxu0 %v3014
    %v4254 = vpop.f32.mrf.mxu0
    %v4255 = vadd.f32 %v3179, %v4254
    %v4256 = vpop.f32.mrf.mxu0
    %v4257 = vadd.f32 %v3183, %v4256
    %v4258 = vpop.f32.mrf.mxu0
    %v4259 = vadd.f32 %v3179, %v4258
    %v4260 = vpop.f32.mrf.mxu0
    %v4261 = vadd.f32 %v3183, %v4260
    %4262 = vmatprep.mubr.bf16.mxu0 %v3019
    %4263 = vmatmul.mubr.bf16.gmra.mxu0 %v3018
    %v4264 = vpop.f32.mrf.mxu0
    %v4265 = vadd.f32 %v3179, %v4264
    %v4266 = vpop.f32.mrf.mxu0
    %v4267 = vadd.f32 %v3183, %v4266
    %v4268 = vpop.f32.mrf.mxu0
    %v4269 = vadd.f32 %v3179, %v4268
    %v4270 = vpop.f32.mrf.mxu0
    %v4271 = vadd.f32 %v3183, %v4270
    %4272 = vmatprep.mubr.bf16.mxu0 %v3023
    %4273 = vmatmul.mubr.bf16.gmra.mxu0 %v3022
    %v4274 = vpop.f32.mrf.mxu0
    %v4275 = vadd.f32 %v3179, %v4274
    %v4276 = vpop.f32.mrf.mxu0
    %v4277 = vadd.f32 %v3183, %v4276
    %v4278 = vpop.f32.mrf.mxu0
    %v4279 = vadd.f32 %v3179, %v4278
    %v4280 = vpop.f32.mrf.mxu0
    %v4281 = vadd.f32 %v3183, %v4280
    %4282 = vmatprep.mubr.bf16.mxu0 %v3027
    %4283 = vmatmul.mubr.bf16.gmra.mxu0 %v3026
    %v4284 = vpop.f32.mrf.mxu0
    %v4285 = vadd.f32 %v3179, %v4284
    %v4286 = vpop.f32.mrf.mxu0
    %v4287 = vadd.f32 %v3183, %v4286
    %v4288 = vpop.f32.mrf.mxu0
    %v4289 = vadd.f32 %v3179, %v4288
    %v4290 = vpop.f32.mrf.mxu0
    %v4291 = vadd.f32 %v3183, %v4290
    %4292 = vmatprep.mubr.bf16.mxu0 %v3031
    %4293 = vmatmul.mubr.bf16.gmra.mxu0 %v3030
    %v4294 = vpop.f32.mrf.mxu0
    %v4295 = vadd.f32 %v3179, %v4294
    %v4296 = vpop.f32.mrf.mxu0
    %v4297 = vadd.f32 %v3183, %v4296
    %v4298 = vpop.f32.mrf.mxu0
    %v4299 = vadd.f32 %v3179, %v4298
    %v4300 = vpop.f32.mrf.mxu0
    %v4301 = vadd.f32 %v3183, %v4300
    %4302 = vmatprep.mubr.bf16.mxu0 %v3035
    %4303 = vmatmul.mubr.bf16.gmra.mxu0 %v3034
    %v4304 = vpop.f32.mrf.mxu0
    %v4305 = vadd.f32 %v3179, %v4304
    %v4306 = vpop.f32.mrf.mxu0
    %v4307 = vadd.f32 %v3183, %v4306
    %v4308 = vpop.f32.mrf.mxu0
    %v4309 = vpop.f32.mrf.mxu0
    %4310 = vdwg.mxu0
    %4311 = vmatprep.subr.bf16.mxu0 %v3667
    %4312 = vmatpush1.bf16.msra.mxu0 %v3666
    %4313 = vmatprep.subr.bf16.mxu0 %v3663
    %4314 = vmatpush1.bf16.msra.mxu0 %v3662
    %4315 = vmatprep.subr.bf16.mxu0 %v3659
    %4316 = vmatpush1.bf16.msra.mxu0 %v3658
    %4317 = vmatprep.subr.bf16.mxu0 %v3655
    %4318 = vmatpush1.bf16.msra.mxu0 %v3654
    %4319 = vmatprep.subr.bf16.mxu0 %v3651
    %4320 = vmatpush1.bf16.msra.mxu0 %v3650
    %4321 = vmatprep.subr.bf16.mxu0 %v3647
    %4322 = vmatpush1.bf16.msra.mxu0 %v3646
    %4323 = vmatprep.subr.bf16.mxu0 %v3643
    %4324 = vmatpush1.bf16.msra.mxu0 %v3642
    %4325 = vmatprep.subr.bf16.mxu0 %v3639
    %4326 = vmatpush1.bf16.msra.mxu0 %v3638
    %4327 = vmatprep.subr.bf16.mxu0 %v3699
    %4328 = vmatpush2.bf16.msra.mxu0 %v3698
    %4329 = vmatprep.subr.bf16.mxu0 %v3695
    %4330 = vmatpush2.bf16.msra.mxu0 %v3694
    %4331 = vmatprep.subr.bf16.mxu0 %v3691
    %4332 = vmatpush2.bf16.msra.mxu0 %v3690
    %4333 = vmatprep.subr.bf16.mxu0 %v3687
    %4334 = vmatpush2.bf16.msra.mxu0 %v3686
    %4335 = vmatprep.subr.bf16.mxu0 %v3683
    %4336 = vmatpush2.bf16.msra.mxu0 %v3682
    %4337 = vmatprep.subr.bf16.mxu0 %v3679
    %4338 = vmatpush2.bf16.msra.mxu0 %v3678
    %4339 = vmatprep.subr.bf16.mxu0 %v3675
    %4340 = vmatpush2.bf16.msra.mxu0 %v3674
    %4341 = vmatprep.subr.bf16.mxu0 %v3671
    %4342 = vmatpush2.bf16.msra.mxu0 %v3670
    %4343 = vmatprep.mubr.bf16.mxu0 %v2989
    %4344 = vmatmul.mubr.bf16.gmra.mxu0 %v2988
    %v4345 = vpop.f32.mrf.mxu0
    %v4346 = vadd.f32 %v4185, %v4345
    %v4347 = vpop.f32.mrf.mxu0
    %v4348 = vadd.f32 %v4187, %v4347
    %v4349 = vpop.f32.mrf.mxu0
    %v4350 = vadd.f32 %v4189, %v4349
    %v4351 = vpop.f32.mrf.mxu0
    %v4352 = vadd.f32 %v4191, %v4351
    %4353 = vmatprep.mubr.bf16.mxu0 %v2993
    %4354 = vmatmul.mubr.bf16.gmra.mxu0 %v2992
    %v4355 = vpop.f32.mrf.mxu0
    %v4356 = vadd.f32 %v4195, %v4355
    %v4357 = vpop.f32.mrf.mxu0
    %v4358 = vadd.f32 %v4197, %v4357
    %v4359 = vpop.f32.mrf.mxu0
    %v4360 = vadd.f32 %v4199, %v4359
    %v4361 = vpop.f32.mrf.mxu0
    %v4362 = vadd.f32 %v4201, %v4361
    %4363 = vmatprep.mubr.bf16.mxu0 %v2997
    %4364 = vmatmul.mubr.bf16.gmra.mxu0 %v2996
    %v4365 = vpop.f32.mrf.mxu0
    %v4366 = vadd.f32 %v4205, %v4365
    %v4367 = vpop.f32.mrf.mxu0
    %v4368 = vadd.f32 %v4207, %v4367
    %v4369 = vpop.f32.mrf.mxu0
    %v4370 = vadd.f32 %v4209, %v4369
    %v4371 = vpop.f32.mrf.mxu0
    %v4372 = vadd.f32 %v4211, %v4371
    %4373 = vmatprep.mubr.bf16.mxu0 %v3001
    %4374 = vmatmul.mubr.bf16.gmra.mxu0 %v3000
    %v4375 = vpop.f32.mrf.mxu0
    %v4376 = vadd.f32 %v4215, %v4375
    %v4377 = vpop.f32.mrf.mxu0
    %v4378 = vadd.f32 %v4217, %v4377
    %v4379 = vpop.f32.mrf.mxu0
    %v4380 = vadd.f32 %v4219, %v4379
    %v4381 = vpop.f32.mrf.mxu0
    %v4382 = vadd.f32 %v4221, %v4381
    %4383 = vmatprep.mubr.bf16.mxu0 %v3005
    %4384 = vmatmul.mubr.bf16.gmra.mxu0 %v3004
    %v4385 = vpop.f32.mrf.mxu0
    %v4386 = vadd.f32 %v4225, %v4385
    %v4387 = vpop.f32.mrf.mxu0
    %v4388 = vadd.f32 %v4227, %v4387
    %v4389 = vpop.f32.mrf.mxu0
    %v4390 = vadd.f32 %v4229, %v4389
    %v4391 = vpop.f32.mrf.mxu0
    %v4392 = vadd.f32 %v4231, %v4391
    %4393 = vmatprep.mubr.bf16.mxu0 %v3009
    %4394 = vmatmul.mubr.bf16.gmra.mxu0 %v3008
    %v4395 = vpop.f32.mrf.mxu0
    %v4396 = vadd.f32 %v4235, %v4395
    %v4397 = vpop.f32.mrf.mxu0
    %v4398 = vadd.f32 %v4237, %v4397
    %v4399 = vpop.f32.mrf.mxu0
    %v4400 = vadd.f32 %v4239, %v4399
    %v4401 = vpop.f32.mrf.mxu0
    %v4402 = vadd.f32 %v4241, %v4401
    %4403 = vmatprep.mubr.bf16.mxu0 %v3013
    %4404 = vmatmul.mubr.bf16.gmra.mxu0 %v3012
    %v4405 = vpop.f32.mrf.mxu0
    %v4406 = vadd.f32 %v4245, %v4405
    %v4407 = vpop.f32.mrf.mxu0
    %v4408 = vadd.f32 %v4247, %v4407
    %v4409 = vpop.f32.mrf.mxu0
    %v4410 = vadd.f32 %v4249, %v4409
    %v4411 = vpop.f32.mrf.mxu0
    %v4412 = vadd.f32 %v4251, %v4411
    %4413 = vmatprep.mubr.bf16.mxu0 %v3017
    %4414 = vmatmul.mubr.bf16.gmra.mxu0 %v3016
    %v4415 = vpop.f32.mrf.mxu0
    %v4416 = vadd.f32 %v4255, %v4415
    %v4417 = vpop.f32.mrf.mxu0
    %v4418 = vadd.f32 %v4257, %v4417
    %v4419 = vpop.f32.mrf.mxu0
    %v4420 = vadd.f32 %v4259, %v4419
    %v4421 = vpop.f32.mrf.mxu0
    %v4422 = vadd.f32 %v4261, %v4421
    %4423 = vmatprep.mubr.bf16.mxu0 %v3021
    %4424 = vmatmul.mubr.bf16.gmra.mxu0 %v3020
    %v4425 = vpop.f32.mrf.mxu0
    %v4426 = vadd.f32 %v4265, %v4425
    %v4427 = vpop.f32.mrf.mxu0
    %v4428 = vadd.f32 %v4267, %v4427
    %v4429 = vpop.f32.mrf.mxu0
    %v4430 = vadd.f32 %v4269, %v4429
    %v4431 = vpop.f32.mrf.mxu0
    %v4432 = vadd.f32 %v4271, %v4431
    %4433 = vmatprep.mubr.bf16.mxu0 %v3025
    %4434 = vmatmul.mubr.bf16.gmra.mxu0 %v3024
    %v4435 = vpop.f32.mrf.mxu0
    %v4436 = vadd.f32 %v4275, %v4435
    %v4437 = vpop.f32.mrf.mxu0
    %v4438 = vadd.f32 %v4277, %v4437
    %v4439 = vpop.f32.mrf.mxu0
    %v4440 = vadd.f32 %v4279, %v4439
    %v4441 = vpop.f32.mrf.mxu0
    %v4442 = vadd.f32 %v4281, %v4441
    %4443 = vmatprep.mubr.bf16.mxu0 %v3029
    %4444 = vmatmul.mubr.bf16.gmra.mxu0 %v3028
    %v4445 = vpop.f32.mrf.mxu0
    %v4446 = vadd.f32 %v4285, %v4445
    %v4447 = vpop.f32.mrf.mxu0
    %v4448 = vadd.f32 %v4287, %v4447
    %v4449 = vpop.f32.mrf.mxu0
    %v4450 = vadd.f32 %v4289, %v4449
    %v4451 = vpop.f32.mrf.mxu0
    %v4452 = vadd.f32 %v4291, %v4451
    %4453 = vmatprep.mubr.bf16.mxu0 %v3033
    %4454 = vmatmul.mubr.bf16.gmra.mxu0 %v3032
    %v4455 = vpop.f32.mrf.mxu0
    %v4456 = vadd.f32 %v4295, %v4455
    %v4457 = vpop.f32.mrf.mxu0
    %v4458 = vadd.f32 %v4297, %v4457
    %v4459 = vpop.f32.mrf.mxu0
    %v4460 = vadd.f32 %v4299, %v4459
    %v4461 = vpop.f32.mrf.mxu0
    %v4462 = vadd.f32 %v4301, %v4461
    %4463 = vmatprep.mubr.bf16.mxu0 %v3037
    %4464 = vmatmul.mubr.bf16.gmra.mxu0 %v3036
    %v4465 = vpop.f32.mrf.mxu0
    %v4466 = vadd.f32 %v4305, %v4465
    %v4467 = vpop.f32.mrf.mxu0
    %v4468 = vadd.f32 %v4307, %v4467
    %v4469 = vpop.f32.mrf.mxu0
    %v4470 = vpop.f32.mrf.mxu0
    %4471 = vdwg.mxu0
    %v4472 = vmax.f32 %v4024, 0.0
    %v4473 = vmax.f32 %v4026, 0.0
    %v4474 = vmax.f32 %v4346, 0.0
    %v4475 = vmax.f32 %v4348, 0.0
    %v4476 = vmax.f32 %v4028, 0.0
    %v4477 = vmax.f32 %v4030, 0.0
    %v4478 = vmax.f32 %v4350, 0.0
    %v4479 = vmax.f32 %v4352, 0.0
    %v4480 = vmax.f32 %v4034, 0.0
    %v4481 = vmax.f32 %v4036, 0.0
    %v4482 = vmax.f32 %v4356, 0.0
    %v4483 = vmax.f32 %v4358, 0.0
    %v4484 = vmax.f32 %v4038, 0.0
    %v4485 = vmax.f32 %v4040, 0.0
    %v4486 = vmax.f32 %v4360, 0.0
    %v4487 = vmax.f32 %v4362, 0.0
    %v4488 = vmax.f32 %v4044, 0.0
    %v4489 = vmax.f32 %v4046, 0.0
    %v4490 = vmax.f32 %v4366, 0.0
    %v4491 = vmax.f32 %v4368, 0.0
    %v4492 = vmax.f32 %v4048, 0.0
    %v4493 = vmax.f32 %v4050, 0.0
    %v4494 = vmax.f32 %v4370, 0.0
    %v4495 = vmax.f32 %v4372, 0.0
    %v4496 = vmax.f32 %v4054, 0.0
    %v4497 = vmax.f32 %v4056, 0.0
    %v4498 = vmax.f32 %v4376, 0.0
    %v4499 = vmax.f32 %v4378, 0.0
    %v4500 = vmax.f32 %v4058, 0.0
    %v4501 = vmax.f32 %v4060, 0.0
    %v4502 = vmax.f32 %v4380, 0.0
    %v4503 = vmax.f32 %v4382, 0.0
    %v4504 = vmax.f32 %v4064, 0.0
    %v4505 = vmax.f32 %v4066, 0.0
    %v4506 = vmax.f32 %v4386, 0.0
    %v4507 = vmax.f32 %v4388, 0.0
    %v4508 = vmax.f32 %v4068, 0.0
    %v4509 = vmax.f32 %v4070, 0.0
    %v4510 = vmax.f32 %v4390, 0.0
    %v4511 = vmax.f32 %v4392, 0.0
    %v4512 = vmax.f32 %v4074, 0.0
    %v4513 = vmax.f32 %v4076, 0.0
    %v4514 = vmax.f32 %v4396, 0.0
    %v4515 = vmax.f32 %v4398, 0.0
    %v4516 = vmax.f32 %v4078, 0.0
    %v4517 = vmax.f32 %v4080, 0.0
    %v4518 = vmax.f32 %v4400, 0.0
    %v4519 = vmax.f32 %v4402, 0.0
    %v4520 = vmax.f32 %v4084, 0.0
    %v4521 = vmax.f32 %v4086, 0.0
    %v4522 = vmax.f32 %v4406, 0.0
    %v4523 = vmax.f32 %v4408, 0.0
    %v4524 = vmax.f32 %v4088, 0.0
    %v4525 = vmax.f32 %v4090, 0.0
    %v4526 = vmax.f32 %v4410, 0.0
    %v4527 = vmax.f32 %v4412, 0.0
    %v4528 = vmax.f32 %v4094, 0.0
    %v4529 = vmax.f32 %v4096, 0.0
    %v4530 = vmax.f32 %v4416, 0.0
    %v4531 = vmax.f32 %v4418, 0.0
    %v4532 = vmax.f32 %v4098, 0.0
    %v4533 = vmax.f32 %v4100, 0.0
    %v4534 = vmax.f32 %v4420, 0.0
    %v4535 = vmax.f32 %v4422, 0.0
    %v4536 = vmax.f32 %v4104, 0.0
    %v4537 = vmax.f32 %v4106, 0.0
    %v4538 = vmax.f32 %v4426, 0.0
    %v4539 = vmax.f32 %v4428, 0.0
    %v4540 = vmax.f32 %v4108, 0.0
    %v4541 = vmax.f32 %v4110, 0.0
    %v4542 = vmax.f32 %v4430, 0.0
    %v4543 = vmax.f32 %v4432, 0.0
    %v4544 = vmax.f32 %v4114, 0.0
    %v4545 = vmax.f32 %v4116, 0.0
    %v4546 = vmax.f32 %v4436, 0.0
    %v4547 = vmax.f32 %v4438, 0.0
    %v4548 = vmax.f32 %v4118, 0.0
    %v4549 = vmax.f32 %v4120, 0.0
    %v4550 = vmax.f32 %v4440, 0.0
    %v4551 = vmax.f32 %v4442, 0.0
    %v4552 = vmax.f32 %v4124, 0.0
    %v4553 = vmax.f32 %v4126, 0.0
    %v4554 = vmax.f32 %v4446, 0.0
    %v4555 = vmax.f32 %v4448, 0.0
    %v4556 = vmax.f32 %v4128, 0.0
    %v4557 = vmax.f32 %v4130, 0.0
    %v4558 = vmax.f32 %v4450, 0.0
    %v4559 = vmax.f32 %v4452, 0.0
    %v4560 = vmax.f32 %v4134, 0.0
    %v4561 = vmax.f32 %v4136, 0.0
    %v4562 = vmax.f32 %v4456, 0.0
    %v4563 = vmax.f32 %v4458, 0.0
    %v4564 = vmax.f32 %v4138, 0.0
    %v4565 = vmax.f32 %v4140, 0.0
    %v4566 = vmax.f32 %v4460, 0.0
    %v4567 = vmax.f32 %v4462, 0.0
    %v4568 = vmax.f32 %v4144, 0.0
    %v4569 = vmax.f32 %v4146, 0.0
    %v4570 = vmax.f32 %v4466, 0.0
    %v4571 = vmax.f32 %v4468, 0.0
    %v4572 = vpack.c.bf16 %v4476, %v4472
    %v4573 = vpack.c.bf16 %v4477, %v4473
    %v4574 = vpack.c.bf16 %v4478, %v4474
    %v4575 = vpack.c.bf16 %v4479, %v4475
    %v4576 = vpack.c.bf16 %v4484, %v4480
    %v4577 = vpack.c.bf16 %v4485, %v4481
    %v4578 = vpack.c.bf16 %v4486, %v4482
    %v4579 = vpack.c.bf16 %v4487, %v4483
    %v4580 = vpack.c.bf16 %v4492, %v4488
    %v4581 = vpack.c.bf16 %v4493, %v4489
    %v4582 = vpack.c.bf16 %v4494, %v4490
    %v4583 = vpack.c.bf16 %v4495, %v4491
    %v4584 = vpack.c.bf16 %v4500, %v4496
    %v4585 = vpack.c.bf16 %v4501, %v4497
    %v4586 = vpack.c.bf16 %v4502, %v4498
    %v4587 = vpack.c.bf16 %v4503, %v4499
    %v4588 = vpack.c.bf16 %v4508, %v4504
    %v4589 = vpack.c.bf16 %v4509, %v4505
    %v4590 = vpack.c.bf16 %v4510, %v4506
    %v4591 = vpack.c.bf16 %v4511, %v4507
    %v4592 = vpack.c.bf16 %v4516, %v4512
    %v4593 = vpack.c.bf16 %v4517, %v4513
    %v4594 = vpack.c.bf16 %v4518, %v4514
    %v4595 = vpack.c.bf16 %v4519, %v4515
    %v4596 = vpack.c.bf16 %v4524, %v4520
    %v4597 = vpack.c.bf16 %v4525, %v4521
    %v4598 = vpack.c.bf16 %v4526, %v4522
    %v4599 = vpack.c.bf16 %v4527, %v4523
    %v4600 = vpack.c.bf16 %v4532, %v4528
    %v4601 = vpack.c.bf16 %v4533, %v4529
    %v4602 = vpack.c.bf16 %v4534, %v4530
    %v4603 = vpack.c.bf16 %v4535, %v4531
    %v4604 = vpack.c.bf16 %v4540, %v4536
    %v4605 = vpack.c.bf16 %v4541, %v4537
    %v4606 = vpack.c.bf16 %v4542, %v4538
    %v4607 = vpack.c.bf16 %v4543, %v4539
    %v4608 = vpack.c.bf16 %v4548, %v4544
    %v4609 = vpack.c.bf16 %v4549, %v4545
    %v4610 = vpack.c.bf16 %v4550, %v4546
    %v4611 = vpack.c.bf16 %v4551, %v4547
    %v4612 = vpack.c.bf16 %v4556, %v4552
    %v4613 = vpack.c.bf16 %v4557, %v4553
    %v4614 = vpack.c.bf16 %v4558, %v4554
    %v4615 = vpack.c.bf16 %v4559, %v4555
    %v4616 = vpack.c.bf16 %v4564, %v4560
    %v4617 = vpack.c.bf16 %v4565, %v4561
    %v4618 = vpack.c.bf16 %v4566, %v4562
    %v4619 = vpack.c.bf16 %v4567, %v4563
    %v4620 = vpack.c.bf16 %v4568, %v4568
    %v4621 = vpack.c.bf16 %v4569, %v4569
    %v4622 = vpack.c.bf16 %v4570, %v4570
    %v4623 = vpack.c.bf16 %v4571, %v4571
    %v4624 = vld [vmem:[#allocation10] sm:$0xf]
    %v4625 = vld [vmem:[#allocation10 + $0x4] sm:$0xf]
    %v4626 = vld [vmem:[#allocation10 + $0x8] sm:$0xf]
    %v4627 = vld [vmem:[#allocation10 + $0xc] sm:$0xf]
    %v4628 = vld [vmem:[#allocation10 + $0x10] sm:$0xf]
    %v4629 = vld [vmem:[#allocation10 + $0x14] sm:$0xf]
    %v4630 = vld [vmem:[#allocation10 + $0x18] sm:$0xf]
    %v4631 = vld [vmem:[#allocation10 + $0x1c] sm:$0xf]
    %v4632 = vld [vmem:[#allocation10 + $0x20] sm:$0xf]
    %v4633 = vld [vmem:[#allocation10 + $0x24] sm:$0xf]
    %v4634 = vld [vmem:[#allocation10 + $0x28] sm:$0xf]
    %v4635 = vld [vmem:[#allocation10 + $0x2c] sm:$0xf]
    %v4636 = vld [vmem:[#allocation10 + $0x30] sm:$0xf]
    %v4637 = vld [vmem:[#allocation10 + $0x34] sm:$0xf]
    %v4638 = vld [vmem:[#allocation10 + $0x38] sm:$0xf]
    %v4639 = vld [vmem:[#allocation10 + $0x3c] sm:$0xf]
    %v4640 = vld [vmem:[#allocation10 + $0x40] sm:$0xf]
    %v4641 = vld [vmem:[#allocation10 + $0x44] sm:$0xf]
    %v4642 = vld [vmem:[#allocation10 + $0x48] sm:$0xf]
    %v4643 = vld [vmem:[#allocation10 + $0x4c] sm:$0xf]
    %v4644 = vld [vmem:[#allocation10 + $0x50] sm:$0xf]
    %v4645 = vld [vmem:[#allocation10 + $0x54] sm:$0xf]
    %v4646 = vld [vmem:[#allocation10 + $0x58] sm:$0xf]
    %v4647 = vld [vmem:[#allocation10 + $0x5c] sm:$0xf]
    %v4648 = vld [vmem:[#allocation10 + $0x60] sm:$0xf]
    %v4649 = vld [vmem:[#allocation10 + $0x64] sm:$0xf]
    %v4650 = vld [vmem:[#allocation10 + $0x68] sm:$0xf]
    %v4651 = vld [vmem:[#allocation10 + $0x6c] sm:$0xf]
    %v4652 = vld [vmem:[#allocation10 + $0x70] sm:$0xf]
    %v4653 = vld [vmem:[#allocation10 + $0x74] sm:$0xf]
    %v4654 = vld [vmem:[#allocation10 + $0x78] sm:$0xf]
    %v4655 = vld [vmem:[#allocation10 + $0x7c] sm:$0xf]
    %v4656 = vld [vmem:[#allocation10 + $0x80] sm:$0xf]
    %v4657 = vld [vmem:[#allocation10 + $0x84] sm:$0xf]
    %v4658 = vld [vmem:[#allocation10 + $0x88] sm:$0xf]
    %v4659 = vld [vmem:[#allocation10 + $0x8c] sm:$0xf]
    %v4660 = vld [vmem:[#allocation10 + $0x90] sm:$0xf]
    %v4661 = vld [vmem:[#allocation10 + $0x94] sm:$0xf]
    %v4662 = vld [vmem:[#allocation10 + $0x98] sm:$0xf]
    %v4663 = vld [vmem:[#allocation10 + $0x9c] sm:$0xf]
    %v4664 = vld [vmem:[#allocation10 + $0xa0] sm:$0xf]
    %v4665 = vld [vmem:[#allocation10 + $0xa4] sm:$0xf]
    %v4666 = vld [vmem:[#allocation10 + $0xa8] sm:$0xf]
    %v4667 = vld [vmem:[#allocation10 + $0xac] sm:$0xf]
    %v4668 = vld [vmem:[#allocation10 + $0xb0] sm:$0xf]
    %v4669 = vld [vmem:[#allocation10 + $0xb4] sm:$0xf]
    %v4670 = vld [vmem:[#allocation10 + $0xb8] sm:$0xf]
    %v4671 = vld [vmem:[#allocation10 + $0xbc] sm:$0xf]
    %v4672 = vld [vmem:[#allocation10 + $0xc0] sm:$0xf]
    %v4673 = vld [vmem:[#allocation10 + $0xc4] sm:$0xf]
    %v4674 = vld [vmem:[#allocation10 + $0xc8] sm:$0xf]
    %v4675 = vld [vmem:[#allocation10 + $0xcc] sm:$0xf]
    %v4676 = vld [vmem:[#allocation10 + $0xd0] sm:$0xf]
    %v4677 = vld [vmem:[#allocation10 + $0xd4] sm:$0xf]
    %v4678 = vld [vmem:[#allocation10 + $0xd8] sm:$0xf]
    %v4679 = vld [vmem:[#allocation10 + $0xdc] sm:$0xf]
    %v4680 = vld [vmem:[#allocation10 + $0xe0] sm:$0xf]
    %v4681 = vld [vmem:[#allocation10 + $0xe4] sm:$0xf]
    %v4682 = vld [vmem:[#allocation10 + $0xe8] sm:$0xf]
    %v4683 = vld [vmem:[#allocation10 + $0xec] sm:$0xf]
    %v4684 = vld [vmem:[#allocation10 + $0xf0] sm:$0xf]
    %v4685 = vld [vmem:[#allocation10 + $0xf4] sm:$0xf]
    %v4686 = vld [vmem:[#allocation10 + $0xf8] sm:$0xf]
    %v4687 = vld [vmem:[#allocation10 + $0xfc] sm:$0xf]
    %v4688 = vld [vmem:[%s6] sm:$0x1]
    %v4690 = vlaneseq
    %v4691 = vshrl.u32 %v4690, 7
    %v4692 = vsub.s32 0, %v4691
    %v4693 = vrot.slane %v4688, %v4692
    %v4759 = vunpack.c.l.b16 %v4624
    %v4760 = vunpack.c.l.b16 %v4625
    %v4761 = vunpack.c.l.b16 %v4626
    %v4762 = vunpack.c.l.b16 %v4627
    %v4763 = vunpack.c.l.b16 %v4628
    %v4764 = vunpack.c.l.b16 %v4629
    %v4765 = vunpack.c.l.b16 %v4630
    %v4766 = vunpack.c.l.b16 %v4631
    %v4767 = vunpack.c.l.b16 %v4632
    %v4768 = vunpack.c.l.b16 %v4633
    %v4769 = vunpack.c.l.b16 %v4634
    %v4770 = vunpack.c.l.b16 %v4635
    %v4771 = vunpack.c.l.b16 %v4636
    %v4772 = vunpack.c.l.b16 %v4637
    %v4773 = vunpack.c.l.b16 %v4638
    %v4774 = vunpack.c.l.b16 %v4639
    %v4775 = vunpack.c.l.b16 %v4640
    %v4776 = vunpack.c.l.b16 %v4641
    %v4777 = vunpack.c.l.b16 %v4642
    %v4778 = vunpack.c.l.b16 %v4643
    %v4779 = vunpack.c.l.b16 %v4644
    %v4780 = vunpack.c.l.b16 %v4645
    %v4781 = vunpack.c.l.b16 %v4646
    %v4782 = vunpack.c.l.b16 %v4647
    %v4783 = vunpack.c.l.b16 %v4648
    %v4784 = vunpack.c.l.b16 %v4649
    %v4785 = vunpack.c.l.b16 %v4650
    %v4786 = vunpack.c.l.b16 %v4651
    %v4787 = vunpack.c.l.b16 %v4652
    %v4788 = vunpack.c.l.b16 %v4653
    %v4789 = vunpack.c.l.b16 %v4654
    %v4790 = vunpack.c.l.b16 %v4655
    %v4791 = vunpack.c.l.b16 %v4656
    %v4792 = vunpack.c.l.b16 %v4657
    %v4793 = vunpack.c.l.b16 %v4658
    %v4794 = vunpack.c.l.b16 %v4659
    %v4795 = vunpack.c.l.b16 %v4660
    %v4796 = vunpack.c.l.b16 %v4661
    %v4797 = vunpack.c.l.b16 %v4662
    %v4798 = vunpack.c.l.b16 %v4663
    %v4799 = vunpack.c.l.b16 %v4664
    %v4800 = vunpack.c.l.b16 %v4665
    %v4801 = vunpack.c.l.b16 %v4666
    %v4802 = vunpack.c.l.b16 %v4667
    %v4803 = vunpack.c.l.b16 %v4668
    %v4804 = vunpack.c.l.b16 %v4669
    %v4805 = vunpack.c.l.b16 %v4670
    %v4806 = vunpack.c.l.b16 %v4671
    %v4807 = vunpack.c.l.b16 %v4672
    %v4808 = vunpack.c.l.b16 %v4673
    %v4809 = vunpack.c.l.b16 %v4674
    %v4810 = vunpack.c.l.b16 %v4675
    %v4811 = vunpack.c.l.b16 %v4676
    %v4812 = vunpack.c.l.b16 %v4677
    %v4813 = vunpack.c.l.b16 %v4678
    %v4814 = vunpack.c.l.b16 %v4679
    %v4815 = vunpack.c.l.b16 %v4680
    %v4816 = vunpack.c.l.b16 %v4681
    %v4817 = vunpack.c.l.b16 %v4682
    %v4818 = vunpack.c.l.b16 %v4683
    %v4819 = vunpack.c.l.b16 %v4684
    %v4820 = vunpack.c.l.b16 %v4685
    %v4821 = vunpack.c.l.b16 %v4686
    %v4822 = vunpack.c.l.b16 %v4687
    %v4823 = vpack.c.b16 %v4760, %v4759
    %v4824 = vpack.c.b16 %v4762, %v4761
    %v4825 = vpack.c.b16 %v4764, %v4763
    %v4826 = vpack.c.b16 %v4766, %v4765
    %v4827 = vpack.c.b16 %v4768, %v4767
    %v4828 = vpack.c.b16 %v4770, %v4769
    %v4829 = vpack.c.b16 %v4772, %v4771
    %v4830 = vpack.c.b16 %v4774, %v4773
    %v4831 = vpack.c.b16 %v4776, %v4775
    %v4832 = vpack.c.b16 %v4778, %v4777
    %v4833 = vpack.c.b16 %v4780, %v4779
    %v4834 = vpack.c.b16 %v4782, %v4781
    %v4835 = vpack.c.b16 %v4784, %v4783
    %v4836 = vpack.c.b16 %v4786, %v4785
    %v4837 = vpack.c.b16 %v4788, %v4787
    %v4838 = vpack.c.b16 %v4790, %v4789
    %v4839 = vpack.c.b16 %v4792, %v4791
    %v4840 = vpack.c.b16 %v4794, %v4793
    %v4841 = vpack.c.b16 %v4796, %v4795
    %v4842 = vpack.c.b16 %v4798, %v4797
    %v4843 = vpack.c.b16 %v4800, %v4799
    %v4844 = vpack.c.b16 %v4802, %v4801
    %v4845 = vpack.c.b16 %v4804, %v4803
    %v4846 = vpack.c.b16 %v4806, %v4805
    %v4847 = vpack.c.b16 %v4808, %v4807
    %v4848 = vpack.c.b16 %v4810, %v4809
    %v4849 = vpack.c.b16 %v4812, %v4811
    %v4850 = vpack.c.b16 %v4814, %v4813
    %v4851 = vpack.c.b16 %v4816, %v4815
    %v4852 = vpack.c.b16 %v4818, %v4817
    %v4853 = vpack.c.b16 %v4820, %v4819
    %v4854 = vpack.c.b16 %v4822, %v4821
    %4887 = vmatprep.subr.bf16.mxu0 0
    %4888 = vmatpush1.bf16.msra.mxu0 %v4830
    %4889 = vmatprep.subr.bf16.mxu0 0
    %4890 = vmatpush1.bf16.msra.mxu0 %v4829
    %4891 = vmatprep.subr.bf16.mxu0 0
    %4892 = vmatpush1.bf16.msra.mxu0 %v4828
    %4893 = vmatprep.subr.bf16.mxu0 0
    %4894 = vmatpush1.bf16.msra.mxu0 %v4827
    %4895 = vmatprep.subr.bf16.mxu0 0
    %4896 = vmatpush1.bf16.msra.mxu0 %v4826
    %4897 = vmatprep.subr.bf16.mxu0 0
    %4898 = vmatpush1.bf16.msra.mxu0 %v4825
    %4899 = vmatprep.subr.bf16.mxu0 0
    %4900 = vmatpush1.bf16.msra.mxu0 %v4824
    %4901 = vmatprep.subr.bf16.mxu0 0
    %4902 = vmatpush1.bf16.msra.mxu0 %v4823
    %4903 = vmatprep.subr.bf16.mxu0 0
    %4904 = vmatpush2.bf16.msra.mxu0 %v4838
    %4905 = vmatprep.subr.bf16.mxu0 0
    %4906 = vmatpush2.bf16.msra.mxu0 %v4837
    %4907 = vmatprep.subr.bf16.mxu0 0
    %4908 = vmatpush2.bf16.msra.mxu0 %v4836
    %4909 = vmatprep.subr.bf16.mxu0 0
    %4910 = vmatpush2.bf16.msra.mxu0 %v4835
    %4911 = vmatprep.subr.bf16.mxu0 0
    %4912 = vmatpush2.bf16.msra.mxu0 %v4834
    %4913 = vmatprep.subr.bf16.mxu0 0
    %4914 = vmatpush2.bf16.msra.mxu0 %v4833
    %4915 = vmatprep.subr.bf16.mxu0 0
    %4916 = vmatpush2.bf16.msra.mxu0 %v4832
    %4917 = vmatprep.subr.bf16.mxu0 0
    %4918 = vmatpush2.bf16.msra.mxu0 %v4831
    %4919 = vmatprep.mubr.bf16.mxu0 %v4573
    %4920 = vmatmul.mubr.bf16.gmra.mxu0 %v4572
    %v4921 = vpop.f32.mrf.mxu0
    %v4922 = vadd.f32 %v4693, %v4921
    %v4923 = vpop.f32.mrf.mxu0
    %v4924 = vpop.f32.mrf.mxu0
    %v4925 = vadd.f32 %v4693, %v4924
    %v4926 = vpop.f32.mrf.mxu0
    %4927 = vmatprep.mubr.bf16.mxu0 %v4577
    %4928 = vmatmul.mubr.bf16.gmra.mxu0 %v4576
    %v4929 = vpop.f32.mrf.mxu0
    %v4930 = vadd.f32 %v4693, %v4929
    %v4931 = vpop.f32.mrf.mxu0
    %v4932 = vpop.f32.mrf.mxu0
    %v4933 = vadd.f32 %v4693, %v4932
    %v4934 = vpop.f32.mrf.mxu0
    %4935 = vmatprep.mubr.bf16.mxu0 %v4581
    %4936 = vmatmul.mubr.bf16.gmra.mxu0 %v4580
    %v4937 = vpop.f32.mrf.mxu0
    %v4938 = vadd.f32 %v4693, %v4937
    %v4939 = vpop.f32.mrf.mxu0
    %v4940 = vpop.f32.mrf.mxu0
    %v4941 = vadd.f32 %v4693, %v4940
    %v4942 = vpop.f32.mrf.mxu0
    %4943 = vmatprep.mubr.bf16.mxu0 %v4585
    %4944 = vmatmul.mubr.bf16.gmra.mxu0 %v4584
    %v4945 = vpop.f32.mrf.mxu0
    %v4946 = vadd.f32 %v4693, %v4945
    %v4947 = vpop.f32.mrf.mxu0
    %v4948 = vpop.f32.mrf.mxu0
    %v4949 = vadd.f32 %v4693, %v4948
    %v4950 = vpop.f32.mrf.mxu0
    %4951 = vmatprep.mubr.bf16.mxu0 %v4589
    %4952 = vmatmul.mubr.bf16.gmra.mxu0 %v4588
    %v4953 = vpop.f32.mrf.mxu0
    %v4954 = vadd.f32 %v4693, %v4953
    %v4955 = vpop.f32.mrf.mxu0
    %v4956 = vpop.f32.mrf.mxu0
    %v4957 = vadd.f32 %v4693, %v4956
    %v4958 = vpop.f32.mrf.mxu0
    %4959 = vmatprep.mubr.bf16.mxu0 %v4593
    %4960 = vmatmul.mubr.bf16.gmra.mxu0 %v4592
    %v4961 = vpop.f32.mrf.mxu0
    %v4962 = vadd.f32 %v4693, %v4961
    %v4963 = vpop.f32.mrf.mxu0
    %v4964 = vpop.f32.mrf.mxu0
    %v4965 = vadd.f32 %v4693, %v4964
    %v4966 = vpop.f32.mrf.mxu0
    %4967 = vmatprep.mubr.bf16.mxu0 %v4597
    %4968 = vmatmul.mubr.bf16.gmra.mxu0 %v4596
    %v4969 = vpop.f32.mrf.mxu0
    %v4970 = vadd.f32 %v4693, %v4969
    %v4971 = vpop.f32.mrf.mxu0
    %v4972 = vpop.f32.mrf.mxu0
    %v4973 = vadd.f32 %v4693, %v4972
    %v4974 = vpop.f32.mrf.mxu0
    %4975 = vmatprep.mubr.bf16.mxu0 %v4601
    %4976 = vmatmul.mubr.bf16.gmra.mxu0 %v4600
    %v4977 = vpop.f32.mrf.mxu0
    %v4978 = vadd.f32 %v4693, %v4977
    %v4979 = vpop.f32.mrf.mxu0
    %v4980 = vpop.f32.mrf.mxu0
    %v4981 = vadd.f32 %v4693, %v4980
    %v4982 = vpop.f32.mrf.mxu0
    %4983 = vmatprep.mubr.bf16.mxu0 %v4605
    %4984 = vmatmul.mubr.bf16.gmra.mxu0 %v4604
    %v4985 = vpop.f32.mrf.mxu0
    %v4986 = vadd.f32 %v4693, %v4985
    %v4987 = vpop.f32.mrf.mxu0
    %v4988 = vpop.f32.mrf.mxu0
    %v4989 = vadd.f32 %v4693, %v4988
    %v4990 = vpop.f32.mrf.mxu0
    %4991 = vmatprep.mubr.bf16.mxu0 %v4609
    %4992 = vmatmul.mubr.bf16.gmra.mxu0 %v4608
    %v4993 = vpop.f32.mrf.mxu0
    %v4994 = vadd.f32 %v4693, %v4993
    %v4995 = vpop.f32.mrf.mxu0
    %v4996 = vpop.f32.mrf.mxu0
    %v4997 = vadd.f32 %v4693, %v4996
    %v4998 = vpop.f32.mrf.mxu0
    %4999 = vmatprep.mubr.bf16.mxu0 %v4613
    %5000 = vmatmul.mubr.bf16.gmra.mxu0 %v4612
    %v5001 = vpop.f32.mrf.mxu0
    %v5002 = vadd.f32 %v4693, %v5001
    %v5003 = vpop.f32.mrf.mxu0
    %v5004 = vpop.f32.mrf.mxu0
    %v5005 = vadd.f32 %v4693, %v5004
    %v5006 = vpop.f32.mrf.mxu0
    %5007 = vmatprep.mubr.bf16.mxu0 %v4617
    %5008 = vmatmul.mubr.bf16.gmra.mxu0 %v4616
    %v5009 = vpop.f32.mrf.mxu0
    %v5010 = vadd.f32 %v4693, %v5009
    %v5011 = vpop.f32.mrf.mxu0
    %v5012 = vpop.f32.mrf.mxu0
    %v5013 = vadd.f32 %v4693, %v5012
    %v5014 = vpop.f32.mrf.mxu0
    %5015 = vmatprep.mubr.bf16.mxu0 %v4621
    %5016 = vmatmul.mubr.bf16.gmra.mxu0 %v4620
    %v5017 = vpop.f32.mrf.mxu0
    %v5018 = vadd.f32 %v4693, %v5017
    %v5019 = vpop.f32.mrf.mxu0
    %v5020 = vpop.f32.mrf.mxu0
    %v5021 = vpop.f32.mrf.mxu0
    %5022 = vdwg.mxu0
    %5023 = vmatprep.subr.bf16.mxu0 0
    %5024 = vmatpush1.bf16.msra.mxu0 %v4846
    %5025 = vmatprep.subr.bf16.mxu0 0
    %5026 = vmatpush1.bf16.msra.mxu0 %v4845
    %5027 = vmatprep.subr.bf16.mxu0 0
    %5028 = vmatpush1.bf16.msra.mxu0 %v4844
    %5029 = vmatprep.subr.bf16.mxu0 0
    %5030 = vmatpush1.bf16.msra.mxu0 %v4843
    %5031 = vmatprep.subr.bf16.mxu0 0
    %5032 = vmatpush1.bf16.msra.mxu0 %v4842
    %5033 = vmatprep.subr.bf16.mxu0 0
    %5034 = vmatpush1.bf16.msra.mxu0 %v4841
    %5035 = vmatprep.subr.bf16.mxu0 0
    %5036 = vmatpush1.bf16.msra.mxu0 %v4840
    %5037 = vmatprep.subr.bf16.mxu0 0
    %5038 = vmatpush1.bf16.msra.mxu0 %v4839
    %5039 = vmatprep.subr.bf16.mxu0 0
    %5040 = vmatpush2.bf16.msra.mxu0 %v4854
    %5041 = vmatprep.subr.bf16.mxu0 0
    %5042 = vmatpush2.bf16.msra.mxu0 %v4853
    %5043 = vmatprep.subr.bf16.mxu0 0
    %5044 = vmatpush2.bf16.msra.mxu0 %v4852
    %5045 = vmatprep.subr.bf16.mxu0 0
    %5046 = vmatpush2.bf16.msra.mxu0 %v4851
    %5047 = vmatprep.subr.bf16.mxu0 0
    %5048 = vmatpush2.bf16.msra.mxu0 %v4850
    %5049 = vmatprep.subr.bf16.mxu0 0
    %5050 = vmatpush2.bf16.msra.mxu0 %v4849
    %5051 = vmatprep.subr.bf16.mxu0 0
    %5052 = vmatpush2.bf16.msra.mxu0 %v4848
    %5053 = vmatprep.subr.bf16.mxu0 0
    %5054 = vmatpush2.bf16.msra.mxu0 %v4847
    %5055 = vmatprep.mubr.bf16.mxu0 %v4575
    %5056 = vmatmul.mubr.bf16.gmra.mxu0 %v4574
    %v5057 = vpop.f32.mrf.mxu0
    %v5058 = vadd.f32 %v4922, %v5057
    %v5059 = vpop.f32.mrf.mxu0
    %v5060 = vpop.f32.mrf.mxu0
    %v5061 = vadd.f32 %v4925, %v5060
    %v5062 = vpop.f32.mrf.mxu0
    %5063 = vmatprep.mubr.bf16.mxu0 %v4579
    %5064 = vmatmul.mubr.bf16.gmra.mxu0 %v4578
    %v5065 = vpop.f32.mrf.mxu0
    %v5066 = vadd.f32 %v4930, %v5065
    %v5067 = vpop.f32.mrf.mxu0
    %v5068 = vpop.f32.mrf.mxu0
    %v5069 = vadd.f32 %v4933, %v5068
    %v5070 = vpop.f32.mrf.mxu0
    %5071 = vmatprep.mubr.bf16.mxu0 %v4583
    %5072 = vmatmul.mubr.bf16.gmra.mxu0 %v4582
    %v5073 = vpop.f32.mrf.mxu0
    %v5074 = vadd.f32 %v4938, %v5073
    %v5075 = vpop.f32.mrf.mxu0
    %v5076 = vpop.f32.mrf.mxu0
    %v5077 = vadd.f32 %v4941, %v5076
    %v5078 = vpop.f32.mrf.mxu0
    %5079 = vmatprep.mubr.bf16.mxu0 %v4587
    %5080 = vmatmul.mubr.bf16.gmra.mxu0 %v4586
    %v5081 = vpop.f32.mrf.mxu0
    %v5082 = vadd.f32 %v4946, %v5081
    %v5083 = vpop.f32.mrf.mxu0
    %v5084 = vpop.f32.mrf.mxu0
    %v5085 = vadd.f32 %v4949, %v5084
    %v5086 = vpop.f32.mrf.mxu0
    %5087 = vmatprep.mubr.bf16.mxu0 %v4591
    %5088 = vmatmul.mubr.bf16.gmra.mxu0 %v4590
    %v5089 = vpop.f32.mrf.mxu0
    %v5090 = vadd.f32 %v4954, %v5089
    %v5091 = vpop.f32.mrf.mxu0
    %v5092 = vpop.f32.mrf.mxu0
    %v5093 = vadd.f32 %v4957, %v5092
    %v5094 = vpop.f32.mrf.mxu0
    %5095 = vmatprep.mubr.bf16.mxu0 %v4595
    %5096 = vmatmul.mubr.bf16.gmra.mxu0 %v4594
    %v5097 = vpop.f32.mrf.mxu0
    %v5098 = vadd.f32 %v4962, %v5097
    %v5099 = vpop.f32.mrf.mxu0
    %v5100 = vpop.f32.mrf.mxu0
    %v5101 = vadd.f32 %v4965, %v5100
    %v5102 = vpop.f32.mrf.mxu0
    %5103 = vmatprep.mubr.bf16.mxu0 %v4599
    %5104 = vmatmul.mubr.bf16.gmra.mxu0 %v4598
    %v5105 = vpop.f32.mrf.mxu0
    %v5106 = vadd.f32 %v4970, %v5105
    %v5107 = vpop.f32.mrf.mxu0
    %v5108 = vpop.f32.mrf.mxu0
    %v5109 = vadd.f32 %v4973, %v5108
    %v5110 = vpop.f32.mrf.mxu0
    %5111 = vmatprep.mubr.bf16.mxu0 %v4603
    %5112 = vmatmul.mubr.bf16.gmra.mxu0 %v4602
    %v5113 = vpop.f32.mrf.mxu0
    %v5114 = vadd.f32 %v4978, %v5113
    %v5115 = vpop.f32.mrf.mxu0
    %v5116 = vpop.f32.mrf.mxu0
    %v5117 = vadd.f32 %v4981, %v5116
    %v5118 = vpop.f32.mrf.mxu0
    %5119 = vmatprep.mubr.bf16.mxu0 %v4607
    %5120 = vmatmul.mubr.bf16.gmra.mxu0 %v4606
    %v5121 = vpop.f32.mrf.mxu0
    %v5122 = vadd.f32 %v4986, %v5121
    %v5123 = vpop.f32.mrf.mxu0
    %v5124 = vpop.f32.mrf.mxu0
    %v5125 = vadd.f32 %v4989, %v5124
    %v5126 = vpop.f32.mrf.mxu0
    %5127 = vmatprep.mubr.bf16.mxu0 %v4611
    %5128 = vmatmul.mubr.bf16.gmra.mxu0 %v4610
    %v5129 = vpop.f32.mrf.mxu0
    %v5130 = vadd.f32 %v4994, %v5129
    %v5131 = vpop.f32.mrf.mxu0
    %v5132 = vpop.f32.mrf.mxu0
    %v5133 = vadd.f32 %v4997, %v5132
    %v5134 = vpop.f32.mrf.mxu0
    %5135 = vmatprep.mubr.bf16.mxu0 %v4615
    %5136 = vmatmul.mubr.bf16.gmra.mxu0 %v4614
    %v5137 = vpop.f32.mrf.mxu0
    %v5138 = vadd.f32 %v5002, %v5137
    %v5139 = vpop.f32.mrf.mxu0
    %v5140 = vpop.f32.mrf.mxu0
    %v5141 = vadd.f32 %v5005, %v5140
    %v5142 = vpop.f32.mrf.mxu0
    %5143 = vmatprep.mubr.bf16.mxu0 %v4619
    %5144 = vmatmul.mubr.bf16.gmra.mxu0 %v4618
    %v5145 = vpop.f32.mrf.mxu0
    %v5146 = vadd.f32 %v5010, %v5145
    %v5147 = vpop.f32.mrf.mxu0
    %v5148 = vpop.f32.mrf.mxu0
    %v5149 = vadd.f32 %v5013, %v5148
    %v5150 = vpop.f32.mrf.mxu0
    %5151 = vmatprep.mubr.bf16.mxu0 %v4623
    %5152 = vmatmul.mubr.bf16.gmra.mxu0 %v4622
    %v5153 = vpop.f32.mrf.mxu0
    %v5154 = vadd.f32 %v5018, %v5153
    %v5155 = vpop.f32.mrf.mxu0
    %v5156 = vpop.f32.mrf.mxu0
    %v5157 = vpop.f32.mrf.mxu0
    %5158 = vdwg.mxu0
    %5159 = vst [vmem:[#allocation11] sm:$0xff] %v5058
    %5160 = vst [vmem:[#allocation11 + $0x8] sm:$0xff] %v5061
    %5161 = vst [vmem:[#allocation11 + $0x10] sm:$0xff] %v5066
    %5162 = vst [vmem:[#allocation11 + $0x18] sm:$0xff] %v5069
    %5163 = vst [vmem:[#allocation11 + $0x20] sm:$0xff] %v5074
    %5164 = vst [vmem:[#allocation11 + $0x28] sm:$0xff] %v5077
    %5165 = vst [vmem:[#allocation11 + $0x30] sm:$0xff] %v5082
    %5166 = vst [vmem:[#allocation11 + $0x38] sm:$0xff] %v5085
    %5167 = vst [vmem:[#allocation11 + $0x40] sm:$0xff] %v5090
    %5168 = vst [vmem:[#allocation11 + $0x48] sm:$0xff] %v5093
    %5169 = vst [vmem:[#allocation11 + $0x50] sm:$0xff] %v5098
    %5170 = vst [vmem:[#allocation11 + $0x58] sm:$0xff] %v5101
    %5171 = vst [vmem:[#allocation11 + $0x60] sm:$0xff] %v5106
    %5172 = vst [vmem:[#allocation11 + $0x68] sm:$0xff] %v5109
    %5173 = vst [vmem:[#allocation11 + $0x70] sm:$0xff] %v5114
    %5174 = vst [vmem:[#allocation11 + $0x78] sm:$0xff] %v5117
    %5175 = vst [vmem:[#allocation11 + $0x80] sm:$0xff] %v5122
    %5176 = vst [vmem:[#allocation11 + $0x88] sm:$0xff] %v5125
    %5177 = vst [vmem:[#allocation11 + $0x90] sm:$0xff] %v5130
    %5178 = vst [vmem:[#allocation11 + $0x98] sm:$0xff] %v5133
    %5179 = vst [vmem:[#allocation11 + $0xa0] sm:$0xff] %v5138
    %5180 = vst [vmem:[#allocation11 + $0xa8] sm:$0xff] %v5141
    %5181 = vst [vmem:[#allocation11 + $0xb0] sm:$0xff] %v5146
    %5182 = vst [vmem:[#allocation11 + $0xb8] sm:$0xff] %v5149
    %5183 = vst [vmem:[#allocation11 + $0xc0] sm:$0xff] %v5154
    // Predicated region
    $region50: #{tpu_custom_call.1} parent=1 // pred_check
      _
    $region51: #{tpu_custom_call.1} parent=1 // pred_check_branch
      %5185 = sbr.rel (0) target = $region53
    $region52: #{tpu_custom_call.1} parent=1 // pred_region
      %s5187 = ssub.s32 3200, 3200
      %5188 = vsyncadd [#allocation4], %s5187
      %s5189 = sshll.u32 [#allocation11], 4
      %s5190 = int_to_ptr.vmem [resolvable:$true] %s5189
      %5195 = dma.vmem_to_hbm [thread:$0]  %s5190, 3200, %s7, [#allocation4], 128, 128, 8
    $region53: #{tpu_custom_call.1} parent=1 // pred_fallthru
      _
    // Predicated region
    $region54: #{tpu_custom_call.1} parent=1 // pred_check
      _
    $region55: #{tpu_custom_call.1} parent=1 // pred_check_branch
      %5197 = sbr.rel (0) target = $region57
    $region56: #{tpu_custom_call.1} parent=1 // pred_region
      %5198 = dma.done [#allocation4], 3200
    $region57: #{tpu_custom_call.1} parent=1 // pred_fallthru
      _
    %5199 = vsyncpa [#allocation3], 1
    %5200 = vsyncpa [#allocation6], 1
    %5201 = vsyncpa [#allocation9], 1
    %5202 = vsyncpa [#allocation4], 1

</llo_original>
